<compile_context>
chip_gen: v6e
topology: v6e:2x2x1
jax: 0.10.0
libtpu: 0.0.40
codegen_flags: <defaults>
</compile_context>

<pallas_src>
import functools

import numpy as np
import jax
import jax.numpy as jnp
from jax.experimental import pallas as pl
from jax.experimental.pallas import tpu as pltpu

GATE_PAD = 128  # each LSTM gate (i, f, g, o) owns a full 128-lane column group


def _sigmoid(x):
    # 0.5*(tanh(x/2)+1): one EUP tanh + two cheap VPU ops on the serial chain.
    return 0.5 * jnp.tanh(0.5 * x) + 0.5


def lstm_mean_relu_kernel(x_ref, wia_ref, whh_ref, b_ref, out_ref, gx_ref, *, H):
    """
    x_ref  : (B_blk, T, D)      padded batch block of the input sequence
    wia_ref: (D, 4*128)         dense input-projection weights, both directions
    whh_ref: (128, 4*128)       block-diagonal recurrent weights, both directions
    b_ref  : (1, 4*128)         combined (b_ih + b_hh) biases
    out_ref: (B_blk, 128)       lane-dense output: relu(mean_t h) in lanes [0:2H)
    gx_ref : (T, B_blk, 4*128)  VMEM scratch for the hoisted input projections
    """
    B_blk, T, _ = x_ref.shape
    _, _, G = gx_ref.shape
    GP = G // 4
    inv_T = 1.0 / T
    wdt = wia_ref.dtype

    # ---- pre-phase 1: hoisted input projection for every timestep --------------
    # Dense weights (no zero half), written t-major so per-step loads are aligned.
    wia = wia_ref[...]
    bias = b_ref[...]
    for t in range(T):  # TODO(synk): fori_loop / pipelined chunks for large T
        xt = x_ref[:, t, :].astype(wdt)                              # (B_blk, D)
        gx_ref[t] = jnp.dot(xt, wia, preferred_element_type=jnp.float32) + bias

    # ---- pre-phase 2: time-reverse the backward-direction lane groups ----------
    # Step t of the fused recurrence needs fwd gates from x_t and bwd gates from
    # x_{T-1-t}: swap the bwd lanes between rows t and T-1-t (off the chain).
    lane = jax.lax.broadcasted_iota(jnp.int32, (1, G), 1) % GP
    bwd_mask = jnp.logical_and(lane >= H, lane < 2 * H)              # (1, G)
    for t in range(T // 2):
        a = gx_ref[t]
        b_ = gx_ref[T - 1 - t]
        gx_ref[t] = jnp.where(bwd_mask, b_, a)
        gx_ref[T - 1 - t] = jnp.where(bwd_mask, a, b_)

    # ---- recurrence: fused fwd/bwd state, one block-diagonal matmul per step ---
    whh = whh_ref[...]

    def step(t, h, c, acc):
        gates = gx_ref[t] + jnp.dot(h.astype(wdt), whh,
                                    preferred_element_type=jnp.float32)
        i = _sigmoid(gates[:, 0 * GP:1 * GP])
        f = _sigmoid(gates[:, 1 * GP:2 * GP])
        g = jnp.tanh(gates[:, 2 * GP:3 * GP])
        o = _sigmoid(gates[:, 3 * GP:4 * GP])
        c = f * c + i * g
        h = o * jnp.tanh(c)
        return h, c, acc + h

    h = jnp.zeros((B_blk, GP), jnp.float32)
    c = jnp.zeros((B_blk, GP), jnp.float32)
    acc = jnp.zeros((B_blk, GP), jnp.float32)
    if T <= 16:
        # Tiny static T: full unroll (gives the scheduler one step of lookahead).
        for t in range(T):
            h, c, acc = step(t, h, c, acc)
    else:
        # Larger T: bound live ranges with a real loop instead of a huge unroll.
        def body(t, carry):
            return step(t, *carry)
        h, c, acc = jax.lax.fori_loop(0, T, body, (h, c, acc), unroll=2)

    # ---- epilogue: mean over time + ReLU, full lane-dense store -----------------
    # Lanes [0:H)=fwd, [H:2H)=bwd (PyTorch concat order); pad lanes stay 0.
    out_ref[...] = jnp.maximum(acc * inv_T, 0.0)


def pack_params(raw, hidden_dim, param_dtype=jnp.float32):
    """Pack PyTorch-layout nn.LSTM (bidirectional) weights into the kernel layout.

    param_dtype: keep float32 by default; bfloat16 is recommended for wia/whh on
    v6e/v7x (state/accumulators stay f32 in the kernel).
    """
    H = hidden_dim // 2                       # per-direction hidden size
    D = raw["wih_f"].shape[1]
    GP = GATE_PAD
    G = 4 * GP
    assert 2 * H <= GP, "2*H must fit inside one 128-lane gate group"

    wih_f = np.asarray(raw["wih_f"], np.float32)
    whh_f = np.asarray(raw["whh_f"], np.float32)
    wih_b = np.asarray(raw["wih_b"], np.float32)
    whh_b = np.asarray(raw["whh_b"], np.float32)
    bf = np.asarray(raw["bih_f"], np.float32) + np.asarray(raw["bhh_f"], np.float32)
    bb = np.asarray(raw["bih_b"], np.float32) + np.asarray(raw["bhh_b"], np.float32)

    wia = np.zeros((D, G), np.float32)        # dense: no duplicated x rows
    whh = np.zeros((GP, G), np.float32)       # rows [0:H) <- h_f, [H:2H) <- h_b
    b = np.zeros((1, G), np.float32)

    for gidx in range(4):                     # PyTorch gate order: i, f, g, o
        lo = gidx * GP
        rows = slice(gidx * H, (gidx + 1) * H)
        # forward direction -> lanes [lo, lo + H)
        wia[:, lo:lo + H] = wih_f[rows, :].T
        whh[0:H, lo:lo + H] = whh_f[rows, :].T
        b[0, lo:lo + H] = bf[rows]
        # backward direction -> lanes [lo + H, lo + 2H); pad lanes stay exactly 0
        wia[:, lo + H:lo + 2 * H] = wih_b[rows, :].T
        whh[H:2 * H, lo + H:lo + 2 * H] = whh_b[rows, :].T
        b[0, lo + H:lo + 2 * H] = bb[rows]

    return {"wia": jnp.asarray(wia, param_dtype),
            "whh": jnp.asarray(whh, param_dtype),
            "b": jnp.asarray(b, jnp.float32),
            "hidden_dim": hidden_dim}


def rnn_layer_forward(x, params):
    """x: (B, T, D) float32 -> (B, hidden_dim) float32, matching RNNLayer.forward."""
    B, T, D = x.shape
    H2 = params["hidden_dim"]
    GP = GATE_PAD
    G = 4 * GP

    # Pad batch to a sublane multiple (>= 8) and pick the per-invocation block.
    Bp = max(8, -(-B // 8) * 8)
    B_BLK = min(Bp, 128)
    Bp = -(-Bp // B_BLK) * B_BLK
    if Bp != B:
        x = jnp.pad(x, ((0, Bp - B), (0, 0), (0, 0)))

    kernel = functools.partial(lstm_mean_relu_kernel, H=H2 // 2)

    out = pl.pallas_call(
        kernel,
        out_shape=jax.ShapeDtypeStruct((Bp, GP), jnp.float32),
        grid_spec=pltpu.PrefetchScalarGridSpec(
            num_scalar_prefetch=0,
            grid=(Bp // B_BLK,),                       # batch blocks: parallel
            in_specs=[
                pl.BlockSpec((B_BLK, T, D), lambda i: (i, 0, 0)),
                pl.BlockSpec(params["wia"].shape, lambda i: (0, 0)),
                pl.BlockSpec(params["whh"].shape, lambda i: (0, 0)),
                pl.BlockSpec(params["b"].shape, lambda i: (0, 0)),
            ],
            out_specs=pl.BlockSpec((B_BLK, GP), lambda i: (i, 0)),
            scratch_shapes=[pltpu.VMEM((T, B_BLK, G), jnp.float32)],
        ),
        compiler_params=pltpu.CompilerParams(
            dimension_semantics=("parallel",),
            vmem_limit_bytes=32 * 1024 * 1024,
        ),
    )(x, params["wia"], params["whh"], params["b"])

    return out[:B, :H2]


# ----------------- pure-JAX reference (for correctness check) -----------------
def _lstm_dir_ref(x, wih, whh, b_ih, b_hh, reverse=False):
    B, T, D = x.shape
    H = whh.shape[1]
    h = jnp.zeros((B, H), jnp.float32)
    c = jnp.zeros((B, H), jnp.float32)
    outs = [None] * T
    order = range(T - 1, -1, -1) if reverse else range(T)
    for t in order:
        gates = x[:, t] @ wih.T + h @ whh.T + b_ih + b_hh
        i = jax.nn.sigmoid(gates[:, 0 * H:1 * H])
        f = jax.nn.sigmoid(gates[:, 1 * H:2 * H])
        g = jnp.tanh(gates[:, 2 * H:3 * H])
        o = jax.nn.sigmoid(gates[:, 3 * H:4 * H])
        c = f * c + i * g
        h = o * jnp.tanh(c)
        outs[t] = h
    return jnp.stack(outs, axis=1)            # (B, T, H)


def rnn_layer_ref(x, raw):
    fwd = _lstm_dir_ref(x, raw["wih_f"], raw["whh_f"], raw["bih_f"], raw["bhh_f"], False)
    bwd = _lstm_dir_ref(x, raw["wih_b"], raw["whh_b"], raw["bih_b"], raw["bhh_b"], True)
    y = jnp.concatenate([fwd, bwd], axis=-1)  # (B, T, 2H)
    return jax.nn.relu(y.mean(axis=1))        # (B, 2H)


if __name__ == "__main__":
    B, T, D, hidden_dim = 2, 8, 32, 32
    H = hidden_dim // 2  # per-direction hidden size (bidirectional LSTM)

    key = jax.random.PRNGKey(0)
    keys = jax.random.split(key, 9)
    k = 1.0 / np.sqrt(H)

    def u(kk, shape):
        return jax.random.uniform(kk, shape, jnp.float32, minval=-k, maxval=k)

    # PyTorch nn.LSTM parameter shapes (per direction): (4H,D), (4H,H), (4H,), (4H,)
    raw = {
        "wih_f": u(keys[0], (4 * H, D)), "whh_f": u(keys[1], (4 * H, H)),
        "bih_f": u(keys[2], (4 * H,)),   "bhh_f": u(keys[3], (4 * H,)),
        "wih_b": u(keys[4], (4 * H, D)), "whh_b": u(keys[5], (4 * H, H)),
        "bih_b": u(keys[6], (4 * H,)),   "bhh_b": u(keys[7], (4 * H,)),
    }
    params = pack_params(raw, hidden_dim)

    x = jax.random.normal(keys[8], (B, T, D), jnp.float32)

    out = jax.block_until_ready(rnn_layer_forward(x, params))
    ref = jax.block_until_ready(rnn_layer_ref(x, raw))

    assert out.shape == (B, hidden_dim)
    np.testing.assert_allclose(np.asarray(out), np.asarray(ref), rtol=1e-5, atol=2e-5)

    print("KERNEL_OK")
</pallas_src>

<mosaic_0001>
module attributes {stable_mosaic.version = 11 : i64} {
  func.func @lstm_mean_relu_kernel(%arg0: i32, %arg1: memref<8x8x32xf32, #tpu.memory_space<vmem>>, %arg2: memref<32x512xf32, #tpu.memory_space<vmem>>, %arg3: memref<128x512xf32, #tpu.memory_space<vmem>>, %arg4: memref<1x512xf32, #tpu.memory_space<vmem>>, %arg5: memref<8x128xf32, #tpu.memory_space<vmem>>, %arg6: memref<8x8x512xf32, #tpu.memory_space<vmem>>) attributes {dimension_semantics = [#tpu.dimension_semantics<parallel>], iteration_bounds = array<i64: 1>, scalar_prefetch = 0 : i64, scratch_operands = 1 : i64, tpu.core_type = #tpu.core_type<tc>, window_params = [{transform_indices = @transform_0, window_bounds = array<i64: 8, 8, 32>}, {pipeline_mode = #tpu.pipeline_mode<synchronous>, transform_indices = @transform_1, window_bounds = array<i64: 32, 512>}, {pipeline_mode = #tpu.pipeline_mode<synchronous>, transform_indices = @transform_2, window_bounds = array<i64: 128, 512>}, {pipeline_mode = #tpu.pipeline_mode<synchronous>, transform_indices = @transform_3, window_bounds = array<i64: 1, 512>}, {transform_indices = @transform_4, window_bounds = array<i64: 8, 128>}]} {
    %c0 = arith.constant 0 : index
    %c0_0 = arith.constant 0 : index
    %0 = vector.load %arg2[%c0, %c0_0] : memref<32x512xf32, #tpu.memory_space<vmem>>, vector<32x512xf32>
    %c0_1 = arith.constant 0 : index
    %c0_2 = arith.constant 0 : index
    %1 = vector.load %arg4[%c0_1, %c0_2] : memref<1x512xf32, #tpu.memory_space<vmem>>, vector<1x512xf32>
    %c0_3 = arith.constant 0 : index
    %c0_4 = arith.constant 0 : index
    %c0_5 = arith.constant 0 : index
    %2 = vector.load %arg1[%c0_3, %c0_4, %c0_5] : memref<8x8x32xf32, #tpu.memory_space<vmem>>, vector<8x1x32xf32>
    %3 = vector.shape_cast %2 : vector<8x1x32xf32> to vector<8x32xf32>
    %cst = arith.constant dense<0.000000e+00> : vector<8x512xf32>
    %4 = tpu.matmul %3, %0, %cst {dimension_numbers = #tpu.dot_dimension_numbers<[1], [0], [0], [1], [0, 0, 1, 1], [], []>} : vector<8x32xf32>, vector<32x512xf32>, vector<8x512xf32> -> vector<8x512xf32>
    %5 = vector.broadcast %1 : vector<1x512xf32> to vector<8x512xf32>
    %6 = arith.addf %4, %5 : vector<8x512xf32>
    %c0_6 = arith.constant 0 : index
    %c0_7 = arith.constant 0 : index
    %c0_8 = arith.constant 0 : index
    %7 = vector.load %arg6[%c0_6, %c0_7, %c0_8] : memref<8x8x512xf32, #tpu.memory_space<vmem>>, vector<1x8x512xf32>
    %8 = vector.shape_cast %7 : vector<1x8x512xf32> to vector<8x512xf32>
    %9 = vector.shape_cast %6 : vector<8x512xf32> to vector<1x8x512xf32>
    tpu.vector_store %arg6[%c0_6, %c0_7, %c0_8], %9 {strides = array<i32>} : memref<8x8x512xf32, #tpu.memory_space<vmem>>, vector<1x8x512xf32>,
    %c0_9 = arith.constant 0 : index
    %c1 = arith.constant 1 : index
    %c0_10 = arith.constant 0 : index
    %10 = vector.load %arg1[%c0_9, %c1, %c0_10] : memref<8x8x32xf32, #tpu.memory_space<vmem>>, vector<8x1x32xf32>
    %11 = vector.shape_cast %10 : vector<8x1x32xf32> to vector<8x32xf32>
    %cst_11 = arith.constant dense<0.000000e+00> : vector<8x512xf32>
    %12 = tpu.matmul %11, %0, %cst_11 {dimension_numbers = #tpu.dot_dimension_numbers<[1], [0], [0], [1], [0, 0, 1, 1], [], []>} : vector<8x32xf32>, vector<32x512xf32>, vector<8x512xf32> -> vector<8x512xf32>
    %13 = vector.broadcast %1 : vector<1x512xf32> to vector<8x512xf32>
    %14 = arith.addf %12, %13 : vector<8x512xf32>
    %c1_12 = arith.constant 1 : index
    %c0_13 = arith.constant 0 : index
    %c0_14 = arith.constant 0 : index
    %15 = vector.load %arg6[%c1_12, %c0_13, %c0_14] : memref<8x8x512xf32, #tpu.memory_space<vmem>>, vector<1x8x512xf32>
    %16 = vector.shape_cast %15 : vector<1x8x512xf32> to vector<8x512xf32>
    %17 = vector.shape_cast %14 : vector<8x512xf32> to vector<1x8x512xf32>
    tpu.vector_store %arg6[%c1_12, %c0_13, %c0_14], %17 {strides = array<i32>} : memref<8x8x512xf32, #tpu.memory_space<vmem>>, vector<1x8x512xf32>,
    %c0_15 = arith.constant 0 : index
    %c2 = arith.constant 2 : index
    %c0_16 = arith.constant 0 : index
    %18 = vector.load %arg1[%c0_15, %c2, %c0_16] : memref<8x8x32xf32, #tpu.memory_space<vmem>>, vector<8x1x32xf32>
    %19 = vector.shape_cast %18 : vector<8x1x32xf32> to vector<8x32xf32>
    %cst_17 = arith.constant dense<0.000000e+00> : vector<8x512xf32>
    %20 = tpu.matmul %19, %0, %cst_17 {dimension_numbers = #tpu.dot_dimension_numbers<[1], [0], [0], [1], [0, 0, 1, 1], [], []>} : vector<8x32xf32>, vector<32x512xf32>, vector<8x512xf32> -> vector<8x512xf32>
    %21 = vector.broadcast %1 : vector<1x512xf32> to vector<8x512xf32>
    %22 = arith.addf %20, %21 : vector<8x512xf32>
    %c2_18 = arith.constant 2 : index
    %c0_19 = arith.constant 0 : index
    %c0_20 = arith.constant 0 : index
    %23 = vector.load %arg6[%c2_18, %c0_19, %c0_20] : memref<8x8x512xf32, #tpu.memory_space<vmem>>, vector<1x8x512xf32>
    %24 = vector.shape_cast %23 : vector<1x8x512xf32> to vector<8x512xf32>
    %25 = vector.shape_cast %22 : vector<8x512xf32> to vector<1x8x512xf32>
    tpu.vector_store %arg6[%c2_18, %c0_19, %c0_20], %25 {strides = array<i32>} : memref<8x8x512xf32, #tpu.memory_space<vmem>>, vector<1x8x512xf32>,
    %c0_21 = arith.constant 0 : index
    %c3 = arith.constant 3 : index
    %c0_22 = arith.constant 0 : index
    %26 = vector.load %arg1[%c0_21, %c3, %c0_22] : memref<8x8x32xf32, #tpu.memory_space<vmem>>, vector<8x1x32xf32>
    %27 = vector.shape_cast %26 : vector<8x1x32xf32> to vector<8x32xf32>
    %cst_23 = arith.constant dense<0.000000e+00> : vector<8x512xf32>
    %28 = tpu.matmul %27, %0, %cst_23 {dimension_numbers = #tpu.dot_dimension_numbers<[1], [0], [0], [1], [0, 0, 1, 1], [], []>} : vector<8x32xf32>, vector<32x512xf32>, vector<8x512xf32> -> vector<8x512xf32>
    %29 = vector.broadcast %1 : vector<1x512xf32> to vector<8x512xf32>
    %30 = arith.addf %28, %29 : vector<8x512xf32>
    %c3_24 = arith.constant 3 : index
    %c0_25 = arith.constant 0 : index
    %c0_26 = arith.constant 0 : index
    %31 = vector.load %arg6[%c3_24, %c0_25, %c0_26] : memref<8x8x512xf32, #tpu.memory_space<vmem>>, vector<1x8x512xf32>
    %32 = vector.shape_cast %31 : vector<1x8x512xf32> to vector<8x512xf32>
    %33 = vector.shape_cast %30 : vector<8x512xf32> to vector<1x8x512xf32>
    tpu.vector_store %arg6[%c3_24, %c0_25, %c0_26], %33 {strides = array<i32>} : memref<8x8x512xf32, #tpu.memory_space<vmem>>, vector<1x8x512xf32>,
    %c0_27 = arith.constant 0 : index
    %c4 = arith.constant 4 : index
    %c0_28 = arith.constant 0 : index
    %34 = vector.load %arg1[%c0_27, %c4, %c0_28] : memref<8x8x32xf32, #tpu.memory_space<vmem>>, vector<8x1x32xf32>
    %35 = vector.shape_cast %34 : vector<8x1x32xf32> to vector<8x32xf32>
    %cst_29 = arith.constant dense<0.000000e+00> : vector<8x512xf32>
    %36 = tpu.matmul %35, %0, %cst_29 {dimension_numbers = #tpu.dot_dimension_numbers<[1], [0], [0], [1], [0, 0, 1, 1], [], []>} : vector<8x32xf32>, vector<32x512xf32>, vector<8x512xf32> -> vector<8x512xf32>
    %37 = vector.broadcast %1 : vector<1x512xf32> to vector<8x512xf32>
    %38 = arith.addf %36, %37 : vector<8x512xf32>
    %c4_30 = arith.constant 4 : index
    %c0_31 = arith.constant 0 : index
    %c0_32 = arith.constant 0 : index
    %39 = vector.load %arg6[%c4_30, %c0_31, %c0_32] : memref<8x8x512xf32, #tpu.memory_space<vmem>>, vector<1x8x512xf32>
    %40 = vector.shape_cast %39 : vector<1x8x512xf32> to vector<8x512xf32>
    %41 = vector.shape_cast %38 : vector<8x512xf32> to vector<1x8x512xf32>
    tpu.vector_store %arg6[%c4_30, %c0_31, %c0_32], %41 {strides = array<i32>} : memref<8x8x512xf32, #tpu.memory_space<vmem>>, vector<1x8x512xf32>,
    %c0_33 = arith.constant 0 : index
    %c5 = arith.constant 5 : index
    %c0_34 = arith.constant 0 : index
    %42 = vector.load %arg1[%c0_33, %c5, %c0_34] : memref<8x8x32xf32, #tpu.memory_space<vmem>>, vector<8x1x32xf32>
    %43 = vector.shape_cast %42 : vector<8x1x32xf32> to vector<8x32xf32>
    %cst_35 = arith.constant dense<0.000000e+00> : vector<8x512xf32>
    %44 = tpu.matmul %43, %0, %cst_35 {dimension_numbers = #tpu.dot_dimension_numbers<[1], [0], [0], [1], [0, 0, 1, 1], [], []>} : vector<8x32xf32>, vector<32x512xf32>, vector<8x512xf32> -> vector<8x512xf32>
    %45 = vector.broadcast %1 : vector<1x512xf32> to vector<8x512xf32>
    %46 = arith.addf %44, %45 : vector<8x512xf32>
    %c5_36 = arith.constant 5 : index
    %c0_37 = arith.constant 0 : index
    %c0_38 = arith.constant 0 : index
    %47 = vector.load %arg6[%c5_36, %c0_37, %c0_38] : memref<8x8x512xf32, #tpu.memory_space<vmem>>, vector<1x8x512xf32>
    %48 = vector.shape_cast %47 : vector<1x8x512xf32> to vector<8x512xf32>
    %49 = vector.shape_cast %46 : vector<8x512xf32> to vector<1x8x512xf32>
    tpu.vector_store %arg6[%c5_36, %c0_37, %c0_38], %49 {strides = array<i32>} : memref<8x8x512xf32, #tpu.memory_space<vmem>>, vector<1x8x512xf32>,
    %c0_39 = arith.constant 0 : index
    %c6 = arith.constant 6 : index
    %c0_40 = arith.constant 0 : index
    %50 = vector.load %arg1[%c0_39, %c6, %c0_40] : memref<8x8x32xf32, #tpu.memory_space<vmem>>, vector<8x1x32xf32>
    %51 = vector.shape_cast %50 : vector<8x1x32xf32> to vector<8x32xf32>
    %cst_41 = arith.constant dense<0.000000e+00> : vector<8x512xf32>
    %52 = tpu.matmul %51, %0, %cst_41 {dimension_numbers = #tpu.dot_dimension_numbers<[1], [0], [0], [1], [0, 0, 1, 1], [], []>} : vector<8x32xf32>, vector<32x512xf32>, vector<8x512xf32> -> vector<8x512xf32>
    %53 = vector.broadcast %1 : vector<1x512xf32> to vector<8x512xf32>
    %54 = arith.addf %52, %53 : vector<8x512xf32>
    %c6_42 = arith.constant 6 : index
    %c0_43 = arith.constant 0 : index
    %c0_44 = arith.constant 0 : index
    %55 = vector.load %arg6[%c6_42, %c0_43, %c0_44] : memref<8x8x512xf32, #tpu.memory_space<vmem>>, vector<1x8x512xf32>
    %56 = vector.shape_cast %55 : vector<1x8x512xf32> to vector<8x512xf32>
    %57 = vector.shape_cast %54 : vector<8x512xf32> to vector<1x8x512xf32>
    tpu.vector_store %arg6[%c6_42, %c0_43, %c0_44], %57 {strides = array<i32>} : memref<8x8x512xf32, #tpu.memory_space<vmem>>, vector<1x8x512xf32>,
    %c0_45 = arith.constant 0 : index
    %c7 = arith.constant 7 : index
    %c0_46 = arith.constant 0 : index
    %58 = vector.load %arg1[%c0_45, %c7, %c0_46] : memref<8x8x32xf32, #tpu.memory_space<vmem>>, vector<8x1x32xf32>
    %59 = vector.shape_cast %58 : vector<8x1x32xf32> to vector<8x32xf32>
    %cst_47 = arith.constant dense<0.000000e+00> : vector<8x512xf32>
    %60 = tpu.matmul %59, %0, %cst_47 {dimension_numbers = #tpu.dot_dimension_numbers<[1], [0], [0], [1], [0, 0, 1, 1], [], []>} : vector<8x32xf32>, vector<32x512xf32>, vector<8x512xf32> -> vector<8x512xf32>
    %61 = vector.broadcast %1 : vector<1x512xf32> to vector<8x512xf32>
    %62 = arith.addf %60, %61 : vector<8x512xf32>
    %c7_48 = arith.constant 7 : index
    %c0_49 = arith.constant 0 : index
    %c0_50 = arith.constant 0 : index
    %63 = vector.load %arg6[%c7_48, %c0_49, %c0_50] : memref<8x8x512xf32, #tpu.memory_space<vmem>>, vector<1x8x512xf32>
    %64 = vector.shape_cast %63 : vector<1x8x512xf32> to vector<8x512xf32>
    %65 = vector.shape_cast %62 : vector<8x512xf32> to vector<1x8x512xf32>
    tpu.vector_store %arg6[%c7_48, %c0_49, %c0_50], %65 {strides = array<i32>} : memref<8x8x512xf32, #tpu.memory_space<vmem>>, vector<1x8x512xf32>,
    %66 = tpu.iota {dimensions = array<i32: 1>} : vector<1x512xi32>
    %c128_i32 = arith.constant 128 : i32
    %c0_i32 = arith.constant 0 : i32
    %67 = arith.cmpi eq, %c128_i32, %c0_i32 : i32
    %c1_i32 = arith.constant 1 : i32
    %68 = arith.select %67, %c1_i32, %c128_i32 : i32
    %69 = vector.broadcast %68 : i32 to vector<1x512xi32>
    %70 = arith.remsi %66, %69 : vector<1x512xi32>
    %c0_i32_51 = arith.constant 0 : i32
    %71 = vector.broadcast %c0_i32_51 : i32 to vector<1x512xi32>
    %72 = arith.cmpi ne, %70, %71 : vector<1x512xi32>
    %c0_i32_52 = arith.constant 0 : i32
    %73 = vector.broadcast %c0_i32_52 : i32 to vector<1x512xi32>
    %74 = arith.cmpi slt, %70, %73 : vector<1x512xi32>
    %c0_i32_53 = arith.constant 0 : i32
    %75 = arith.cmpi slt, %68, %c0_i32_53 : i32
    %76 = vector.broadcast %75 : i1 to vector<1x512xi1>
    %77 = vector.broadcast %76 : vector<1x512xi1> to vector<1x512xi1>
    %78 = arith.xori %74, %77 : vector<1x512xi1>
    %79 = arith.andi %78, %72 : vector<1x512xi1>
    %80 = vector.broadcast %68 : i32 to vector<1x512xi32>
    %81 = arith.addi %70, %80 : vector<1x512xi32>
    %82 = arith.select %79, %81, %70 : vector<1x512xi1>, vector<1x512xi32>
    %c16_i32 = arith.constant 16 : i32
    %83 = vector.broadcast %c16_i32 : i32 to vector<1x512xi32>
    %84 = arith.cmpi sge, %82, %83 : vector<1x512xi32>
    %c32_i32 = arith.constant 32 : i32
    %85 = vector.broadcast %c32_i32 : i32 to vector<1x512xi32>
    %86 = arith.cmpi slt, %82, %85 : vector<1x512xi32>
    %87 = arith.andi %84, %86 : vector<1x512xi1>
    %c0_54 = arith.constant 0 : index
    %c0_55 = arith.constant 0 : index
    %c0_56 = arith.constant 0 : index
    %88 = vector.load %arg6[%c0_54, %c0_55, %c0_56] : memref<8x8x512xf32, #tpu.memory_space<vmem>>, vector<1x8x512xf32>
    %89 = vector.shape_cast %88 : vector<1x8x512xf32> to vector<8x512xf32>
    %c7_57 = arith.constant 7 : index
    %c0_58 = arith.constant 0 : index
    %c0_59 = arith.constant 0 : index
    %90 = vector.load %arg6[%c7_57, %c0_58, %c0_59] : memref<8x8x512xf32, #tpu.memory_space<vmem>>, vector<1x8x512xf32>
    %91 = vector.shape_cast %90 : vector<1x8x512xf32> to vector<8x512xf32>
    %92 = vector.shape_cast %87 : vector<1x512xi1> to vector<1x512xi1>
    %93 = vector.broadcast %92 : vector<1x512xi1> to vector<8x512xi1>
    %94 = arith.select %93, %91, %89 : vector<8x512xi1>, vector<8x512xf32>
    %c0_60 = arith.constant 0 : index
    %c0_61 = arith.constant 0 : index
    %c0_62 = arith.constant 0 : index
    %95 = vector.load %arg6[%c0_60, %c0_61, %c0_62] : memref<8x8x512xf32, #tpu.memory_space<vmem>>, vector<1x8x512xf32>
    %96 = vector.shape_cast %95 : vector<1x8x512xf32> to vector<8x512xf32>
    %97 = vector.shape_cast %94 : vector<8x512xf32> to vector<1x8x512xf32>
    tpu.vector_store %arg6[%c0_60, %c0_61, %c0_62], %97 {strides = array<i32>} : memref<8x8x512xf32, #tpu.memory_space<vmem>>, vector<1x8x512xf32>,
    %98 = vector.shape_cast %87 : vector<1x512xi1> to vector<1x512xi1>
    %99 = vector.broadcast %98 : vector<1x512xi1> to vector<8x512xi1>
    %100 = arith.select %99, %89, %91 : vector<8x512xi1>, vector<8x512xf32>
    %c7_63 = arith.constant 7 : index
    %c0_64 = arith.constant 0 : index
    %c0_65 = arith.constant 0 : index
    %101 = vector.load %arg6[%c7_63, %c0_64, %c0_65] : memref<8x8x512xf32, #tpu.memory_space<vmem>>, vector<1x8x512xf32>
    %102 = vector.shape_cast %101 : vector<1x8x512xf32> to vector<8x512xf32>
    %103 = vector.shape_cast %100 : vector<8x512xf32> to vector<1x8x512xf32>
    tpu.vector_store %arg6[%c7_63, %c0_64, %c0_65], %103 {strides = array<i32>} : memref<8x8x512xf32, #tpu.memory_space<vmem>>, vector<1x8x512xf32>,
    %c1_66 = arith.constant 1 : index
    %c0_67 = arith.constant 0 : index
    %c0_68 = arith.constant 0 : index
    %104 = vector.load %arg6[%c1_66, %c0_67, %c0_68] : memref<8x8x512xf32, #tpu.memory_space<vmem>>, vector<1x8x512xf32>
    %105 = vector.shape_cast %104 : vector<1x8x512xf32> to vector<8x512xf32>
    %c6_69 = arith.constant 6 : index
    %c0_70 = arith.constant 0 : index
    %c0_71 = arith.constant 0 : index
    %106 = vector.load %arg6[%c6_69, %c0_70, %c0_71] : memref<8x8x512xf32, #tpu.memory_space<vmem>>, vector<1x8x512xf32>
    %107 = vector.shape_cast %106 : vector<1x8x512xf32> to vector<8x512xf32>
    %108 = vector.shape_cast %87 : vector<1x512xi1> to vector<1x512xi1>
    %109 = vector.broadcast %108 : vector<1x512xi1> to vector<8x512xi1>
    %110 = arith.select %109, %107, %105 : vector<8x512xi1>, vector<8x512xf32>
    %c1_72 = arith.constant 1 : index
    %c0_73 = arith.constant 0 : index
    %c0_74 = arith.constant 0 : index
    %111 = vector.load %arg6[%c1_72, %c0_73, %c0_74] : memref<8x8x512xf32, #tpu.memory_space<vmem>>, vector<1x8x512xf32>
    %112 = vector.shape_cast %111 : vector<1x8x512xf32> to vector<8x512xf32>
    %113 = vector.shape_cast %110 : vector<8x512xf32> to vector<1x8x512xf32>
    tpu.vector_store %arg6[%c1_72, %c0_73, %c0_74], %113 {strides = array<i32>} : memref<8x8x512xf32, #tpu.memory_space<vmem>>, vector<1x8x512xf32>,
    %114 = vector.shape_cast %87 : vector<1x512xi1> to vector<1x512xi1>
    %115 = vector.broadcast %114 : vector<1x512xi1> to vector<8x512xi1>
    %116 = arith.select %115, %105, %107 : vector<8x512xi1>, vector<8x512xf32>
    %c6_75 = arith.constant 6 : index
    %c0_76 = arith.constant 0 : index
    %c0_77 = arith.constant 0 : index
    %117 = vector.load %arg6[%c6_75, %c0_76, %c0_77] : memref<8x8x512xf32, #tpu.memory_space<vmem>>, vector<1x8x512xf32>
    %118 = vector.shape_cast %117 : vector<1x8x512xf32> to vector<8x512xf32>
    %119 = vector.shape_cast %116 : vector<8x512xf32> to vector<1x8x512xf32>
    tpu.vector_store %arg6[%c6_75, %c0_76, %c0_77], %119 {strides = array<i32>} : memref<8x8x512xf32, #tpu.memory_space<vmem>>, vector<1x8x512xf32>,
    %c2_78 = arith.constant 2 : index
    %c0_79 = arith.constant 0 : index
    %c0_80 = arith.constant 0 : index
    %120 = vector.load %arg6[%c2_78, %c0_79, %c0_80] : memref<8x8x512xf32, #tpu.memory_space<vmem>>, vector<1x8x512xf32>
    %121 = vector.shape_cast %120 : vector<1x8x512xf32> to vector<8x512xf32>
    %c5_81 = arith.constant 5 : index
    %c0_82 = arith.constant 0 : index
    %c0_83 = arith.constant 0 : index
    %122 = vector.load %arg6[%c5_81, %c0_82, %c0_83] : memref<8x8x512xf32, #tpu.memory_space<vmem>>, vector<1x8x512xf32>
    %123 = vector.shape_cast %122 : vector<1x8x512xf32> to vector<8x512xf32>
    %124 = vector.shape_cast %87 : vector<1x512xi1> to vector<1x512xi1>
    %125 = vector.broadcast %124 : vector<1x512xi1> to vector<8x512xi1>
    %126 = arith.select %125, %123, %121 : vector<8x512xi1>, vector<8x512xf32>
    %c2_84 = arith.constant 2 : index
    %c0_85 = arith.constant 0 : index
    %c0_86 = arith.constant 0 : index
    %127 = vector.load %arg6[%c2_84, %c0_85, %c0_86] : memref<8x8x512xf32, #tpu.memory_space<vmem>>, vector<1x8x512xf32>
    %128 = vector.shape_cast %127 : vector<1x8x512xf32> to vector<8x512xf32>
    %129 = vector.shape_cast %126 : vector<8x512xf32> to vector<1x8x512xf32>
    tpu.vector_store %arg6[%c2_84, %c0_85, %c0_86], %129 {strides = array<i32>} : memref<8x8x512xf32, #tpu.memory_space<vmem>>, vector<1x8x512xf32>,
    %130 = vector.shape_cast %87 : vector<1x512xi1> to vector<1x512xi1>
    %131 = vector.broadcast %130 : vector<1x512xi1> to vector<8x512xi1>
    %132 = arith.select %131, %121, %123 : vector<8x512xi1>, vector<8x512xf32>
    %c5_87 = arith.constant 5 : index
    %c0_88 = arith.constant 0 : index
    %c0_89 = arith.constant 0 : index
    %133 = vector.load %arg6[%c5_87, %c0_88, %c0_89] : memref<8x8x512xf32, #tpu.memory_space<vmem>>, vector<1x8x512xf32>
    %134 = vector.shape_cast %133 : vector<1x8x512xf32> to vector<8x512xf32>
    %135 = vector.shape_cast %132 : vector<8x512xf32> to vector<1x8x512xf32>
    tpu.vector_store %arg6[%c5_87, %c0_88, %c0_89], %135 {strides = array<i32>} : memref<8x8x512xf32, #tpu.memory_space<vmem>>, vector<1x8x512xf32>,
    %c3_90 = arith.constant 3 : index
    %c0_91 = arith.constant 0 : index
    %c0_92 = arith.constant 0 : index
    %136 = vector.load %arg6[%c3_90, %c0_91, %c0_92] : memref<8x8x512xf32, #tpu.memory_space<vmem>>, vector<1x8x512xf32>
    %137 = vector.shape_cast %136 : vector<1x8x512xf32> to vector<8x512xf32>
    %c4_93 = arith.constant 4 : index
    %c0_94 = arith.constant 0 : index
    %c0_95 = arith.constant 0 : index
    %138 = vector.load %arg6[%c4_93, %c0_94, %c0_95] : memref<8x8x512xf32, #tpu.memory_space<vmem>>, vector<1x8x512xf32>
    %139 = vector.shape_cast %138 : vector<1x8x512xf32> to vector<8x512xf32>
    %140 = vector.shape_cast %87 : vector<1x512xi1> to vector<1x512xi1>
    %141 = vector.broadcast %140 : vector<1x512xi1> to vector<8x512xi1>
    %142 = arith.select %141, %139, %137 : vector<8x512xi1>, vector<8x512xf32>
    %c3_96 = arith.constant 3 : index
    %c0_97 = arith.constant 0 : index
    %c0_98 = arith.constant 0 : index
    %143 = vector.load %arg6[%c3_96, %c0_97, %c0_98] : memref<8x8x512xf32, #tpu.memory_space<vmem>>, vector<1x8x512xf32>
    %144 = vector.shape_cast %143 : vector<1x8x512xf32> to vector<8x512xf32>
    %145 = vector.shape_cast %142 : vector<8x512xf32> to vector<1x8x512xf32>
    tpu.vector_store %arg6[%c3_96, %c0_97, %c0_98], %145 {strides = array<i32>} : memref<8x8x512xf32, #tpu.memory_space<vmem>>, vector<1x8x512xf32>,
    %146 = vector.shape_cast %87 : vector<1x512xi1> to vector<1x512xi1>
    %147 = vector.broadcast %146 : vector<1x512xi1> to vector<8x512xi1>
    %148 = arith.select %147, %137, %139 : vector<8x512xi1>, vector<8x512xf32>
    %c4_99 = arith.constant 4 : index
    %c0_100 = arith.constant 0 : index
    %c0_101 = arith.constant 0 : index
    %149 = vector.load %arg6[%c4_99, %c0_100, %c0_101] : memref<8x8x512xf32, #tpu.memory_space<vmem>>, vector<1x8x512xf32>
    %150 = vector.shape_cast %149 : vector<1x8x512xf32> to vector<8x512xf32>
    %151 = vector.shape_cast %148 : vector<8x512xf32> to vector<1x8x512xf32>
    tpu.vector_store %arg6[%c4_99, %c0_100, %c0_101], %151 {strides = array<i32>} : memref<8x8x512xf32, #tpu.memory_space<vmem>>, vector<1x8x512xf32>,
    %c0_102 = arith.constant 0 : index
    %c0_103 = arith.constant 0 : index
    %152 = vector.load %arg3[%c0_102, %c0_103] : memref<128x512xf32, #tpu.memory_space<vmem>>, vector<128x512xf32>
    %cst_104 = arith.constant 0.000000e+00 : f32
    %153 = vector.broadcast %cst_104 : f32 to vector<8x128xf32>
    %cst_105 = arith.constant 0.000000e+00 : f32
    %154 = vector.broadcast %cst_105 : f32 to vector<8x128xf32>
    %cst_106 = arith.constant 0.000000e+00 : f32
    %155 = vector.broadcast %cst_106 : f32 to vector<8x128xf32>
    %c0_107 = arith.constant 0 : index
    %c0_108 = arith.constant 0 : index
    %c0_109 = arith.constant 0 : index
    %156 = vector.load %arg6[%c0_107, %c0_108, %c0_109] : memref<8x8x512xf32, #tpu.memory_space<vmem>>, vector<1x8x512xf32>
    %157 = vector.shape_cast %156 : vector<1x8x512xf32> to vector<8x512xf32>
    %cst_110 = arith.constant dense<0.000000e+00> : vector<8x512xf32>
    %158 = tpu.matmul %153, %152, %cst_110 {dimension_numbers = #tpu.dot_dimension_numbers<[1], [0], [0], [1], [0, 0, 1, 1], [], []>} : vector<8x128xf32>, vector<128x512xf32>, vector<8x512xf32> -> vector<8x512xf32>
    %159 = arith.addf %157, %158 : vector<8x512xf32>
    %160 = vector.extract_strided_slice %159 {offsets = [0, 0], sizes = [8, 128], strides = [1, 1]} : vector<8x512xf32> to vector<8x128xf32>
    %cst_111 = arith.constant 5.000000e-01 : f32
    %161 = vector.broadcast %cst_111 : f32 to vector<8x128xf32>
    %162 = arith.mulf %161, %160 : vector<8x128xf32>
    %163 = math.tanh %162 : vector<8x128xf32>
    %cst_112 = arith.constant 5.000000e-01 : f32
    %164 = vector.broadcast %cst_112 : f32 to vector<8x128xf32>
    %165 = arith.mulf %164, %163 : vector<8x128xf32>
    %cst_113 = arith.constant 5.000000e-01 : f32
    %166 = vector.broadcast %cst_113 : f32 to vector<8x128xf32>
    %167 = arith.addf %165, %166 : vector<8x128xf32>
    %168 = vector.extract_strided_slice %159 {offsets = [0, 128], sizes = [8, 128], strides = [1, 1]} : vector<8x512xf32> to vector<8x128xf32>
    %cst_114 = arith.constant 5.000000e-01 : f32
    %169 = vector.broadcast %cst_114 : f32 to vector<8x128xf32>
    %170 = arith.mulf %169, %168 : vector<8x128xf32>
    %171 = math.tanh %170 : vector<8x128xf32>
    %cst_115 = arith.constant 5.000000e-01 : f32
    %172 = vector.broadcast %cst_115 : f32 to vector<8x128xf32>
    %173 = arith.mulf %172, %171 : vector<8x128xf32>
    %cst_116 = arith.constant 5.000000e-01 : f32
    %174 = vector.broadcast %cst_116 : f32 to vector<8x128xf32>
    %175 = arith.addf %173, %174 : vector<8x128xf32>
    %176 = vector.extract_strided_slice %159 {offsets = [0, 256], sizes = [8, 128], strides = [1, 1]} : vector<8x512xf32> to vector<8x128xf32>
    %177 = math.tanh %176 : vector<8x128xf32>
    %178 = vector.extract_strided_slice %159 {offsets = [0, 384], sizes = [8, 128], strides = [1, 1]} : vector<8x512xf32> to vector<8x128xf32>
    %cst_117 = arith.constant 5.000000e-01 : f32
    %179 = vector.broadcast %cst_117 : f32 to vector<8x128xf32>
    %180 = arith.mulf %179, %178 : vector<8x128xf32>
    %181 = math.tanh %180 : vector<8x128xf32>
    %cst_118 = arith.constant 5.000000e-01 : f32
    %182 = vector.broadcast %cst_118 : f32 to vector<8x128xf32>
    %183 = arith.mulf %182, %181 : vector<8x128xf32>
    %cst_119 = arith.constant 5.000000e-01 : f32
    %184 = vector.broadcast %cst_119 : f32 to vector<8x128xf32>
    %185 = arith.addf %183, %184 : vector<8x128xf32>
    %186 = arith.mulf %175, %154 : vector<8x128xf32>
    %187 = arith.mulf %167, %177 : vector<8x128xf32>
    %188 = arith.addf %186, %187 : vector<8x128xf32>
    %189 = math.tanh %188 : vector<8x128xf32>
    %190 = arith.mulf %185, %189 : vector<8x128xf32>
    %191 = arith.addf %155, %190 : vector<8x128xf32>
    %c1_120 = arith.constant 1 : index
    %c0_121 = arith.constant 0 : index
    %c0_122 = arith.constant 0 : index
    %192 = vector.load %arg6[%c1_120, %c0_121, %c0_122] : memref<8x8x512xf32, #tpu.memory_space<vmem>>, vector<1x8x512xf32>
    %193 = vector.shape_cast %192 : vector<1x8x512xf32> to vector<8x512xf32>
    %cst_123 = arith.constant dense<0.000000e+00> : vector<8x512xf32>
    %194 = tpu.matmul %190, %152, %cst_123 {dimension_numbers = #tpu.dot_dimension_numbers<[1], [0], [0], [1], [0, 0, 1, 1], [], []>} : vector<8x128xf32>, vector<128x512xf32>, vector<8x512xf32> -> vector<8x512xf32>
    %195 = arith.addf %193, %194 : vector<8x512xf32>
    %196 = vector.extract_strided_slice %195 {offsets = [0, 0], sizes = [8, 128], strides = [1, 1]} : vector<8x512xf32> to vector<8x128xf32>
    %cst_124 = arith.constant 5.000000e-01 : f32
    %197 = vector.broadcast %cst_124 : f32 to vector<8x128xf32>
    %198 = arith.mulf %197, %196 : vector<8x128xf32>
    %199 = math.tanh %198 : vector<8x128xf32>
    %cst_125 = arith.constant 5.000000e-01 : f32
    %200 = vector.broadcast %cst_125 : f32 to vector<8x128xf32>
    %201 = arith.mulf %200, %199 : vector<8x128xf32>
    %cst_126 = arith.constant 5.000000e-01 : f32
    %202 = vector.broadcast %cst_126 : f32 to vector<8x128xf32>
    %203 = arith.addf %201, %202 : vector<8x128xf32>
    %204 = vector.extract_strided_slice %195 {offsets = [0, 128], sizes = [8, 128], strides = [1, 1]} : vector<8x512xf32> to vector<8x128xf32>
    %cst_127 = arith.constant 5.000000e-01 : f32
    %205 = vector.broadcast %cst_127 : f32 to vector<8x128xf32>
    %206 = arith.mulf %205, %204 : vector<8x128xf32>
    %207 = math.tanh %206 : vector<8x128xf32>
    %cst_128 = arith.constant 5.000000e-01 : f32
    %208 = vector.broadcast %cst_128 : f32 to vector<8x128xf32>
    %209 = arith.mulf %208, %207 : vector<8x128xf32>
    %cst_129 = arith.constant 5.000000e-01 : f32
    %210 = vector.broadcast %cst_129 : f32 to vector<8x128xf32>
    %211 = arith.addf %209, %210 : vector<8x128xf32>
    %212 = vector.extract_strided_slice %195 {offsets = [0, 256], sizes = [8, 128], strides = [1, 1]} : vector<8x512xf32> to vector<8x128xf32>
    %213 = math.tanh %212 : vector<8x128xf32>
    %214 = vector.extract_strided_slice %195 {offsets = [0, 384], sizes = [8, 128], strides = [1, 1]} : vector<8x512xf32> to vector<8x128xf32>
    %cst_130 = arith.constant 5.000000e-01 : f32
    %215 = vector.broadcast %cst_130 : f32 to vector<8x128xf32>
    %216 = arith.mulf %215, %214 : vector<8x128xf32>
    %217 = math.tanh %216 : vector<8x128xf32>
    %cst_131 = arith.constant 5.000000e-01 : f32
    %218 = vector.broadcast %cst_131 : f32 to vector<8x128xf32>
    %219 = arith.mulf %218, %217 : vector<8x128xf32>
    %cst_132 = arith.constant 5.000000e-01 : f32
    %220 = vector.broadcast %cst_132 : f32 to vector<8x128xf32>
    %221 = arith.addf %219, %220 : vector<8x128xf32>
    %222 = arith.mulf %211, %188 : vector<8x128xf32>
    %223 = arith.mulf %203, %213 : vector<8x128xf32>
    %224 = arith.addf %222, %223 : vector<8x128xf32>
    %225 = math.tanh %224 : vector<8x128xf32>
    %226 = arith.mulf %221, %225 : vector<8x128xf32>
    %227 = arith.addf %191, %226 : vector<8x128xf32>
    %c2_133 = arith.constant 2 : index
    %c0_134 = arith.constant 0 : index
    %c0_135 = arith.constant 0 : index
    %228 = vector.load %arg6[%c2_133, %c0_134, %c0_135] : memref<8x8x512xf32, #tpu.memory_space<vmem>>, vector<1x8x512xf32>
    %229 = vector.shape_cast %228 : vector<1x8x512xf32> to vector<8x512xf32>
    %cst_136 = arith.constant dense<0.000000e+00> : vector<8x512xf32>
    %230 = tpu.matmul %226, %152, %cst_136 {dimension_numbers = #tpu.dot_dimension_numbers<[1], [0], [0], [1], [0, 0, 1, 1], [], []>} : vector<8x128xf32>, vector<128x512xf32>, vector<8x512xf32> -> vector<8x512xf32>
    %231 = arith.addf %229, %230 : vector<8x512xf32>
    %232 = vector.extract_strided_slice %231 {offsets = [0, 0], sizes = [8, 128], strides = [1, 1]} : vector<8x512xf32> to vector<8x128xf32>
    %cst_137 = arith.constant 5.000000e-01 : f32
    %233 = vector.broadcast %cst_137 : f32 to vector<8x128xf32>
    %234 = arith.mulf %233, %232 : vector<8x128xf32>
    %235 = math.tanh %234 : vector<8x128xf32>
    %cst_138 = arith.constant 5.000000e-01 : f32
    %236 = vector.broadcast %cst_138 : f32 to vector<8x128xf32>
    %237 = arith.mulf %236, %235 : vector<8x128xf32>
    %cst_139 = arith.constant 5.000000e-01 : f32
    %238 = vector.broadcast %cst_139 : f32 to vector<8x128xf32>
    %239 = arith.addf %237, %238 : vector<8x128xf32>
    %240 = vector.extract_strided_slice %231 {offsets = [0, 128], sizes = [8, 128], strides = [1, 1]} : vector<8x512xf32> to vector<8x128xf32>
    %cst_140 = arith.constant 5.000000e-01 : f32
    %241 = vector.broadcast %cst_140 : f32 to vector<8x128xf32>
    %242 = arith.mulf %241, %240 : vector<8x128xf32>
    %243 = math.tanh %242 : vector<8x128xf32>
    %cst_141 = arith.constant 5.000000e-01 : f32
    %244 = vector.broadcast %cst_141 : f32 to vector<8x128xf32>
    %245 = arith.mulf %244, %243 : vector<8x128xf32>
    %cst_142 = arith.constant 5.000000e-01 : f32
    %246 = vector.broadcast %cst_142 : f32 to vector<8x128xf32>
    %247 = arith.addf %245, %246 : vector<8x128xf32>
    %248 = vector.extract_strided_slice %231 {offsets = [0, 256], sizes = [8, 128], strides = [1, 1]} : vector<8x512xf32> to vector<8x128xf32>
    %249 = math.tanh %248 : vector<8x128xf32>
    %250 = vector.extract_strided_slice %231 {offsets = [0, 384], sizes = [8, 128], strides = [1, 1]} : vector<8x512xf32> to vector<8x128xf32>
    %cst_143 = arith.constant 5.000000e-01 : f32
    %251 = vector.broadcast %cst_143 : f32 to vector<8x128xf32>
    %252 = arith.mulf %251, %250 : vector<8x128xf32>
    %253 = math.tanh %252 : vector<8x128xf32>
    %cst_144 = arith.constant 5.000000e-01 : f32
    %254 = vector.broadcast %cst_144 : f32 to vector<8x128xf32>
    %255 = arith.mulf %254, %253 : vector<8x128xf32>
    %cst_145 = arith.constant 5.000000e-01 : f32
    %256 = vector.broadcast %cst_145 : f32 to vector<8x128xf32>
    %257 = arith.addf %255, %256 : vector<8x128xf32>
    %258 = arith.mulf %247, %224 : vector<8x128xf32>
    %259 = arith.mulf %239, %249 : vector<8x128xf32>
    %260 = arith.addf %258, %259 : vector<8x128xf32>
    %261 = math.tanh %260 : vector<8x128xf32>
    %262 = arith.mulf %257, %261 : vector<8x128xf32>
    %263 = arith.addf %227, %262 : vector<8x128xf32>
    %c3_146 = arith.constant 3 : index
    %c0_147 = arith.constant 0 : index
    %c0_148 = arith.constant 0 : index
    %264 = vector.load %arg6[%c3_146, %c0_147, %c0_148] : memref<8x8x512xf32, #tpu.memory_space<vmem>>, vector<1x8x512xf32>
    %265 = vector.shape_cast %264 : vector<1x8x512xf32> to vector<8x512xf32>
    %cst_149 = arith.constant dense<0.000000e+00> : vector<8x512xf32>
    %266 = tpu.matmul %262, %152, %cst_149 {dimension_numbers = #tpu.dot_dimension_numbers<[1], [0], [0], [1], [0, 0, 1, 1], [], []>} : vector<8x128xf32>, vector<128x512xf32>, vector<8x512xf32> -> vector<8x512xf32>
    %267 = arith.addf %265, %266 : vector<8x512xf32>
    %268 = vector.extract_strided_slice %267 {offsets = [0, 0], sizes = [8, 128], strides = [1, 1]} : vector<8x512xf32> to vector<8x128xf32>
    %cst_150 = arith.constant 5.000000e-01 : f32
    %269 = vector.broadcast %cst_150 : f32 to vector<8x128xf32>
    %270 = arith.mulf %269, %268 : vector<8x128xf32>
    %271 = math.tanh %270 : vector<8x128xf32>
    %cst_151 = arith.constant 5.000000e-01 : f32
    %272 = vector.broadcast %cst_151 : f32 to vector<8x128xf32>
    %273 = arith.mulf %272, %271 : vector<8x128xf32>
    %cst_152 = arith.constant 5.000000e-01 : f32
    %274 = vector.broadcast %cst_152 : f32 to vector<8x128xf32>
    %275 = arith.addf %273, %274 : vector<8x128xf32>
    %276 = vector.extract_strided_slice %267 {offsets = [0, 128], sizes = [8, 128], strides = [1, 1]} : vector<8x512xf32> to vector<8x128xf32>
    %cst_153 = arith.constant 5.000000e-01 : f32
    %277 = vector.broadcast %cst_153 : f32 to vector<8x128xf32>
    %278 = arith.mulf %277, %276 : vector<8x128xf32>
    %279 = math.tanh %278 : vector<8x128xf32>
    %cst_154 = arith.constant 5.000000e-01 : f32
    %280 = vector.broadcast %cst_154 : f32 to vector<8x128xf32>
    %281 = arith.mulf %280, %279 : vector<8x128xf32>
    %cst_155 = arith.constant 5.000000e-01 : f32
    %282 = vector.broadcast %cst_155 : f32 to vector<8x128xf32>
    %283 = arith.addf %281, %282 : vector<8x128xf32>
    %284 = vector.extract_strided_slice %267 {offsets = [0, 256], sizes = [8, 128], strides = [1, 1]} : vector<8x512xf32> to vector<8x128xf32>
    %285 = math.tanh %284 : vector<8x128xf32>
    %286 = vector.extract_strided_slice %267 {offsets = [0, 384], sizes = [8, 128], strides = [1, 1]} : vector<8x512xf32> to vector<8x128xf32>
    %cst_156 = arith.constant 5.000000e-01 : f32
    %287 = vector.broadcast %cst_156 : f32 to vector<8x128xf32>
    %288 = arith.mulf %287, %286 : vector<8x128xf32>
    %289 = math.tanh %288 : vector<8x128xf32>
    %cst_157 = arith.constant 5.000000e-01 : f32
    %290 = vector.broadcast %cst_157 : f32 to vector<8x128xf32>
    %291 = arith.mulf %290, %289 : vector<8x128xf32>
    %cst_158 = arith.constant 5.000000e-01 : f32
    %292 = vector.broadcast %cst_158 : f32 to vector<8x128xf32>
    %293 = arith.addf %291, %292 : vector<8x128xf32>
    %294 = arith.mulf %283, %260 : vector<8x128xf32>
    %295 = arith.mulf %275, %285 : vector<8x128xf32>
    %296 = arith.addf %294, %295 : vector<8x128xf32>
    %297 = math.tanh %296 : vector<8x128xf32>
    %298 = arith.mulf %293, %297 : vector<8x128xf32>
    %299 = arith.addf %263, %298 : vector<8x128xf32>
    %c4_159 = arith.constant 4 : index
    %c0_160 = arith.constant 0 : index
    %c0_161 = arith.constant 0 : index
    %300 = vector.load %arg6[%c4_159, %c0_160, %c0_161] : memref<8x8x512xf32, #tpu.memory_space<vmem>>, vector<1x8x512xf32>
    %301 = vector.shape_cast %300 : vector<1x8x512xf32> to vector<8x512xf32>
    %cst_162 = arith.constant dense<0.000000e+00> : vector<8x512xf32>
    %302 = tpu.matmul %298, %152, %cst_162 {dimension_numbers = #tpu.dot_dimension_numbers<[1], [0], [0], [1], [0, 0, 1, 1], [], []>} : vector<8x128xf32>, vector<128x512xf32>, vector<8x512xf32> -> vector<8x512xf32>
    %303 = arith.addf %301, %302 : vector<8x512xf32>
    %304 = vector.extract_strided_slice %303 {offsets = [0, 0], sizes = [8, 128], strides = [1, 1]} : vector<8x512xf32> to vector<8x128xf32>
    %cst_163 = arith.constant 5.000000e-01 : f32
    %305 = vector.broadcast %cst_163 : f32 to vector<8x128xf32>
    %306 = arith.mulf %305, %304 : vector<8x128xf32>
    %307 = math.tanh %306 : vector<8x128xf32>
    %cst_164 = arith.constant 5.000000e-01 : f32
    %308 = vector.broadcast %cst_164 : f32 to vector<8x128xf32>
    %309 = arith.mulf %308, %307 : vector<8x128xf32>
    %cst_165 = arith.constant 5.000000e-01 : f32
    %310 = vector.broadcast %cst_165 : f32 to vector<8x128xf32>
    %311 = arith.addf %309, %310 : vector<8x128xf32>
    %312 = vector.extract_strided_slice %303 {offsets = [0, 128], sizes = [8, 128], strides = [1, 1]} : vector<8x512xf32> to vector<8x128xf32>
    %cst_166 = arith.constant 5.000000e-01 : f32
    %313 = vector.broadcast %cst_166 : f32 to vector<8x128xf32>
    %314 = arith.mulf %313, %312 : vector<8x128xf32>
    %315 = math.tanh %314 : vector<8x128xf32>
    %cst_167 = arith.constant 5.000000e-01 : f32
    %316 = vector.broadcast %cst_167 : f32 to vector<8x128xf32>
    %317 = arith.mulf %316, %315 : vector<8x128xf32>
    %cst_168 = arith.constant 5.000000e-01 : f32
    %318 = vector.broadcast %cst_168 : f32 to vector<8x128xf32>
    %319 = arith.addf %317, %318 : vector<8x128xf32>
    %320 = vector.extract_strided_slice %303 {offsets = [0, 256], sizes = [8, 128], strides = [1, 1]} : vector<8x512xf32> to vector<8x128xf32>
    %321 = math.tanh %320 : vector<8x128xf32>
    %322 = vector.extract_strided_slice %303 {offsets = [0, 384], sizes = [8, 128], strides = [1, 1]} : vector<8x512xf32> to vector<8x128xf32>
    %cst_169 = arith.constant 5.000000e-01 : f32
    %323 = vector.broadcast %cst_169 : f32 to vector<8x128xf32>
    %324 = arith.mulf %323, %322 : vector<8x128xf32>
    %325 = math.tanh %324 : vector<8x128xf32>
    %cst_170 = arith.constant 5.000000e-01 : f32
    %326 = vector.broadcast %cst_170 : f32 to vector<8x128xf32>
    %327 = arith.mulf %326, %325 : vector<8x128xf32>
    %cst_171 = arith.constant 5.000000e-01 : f32
    %328 = vector.broadcast %cst_171 : f32 to vector<8x128xf32>
    %329 = arith.addf %327, %328 : vector<8x128xf32>
    %330 = arith.mulf %319, %296 : vector<8x128xf32>
    %331 = arith.mulf %311, %321 : vector<8x128xf32>
    %332 = arith.addf %330, %331 : vector<8x128xf32>
    %333 = math.tanh %332 : vector<8x128xf32>
    %334 = arith.mulf %329, %333 : vector<8x128xf32>
    %335 = arith.addf %299, %334 : vector<8x128xf32>
    %c5_172 = arith.constant 5 : index
    %c0_173 = arith.constant 0 : index
    %c0_174 = arith.constant 0 : index
    %336 = vector.load %arg6[%c5_172, %c0_173, %c0_174] : memref<8x8x512xf32, #tpu.memory_space<vmem>>, vector<1x8x512xf32>
    %337 = vector.shape_cast %336 : vector<1x8x512xf32> to vector<8x512xf32>
    %cst_175 = arith.constant dense<0.000000e+00> : vector<8x512xf32>
    %338 = tpu.matmul %334, %152, %cst_175 {dimension_numbers = #tpu.dot_dimension_numbers<[1], [0], [0], [1], [0, 0, 1, 1], [], []>} : vector<8x128xf32>, vector<128x512xf32>, vector<8x512xf32> -> vector<8x512xf32>
    %339 = arith.addf %337, %338 : vector<8x512xf32>
    %340 = vector.extract_strided_slice %339 {offsets = [0, 0], sizes = [8, 128], strides = [1, 1]} : vector<8x512xf32> to vector<8x128xf32>
    %cst_176 = arith.constant 5.000000e-01 : f32
    %341 = vector.broadcast %cst_176 : f32 to vector<8x128xf32>
    %342 = arith.mulf %341, %340 : vector<8x128xf32>
    %343 = math.tanh %342 : vector<8x128xf32>
    %cst_177 = arith.constant 5.000000e-01 : f32
    %344 = vector.broadcast %cst_177 : f32 to vector<8x128xf32>
    %345 = arith.mulf %344, %343 : vector<8x128xf32>
    %cst_178 = arith.constant 5.000000e-01 : f32
    %346 = vector.broadcast %cst_178 : f32 to vector<8x128xf32>
    %347 = arith.addf %345, %346 : vector<8x128xf32>
    %348 = vector.extract_strided_slice %339 {offsets = [0, 128], sizes = [8, 128], strides = [1, 1]} : vector<8x512xf32> to vector<8x128xf32>
    %cst_179 = arith.constant 5.000000e-01 : f32
    %349 = vector.broadcast %cst_179 : f32 to vector<8x128xf32>
    %350 = arith.mulf %349, %348 : vector<8x128xf32>
    %351 = math.tanh %350 : vector<8x128xf32>
    %cst_180 = arith.constant 5.000000e-01 : f32
    %352 = vector.broadcast %cst_180 : f32 to vector<8x128xf32>
    %353 = arith.mulf %352, %351 : vector<8x128xf32>
    %cst_181 = arith.constant 5.000000e-01 : f32
    %354 = vector.broadcast %cst_181 : f32 to vector<8x128xf32>
    %355 = arith.addf %353, %354 : vector<8x128xf32>
    %356 = vector.extract_strided_slice %339 {offsets = [0, 256], sizes = [8, 128], strides = [1, 1]} : vector<8x512xf32> to vector<8x128xf32>
    %357 = math.tanh %356 : vector<8x128xf32>
    %358 = vector.extract_strided_slice %339 {offsets = [0, 384], sizes = [8, 128], strides = [1, 1]} : vector<8x512xf32> to vector<8x128xf32>
    %cst_182 = arith.constant 5.000000e-01 : f32
    %359 = vector.broadcast %cst_182 : f32 to vector<8x128xf32>
    %360 = arith.mulf %359, %358 : vector<8x128xf32>
    %361 = math.tanh %360 : vector<8x128xf32>
    %cst_183 = arith.constant 5.000000e-01 : f32
    %362 = vector.broadcast %cst_183 : f32 to vector<8x128xf32>
    %363 = arith.mulf %362, %361 : vector<8x128xf32>
    %cst_184 = arith.constant 5.000000e-01 : f32
    %364 = vector.broadcast %cst_184 : f32 to vector<8x128xf32>
    %365 = arith.addf %363, %364 : vector<8x128xf32>
    %366 = arith.mulf %355, %332 : vector<8x128xf32>
    %367 = arith.mulf %347, %357 : vector<8x128xf32>
    %368 = arith.addf %366, %367 : vector<8x128xf32>
    %369 = math.tanh %368 : vector<8x128xf32>
    %370 = arith.mulf %365, %369 : vector<8x128xf32>
    %371 = arith.addf %335, %370 : vector<8x128xf32>
    %c6_185 = arith.constant 6 : index
    %c0_186 = arith.constant 0 : index
    %c0_187 = arith.constant 0 : index
    %372 = vector.load %arg6[%c6_185, %c0_186, %c0_187] : memref<8x8x512xf32, #tpu.memory_space<vmem>>, vector<1x8x512xf32>
    %373 = vector.shape_cast %372 : vector<1x8x512xf32> to vector<8x512xf32>
    %cst_188 = arith.constant dense<0.000000e+00> : vector<8x512xf32>
    %374 = tpu.matmul %370, %152, %cst_188 {dimension_numbers = #tpu.dot_dimension_numbers<[1], [0], [0], [1], [0, 0, 1, 1], [], []>} : vector<8x128xf32>, vector<128x512xf32>, vector<8x512xf32> -> vector<8x512xf32>
    %375 = arith.addf %373, %374 : vector<8x512xf32>
    %376 = vector.extract_strided_slice %375 {offsets = [0, 0], sizes = [8, 128], strides = [1, 1]} : vector<8x512xf32> to vector<8x128xf32>
    %cst_189 = arith.constant 5.000000e-01 : f32
    %377 = vector.broadcast %cst_189 : f32 to vector<8x128xf32>
    %378 = arith.mulf %377, %376 : vector<8x128xf32>
    %379 = math.tanh %378 : vector<8x128xf32>
    %cst_190 = arith.constant 5.000000e-01 : f32
    %380 = vector.broadcast %cst_190 : f32 to vector<8x128xf32>
    %381 = arith.mulf %380, %379 : vector<8x128xf32>
    %cst_191 = arith.constant 5.000000e-01 : f32
    %382 = vector.broadcast %cst_191 : f32 to vector<8x128xf32>
    %383 = arith.addf %381, %382 : vector<8x128xf32>
    %384 = vector.extract_strided_slice %375 {offsets = [0, 128], sizes = [8, 128], strides = [1, 1]} : vector<8x512xf32> to vector<8x128xf32>
    %cst_192 = arith.constant 5.000000e-01 : f32
    %385 = vector.broadcast %cst_192 : f32 to vector<8x128xf32>
    %386 = arith.mulf %385, %384 : vector<8x128xf32>
    %387 = math.tanh %386 : vector<8x128xf32>
    %cst_193 = arith.constant 5.000000e-01 : f32
    %388 = vector.broadcast %cst_193 : f32 to vector<8x128xf32>
    %389 = arith.mulf %388, %387 : vector<8x128xf32>
    %cst_194 = arith.constant 5.000000e-01 : f32
    %390 = vector.broadcast %cst_194 : f32 to vector<8x128xf32>
    %391 = arith.addf %389, %390 : vector<8x128xf32>
    %392 = vector.extract_strided_slice %375 {offsets = [0, 256], sizes = [8, 128], strides = [1, 1]} : vector<8x512xf32> to vector<8x128xf32>
    %393 = math.tanh %392 : vector<8x128xf32>
    %394 = vector.extract_strided_slice %375 {offsets = [0, 384], sizes = [8, 128], strides = [1, 1]} : vector<8x512xf32> to vector<8x128xf32>
    %cst_195 = arith.constant 5.000000e-01 : f32
    %395 = vector.broadcast %cst_195 : f32 to vector<8x128xf32>
    %396 = arith.mulf %395, %394 : vector<8x128xf32>
    %397 = math.tanh %396 : vector<8x128xf32>
    %cst_196 = arith.constant 5.000000e-01 : f32
    %398 = vector.broadcast %cst_196 : f32 to vector<8x128xf32>
    %399 = arith.mulf %398, %397 : vector<8x128xf32>
    %cst_197 = arith.constant 5.000000e-01 : f32
    %400 = vector.broadcast %cst_197 : f32 to vector<8x128xf32>
    %401 = arith.addf %399, %400 : vector<8x128xf32>
    %402 = arith.mulf %391, %368 : vector<8x128xf32>
    %403 = arith.mulf %383, %393 : vector<8x128xf32>
    %404 = arith.addf %402, %403 : vector<8x128xf32>
    %405 = math.tanh %404 : vector<8x128xf32>
    %406 = arith.mulf %401, %405 : vector<8x128xf32>
    %407 = arith.addf %371, %406 : vector<8x128xf32>
    %c7_198 = arith.constant 7 : index
    %c0_199 = arith.constant 0 : index
    %c0_200 = arith.constant 0 : index
    %408 = vector.load %arg6[%c7_198, %c0_199, %c0_200] : memref<8x8x512xf32, #tpu.memory_space<vmem>>, vector<1x8x512xf32>
    %409 = vector.shape_cast %408 : vector<1x8x512xf32> to vector<8x512xf32>
    %cst_201 = arith.constant dense<0.000000e+00> : vector<8x512xf32>
    %410 = tpu.matmul %406, %152, %cst_201 {dimension_numbers = #tpu.dot_dimension_numbers<[1], [0], [0], [1], [0, 0, 1, 1], [], []>} : vector<8x128xf32>, vector<128x512xf32>, vector<8x512xf32> -> vector<8x512xf32>
    %411 = arith.addf %409, %410 : vector<8x512xf32>
    %412 = vector.extract_strided_slice %411 {offsets = [0, 0], sizes = [8, 128], strides = [1, 1]} : vector<8x512xf32> to vector<8x128xf32>
    %cst_202 = arith.constant 5.000000e-01 : f32
    %413 = vector.broadcast %cst_202 : f32 to vector<8x128xf32>
    %414 = arith.mulf %413, %412 : vector<8x128xf32>
    %415 = math.tanh %414 : vector<8x128xf32>
    %cst_203 = arith.constant 5.000000e-01 : f32
    %416 = vector.broadcast %cst_203 : f32 to vector<8x128xf32>
    %417 = arith.mulf %416, %415 : vector<8x128xf32>
    %cst_204 = arith.constant 5.000000e-01 : f32
    %418 = vector.broadcast %cst_204 : f32 to vector<8x128xf32>
    %419 = arith.addf %417, %418 : vector<8x128xf32>
    %420 = vector.extract_strided_slice %411 {offsets = [0, 128], sizes = [8, 128], strides = [1, 1]} : vector<8x512xf32> to vector<8x128xf32>
    %cst_205 = arith.constant 5.000000e-01 : f32
    %421 = vector.broadcast %cst_205 : f32 to vector<8x128xf32>
    %422 = arith.mulf %421, %420 : vector<8x128xf32>
    %423 = math.tanh %422 : vector<8x128xf32>
    %cst_206 = arith.constant 5.000000e-01 : f32
    %424 = vector.broadcast %cst_206 : f32 to vector<8x128xf32>
    %425 = arith.mulf %424, %423 : vector<8x128xf32>
    %cst_207 = arith.constant 5.000000e-01 : f32
    %426 = vector.broadcast %cst_207 : f32 to vector<8x128xf32>
    %427 = arith.addf %425, %426 : vector<8x128xf32>
    %428 = vector.extract_strided_slice %411 {offsets = [0, 256], sizes = [8, 128], strides = [1, 1]} : vector<8x512xf32> to vector<8x128xf32>
    %429 = math.tanh %428 : vector<8x128xf32>
    %430 = vector.extract_strided_slice %411 {offsets = [0, 384], sizes = [8, 128], strides = [1, 1]} : vector<8x512xf32> to vector<8x128xf32>
    %cst_208 = arith.constant 5.000000e-01 : f32
    %431 = vector.broadcast %cst_208 : f32 to vector<8x128xf32>
    %432 = arith.mulf %431, %430 : vector<8x128xf32>
    %433 = math.tanh %432 : vector<8x128xf32>
    %cst_209 = arith.constant 5.000000e-01 : f32
    %434 = vector.broadcast %cst_209 : f32 to vector<8x128xf32>
    %435 = arith.mulf %434, %433 : vector<8x128xf32>
    %cst_210 = arith.constant 5.000000e-01 : f32
    %436 = vector.broadcast %cst_210 : f32 to vector<8x128xf32>
    %437 = arith.addf %435, %436 : vector<8x128xf32>
    %438 = arith.mulf %427, %404 : vector<8x128xf32>
    %439 = arith.mulf %419, %429 : vector<8x128xf32>
    %440 = arith.addf %438, %439 : vector<8x128xf32>
    %441 = math.tanh %440 : vector<8x128xf32>
    %442 = arith.mulf %437, %441 : vector<8x128xf32>
    %443 = arith.addf %407, %442 : vector<8x128xf32>
    %cst_211 = arith.constant 1.250000e-01 : f32
    %444 = vector.broadcast %cst_211 : f32 to vector<8x128xf32>
    %445 = arith.mulf %443, %444 : vector<8x128xf32>
    %cst_212 = arith.constant 0.000000e+00 : f32
    %446 = vector.broadcast %cst_212 : f32 to vector<8x128xf32>
    %447 = arith.maximumf %445, %446 : vector<8x128xf32>
    %c0_213 = arith.constant 0 : index
    %c0_214 = arith.constant 0 : index
    %448 = vector.load %arg5[%c0_213, %c0_214] : memref<8x128xf32, #tpu.memory_space<vmem>>, vector<8x128xf32>
    tpu.vector_store %arg5[%c0_213, %c0_214], %447 {strides = array<i32>} : memref<8x128xf32, #tpu.memory_space<vmem>>, vector<8x128xf32>,
    return
  }
  func.func @transform_0(%arg0: i32) -> (i32, i32, i32) {
    %c0_i32 = arith.constant 0 : i32
    %c0_i32_0 = arith.constant 0 : i32
    %c0_i32_1 = arith.constant 0 : i32
    return %arg0, %c0_i32, %c0_i32_0 : i32, i32, i32
  }
  func.func @transform_1(%arg0: i32) -> (i32, i32) {
    %c0_i32 = arith.constant 0 : i32
    %c0_i32_0 = arith.constant 0 : i32
    %c0_i32_1 = arith.constant 0 : i32
    return %c0_i32, %c0_i32_0 : i32, i32
  }
  func.func @transform_2(%arg0: i32) -> (i32, i32) {
    %c0_i32 = arith.constant 0 : i32
    %c0_i32_0 = arith.constant 0 : i32
    %c0_i32_1 = arith.constant 0 : i32
    return %c0_i32, %c0_i32_0 : i32, i32
  }
  func.func @transform_3(%arg0: i32) -> (i32, i32) {
    %c0_i32 = arith.constant 0 : i32
    %c0_i32_0 = arith.constant 0 : i32
    %c0_i32_1 = arith.constant 0 : i32
    return %c0_i32, %c0_i32_0 : i32, i32
  }
  func.func @transform_4(%arg0: i32) -> (i32, i32) {
    %c0_i32 = arith.constant 0 : i32
    %c0_i32_0 = arith.constant 0 : i32
    return %arg0, %c0_i32 : i32, i32
  }
}

</mosaic_0001>

<llo_original>
// kernel: tpu_custom_call.1
$region0: #{tpu_custom_call.1}
  #allocation0 [shape = 'u32[]', space=smem, size = 0x4, offset = 0x4, fixed_abs, tag = 'smem constant byte address 0x4 - core index']
  #allocation1 [shape = 'u32[144,128]{1,0:T(1,128)}', space=vmem, size = 0x12000, scoped, tag = 'internal scratch']
  #allocation2 [shape = 'f32[8,8,512]{2,1,0:T(8,128)}', space=vmem, size = 0x20000, scoped, tag = 'scratch operand']
  %s0 = inlined_call_operand.hbm [shape: f32[8,8,32], index: 0, kind: input, shape index: {}]
  %s1 = inlined_call_operand.hbm [shape: f32[32,512], index: 1, kind: input, shape index: {}]
  %s2 = inlined_call_operand.hbm [shape: f32[128,512], index: 2, kind: input, shape index: {}]
  %s3 = inlined_call_operand.vmem [shape: f32[1,512], index: 3, kind: input, shape index: {}]
  %s4 = inlined_call_operand.hbm [shape: f32[8,128], index: 4, kind: output, shape index: {}]
  %s5 = sld [smem:[#allocation0]]
  $region38: #{tpu_custom_call.1} parent=0
    _
  %s7 = ssub.s32 1, %s5
  %s8 = scalar_select 0, %s7, %s5
  $region1: #{tpu_custom_call.1} parent=0
    #allocation3 [shape = 'u8[32768]{0}', space=vmem, size = 0x8000, scoped, tag = 'input window, operand 0, single buffered']
    #allocation4 [shape = 's32[1]{0}', space=sflag, size = 0x4, scoped, tag = 'scoped memory for tpu_custom_call.1']
    #allocation5 [shape = 's32[1]{0}', space=sflag, size = 0x4, scoped, tag = 'scoped memory for tpu_custom_call.1']
    #allocation6 [shape = 'u8[65536]{0}', space=vmem, size = 0x10000, scoped, tag = 'input window, operand 1, single buffered']
    #allocation7 [shape = 's32[1]{0}', space=sflag, size = 0x4, scoped, tag = 'scoped memory for tpu_custom_call.1']
    #allocation8 [shape = 'u8[262144]{0}', space=vmem, size = 0x40000, scoped, tag = 'input window, operand 2, single buffered']
    #allocation9 [shape = 'u8[4096]{0}', space=vmem, size = 0x1000, scoped, tag = 'output window, operand 0, single buffered']
    %9 = vsyncpa [#allocation4], 0
    %10 = vsyncpa [#allocation7], 0
    %11 = vsyncpa [#allocation5], 0
    // Predicated region
    $region2: #{tpu_custom_call.1} parent=1 // pred_check
      _
    $region3: #{tpu_custom_call.1} parent=1 // pred_check_branch
      %13 = sbr.rel (0) target = $region5
    $region4: #{tpu_custom_call.1} parent=1 // pred_region
      %s15 = ssub.s32 1024, 1024
      %16 = vsyncadd [#allocation4], %s15
      %s17 = sshll.u32 [#allocation3], 4
      %s18 = int_to_ptr.vmem [resolvable:$true] %s17
      %23 = dma.hbm_to_vmem [thread:$0]  %s0, 1024, %s18, [#allocation4], 128, 128, 8
    $region5: #{tpu_custom_call.1} parent=1 // pred_fallthru
      _
    // Predicated region
    $region6: #{tpu_custom_call.1} parent=1 // pred_check
      _
    $region7: #{tpu_custom_call.1} parent=1 // pred_check_branch
      %25 = sbr.rel (0) target = $region9
    $region8: #{tpu_custom_call.1} parent=1 // pred_region
      %s27 = ssub.s32 2048, 2048
      %28 = vsyncadd [#allocation7], %s27
      %s29 = sshll.u32 [#allocation6], 4
      %s30 = int_to_ptr.vmem [resolvable:$true] %s29
      %35 = dma.hbm_to_vmem [thread:$0]  %s1, 2048, %s30, [#allocation7], 512, 512, 32
    $region9: #{tpu_custom_call.1} parent=1 // pred_fallthru
      _
    // Predicated region
    $region10: #{tpu_custom_call.1} parent=1 // pred_check
      _
    $region11: #{tpu_custom_call.1} parent=1 // pred_check_branch
      %37 = sbr.rel (0) target = $region13
    $region12: #{tpu_custom_call.1} parent=1 // pred_region
      %s39 = ssub.s32 8192, 8192
      %40 = vsyncadd [#allocation7], %s39
      %s41 = sshll.u32 [#allocation8], 4
      %s42 = int_to_ptr.vmem [resolvable:$true] %s41
      %47 = dma.hbm_to_vmem [thread:$0]  %s2, 8192, %s42, [#allocation7], 512, 512, 32
    $region13: #{tpu_custom_call.1} parent=1 // pred_fallthru
      _
    // Predicated region
    $region14: #{tpu_custom_call.1} parent=1 // pred_check
      _
    $region15: #{tpu_custom_call.1} parent=1 // pred_check_branch
      %49 = sbr.rel (0) target = $region17
    $region16: #{tpu_custom_call.1} parent=1 // pred_region
      _
    $region17: #{tpu_custom_call.1} parent=1 // pred_fallthru
      _
    // Predicated region
    $region18: #{tpu_custom_call.1} parent=1 // pred_check
      _
    $region19: #{tpu_custom_call.1} parent=1 // pred_check_branch
      %51 = sbr.rel (0) target = $region21
    $region20: #{tpu_custom_call.1} parent=1 // pred_region
      %52 = dma.done [#allocation4], 1024
    $region21: #{tpu_custom_call.1} parent=1 // pred_fallthru
      _
    // Predicated region
    $region22: #{tpu_custom_call.1} parent=1 // pred_check
      _
    $region23: #{tpu_custom_call.1} parent=1 // pred_check_branch
      %54 = sbr.rel (0) target = $region25
    $region24: #{tpu_custom_call.1} parent=1 // pred_region
      %55 = dma.done [#allocation7], 2048
    $region25: #{tpu_custom_call.1} parent=1 // pred_fallthru
      _
    // Predicated region
    $region26: #{tpu_custom_call.1} parent=1 // pred_check
      _
    $region27: #{tpu_custom_call.1} parent=1 // pred_check_branch
      %57 = sbr.rel (0) target = $region29
    $region28: #{tpu_custom_call.1} parent=1 // pred_region
      %58 = dma.done [#allocation7], 8192
    $region29: #{tpu_custom_call.1} parent=1 // pred_fallthru
      _
    %v59 = vld [vmem:[#allocation6] sm:$0xff]
    %v60 = vld [vmem:[#allocation6 + $0x8] sm:$0xff]
    %v61 = vld [vmem:[#allocation6 + $0x10] sm:$0xff]
    %v62 = vld [vmem:[#allocation6 + $0x18] sm:$0xff]
    %v63 = vld [vmem:[#allocation6 + $0x20] sm:$0xff]
    %v64 = vld [vmem:[#allocation6 + $0x28] sm:$0xff]
    %v65 = vld [vmem:[#allocation6 + $0x30] sm:$0xff]
    %v66 = vld [vmem:[#allocation6 + $0x38] sm:$0xff]
    %v67 = vld [vmem:[#allocation6 + $0x40] sm:$0xff]
    %v68 = vld [vmem:[#allocation6 + $0x48] sm:$0xff]
    %v69 = vld [vmem:[#allocation6 + $0x50] sm:$0xff]
    %v70 = vld [vmem:[#allocation6 + $0x58] sm:$0xff]
    %v71 = vld [vmem:[#allocation6 + $0x60] sm:$0xff]
    %v72 = vld [vmem:[#allocation6 + $0x68] sm:$0xff]
    %v73 = vld [vmem:[#allocation6 + $0x70] sm:$0xff]
    %v74 = vld [vmem:[#allocation6 + $0x78] sm:$0xff]
    %v75 = vld [vmem:[%s3] sm:$0xf]
    %v76 = vld [vmem:[#allocation3] sm:$0x1]
    %v77 = vld [vmem:[#allocation3 + $0x8] sm:$0x1]
    %v78 = vld [vmem:[#allocation3 + $0x10] sm:$0x1]
    %v79 = vld [vmem:[#allocation3 + $0x18] sm:$0x1]
    %v80 = vld [vmem:[#allocation3 + $0x20] sm:$0x1]
    %v81 = vld [vmem:[#allocation3 + $0x28] sm:$0x1]
    %v82 = vld [vmem:[#allocation3 + $0x30] sm:$0x1]
    %v83 = vld [vmem:[#allocation3 + $0x38] sm:$0x1]
    %v85 = vlaneseq
    %v86 = vshrl.u32 %v85, 7
    %v87 = vsub.s32 0, %v86
    %v88 = vrot.slane %v75, %v87
    %v89 = vlaneseq
    %v90 = vshrl.u32 %v89, 7
    %v91 = vsub.s32 1, %v90
    %v92 = vrot.slane %v75, %v91
    %v93 = vlaneseq
    %v94 = vshrl.u32 %v93, 7
    %v95 = vsub.s32 2, %v94
    %v96 = vrot.slane %v75, %v95
    %v97 = vlaneseq
    %v98 = vshrl.u32 %v97, 7
    %v99 = vsub.s32 3, %v98
    %v100 = vrot.slane %v75, %v99
    %v113 = vrot.slane %v77, 7
    %vm114 = vcmask 1041409
    %v115 = vsel %vm114, %v113, %v76
    %v116 = vrot.slane %v78, 6
    %vm117 = vcmask 1042434
    %v118 = vsel %vm117, %v116, %v115
    %v119 = vrot.slane %v79, 5
    %vm120 = vcmask 1043459
    %v121 = vsel %vm120, %v119, %v118
    %v122 = vrot.slane %v80, 4
    %vm123 = vcmask 1044484
    %v124 = vsel %vm123, %v122, %v121
    %v125 = vrot.slane %v81, 3
    %vm126 = vcmask 1045509
    %v127 = vsel %vm126, %v125, %v124
    %v128 = vrot.slane %v82, 2
    %vm129 = vcmask 1046534
    %v130 = vsel %vm129, %v128, %v127
    %v131 = vrot.slane %v83, 1
    %vm132 = vcmask 1047559
    %v133 = vsel %vm132, %v131, %v130
    %vm134 = vcmask 261120
    %v135 = vsel %vm134, %v133, 0
    %137 = vmatprep.subr.mxu0 0.0
    %138 = vmatpush1.msra.mxu0 0.0
    %139 = vmatprep.subr.mxu0 0.0
    %140 = vmatpush1.msra.mxu0 0.0
    %141 = vmatprep.subr.mxu0 0.0
    %142 = vmatpush1.msra.mxu0 0.0
    %143 = vmatprep.subr.mxu0 0.0
    %144 = vmatpush1.msra.mxu0 0.0
    %145 = vmatprep.subr.mxu0 0.0
    %146 = vmatpush1.msra.mxu0 0.0
    %147 = vmatprep.subr.mxu0 0.0
    %148 = vmatpush1.msra.mxu0 0.0
    %149 = vmatprep.subr.mxu0 0.0
    %150 = vmatpush1.msra.mxu0 0.0
    %151 = vmatprep.subr.mxu0 0.0
    %152 = vmatpush1.msra.mxu0 0.0
    %153 = vmatprep.subr.mxu0 0.0
    %154 = vmatpush1.msra.mxu0 0.0
    %155 = vmatprep.subr.mxu0 0.0
    %156 = vmatpush1.msra.mxu0 0.0
    %157 = vmatprep.subr.mxu0 0.0
    %158 = vmatpush1.msra.mxu0 0.0
    %159 = vmatprep.subr.mxu0 0.0
    %160 = vmatpush1.msra.mxu0 0.0
    %161 = vmatprep.subr.mxu0 %v72
    %162 = vmatpush1.msra.mxu0 %v71
    %163 = vmatprep.subr.mxu0 %v68
    %164 = vmatpush1.msra.mxu0 %v67
    %165 = vmatprep.subr.mxu0 %v64
    %166 = vmatpush1.msra.mxu0 %v63
    %167 = vmatprep.subr.mxu0 %v60
    %168 = vmatpush1.msra.mxu0 %v59
    %169 = vmatprep.subr.mxu0 0.0
    %170 = vmatpush2.msra.mxu0 0.0
    %171 = vmatprep.subr.mxu0 0.0
    %172 = vmatpush2.msra.mxu0 0.0
    %173 = vmatprep.subr.mxu0 0.0
    %174 = vmatpush2.msra.mxu0 0.0
    %175 = vmatprep.subr.mxu0 0.0
    %176 = vmatpush2.msra.mxu0 0.0
    %177 = vmatprep.subr.mxu0 0.0
    %178 = vmatpush2.msra.mxu0 0.0
    %179 = vmatprep.subr.mxu0 0.0
    %180 = vmatpush2.msra.mxu0 0.0
    %181 = vmatprep.subr.mxu0 0.0
    %182 = vmatpush2.msra.mxu0 0.0
    %183 = vmatprep.subr.mxu0 0.0
    %184 = vmatpush2.msra.mxu0 0.0
    %185 = vmatprep.subr.mxu0 0.0
    %186 = vmatpush2.msra.mxu0 0.0
    %187 = vmatprep.subr.mxu0 0.0
    %188 = vmatpush2.msra.mxu0 0.0
    %189 = vmatprep.subr.mxu0 0.0
    %190 = vmatpush2.msra.mxu0 0.0
    %191 = vmatprep.subr.mxu0 0.0
    %192 = vmatpush2.msra.mxu0 0.0
    %193 = vmatprep.subr.mxu0 0.0
    %194 = vmatpush2.msra.mxu0 0.0
    %195 = vmatprep.subr.mxu0 0.0
    %196 = vmatpush2.msra.mxu0 0.0
    %197 = vmatprep.subr.mxu0 0.0
    %198 = vmatpush2.msra.mxu0 0.0
    %199 = vmatprep.subr.mxu0 0.0
    %200 = vmatpush2.msra.mxu0 0.0
    %201 = vmatprep.mubr.f32.mxu0 0.0
    %202 = vmatmul.mubr.f32.gmra.mxu0 %v135
    %v203 = vpop.f32.mrf.mxu0
    %v204 = vadd.f32 %v88, %v203
    %v205 = vpop.f32.mrf.mxu0
    %v206 = vadd.f32 %v92, %v205
    %207 = vdwg.mxu0
    %208 = vmatprep.subr.mxu0 0.0
    %209 = vmatpush1.msra.mxu0 0.0
    %210 = vmatprep.subr.mxu0 0.0
    %211 = vmatpush1.msra.mxu0 0.0
    %212 = vmatprep.subr.mxu0 0.0
    %213 = vmatpush1.msra.mxu0 0.0
    %214 = vmatprep.subr.mxu0 0.0
    %215 = vmatpush1.msra.mxu0 0.0
    %216 = vmatprep.subr.mxu0 0.0
    %217 = vmatpush1.msra.mxu0 0.0
    %218 = vmatprep.subr.mxu0 0.0
    %219 = vmatpush1.msra.mxu0 0.0
    %220 = vmatprep.subr.mxu0 0.0
    %221 = vmatpush1.msra.mxu0 0.0
    %222 = vmatprep.subr.mxu0 0.0
    %223 = vmatpush1.msra.mxu0 0.0
    %224 = vmatprep.subr.mxu0 0.0
    %225 = vmatpush1.msra.mxu0 0.0
    %226 = vmatprep.subr.mxu0 0.0
    %227 = vmatpush1.msra.mxu0 0.0
    %228 = vmatprep.subr.mxu0 0.0
    %229 = vmatpush1.msra.mxu0 0.0
    %230 = vmatprep.subr.mxu0 0.0
    %231 = vmatpush1.msra.mxu0 0.0
    %232 = vmatprep.subr.mxu0 %v74
    %233 = vmatpush1.msra.mxu0 %v73
    %234 = vmatprep.subr.mxu0 %v70
    %235 = vmatpush1.msra.mxu0 %v69
    %236 = vmatprep.subr.mxu0 %v66
    %237 = vmatpush1.msra.mxu0 %v65
    %238 = vmatprep.subr.mxu0 %v62
    %239 = vmatpush1.msra.mxu0 %v61
    %240 = vmatprep.subr.mxu0 0.0
    %241 = vmatpush2.msra.mxu0 0.0
    %242 = vmatprep.subr.mxu0 0.0
    %243 = vmatpush2.msra.mxu0 0.0
    %244 = vmatprep.subr.mxu0 0.0
    %245 = vmatpush2.msra.mxu0 0.0
    %246 = vmatprep.subr.mxu0 0.0
    %247 = vmatpush2.msra.mxu0 0.0
    %248 = vmatprep.subr.mxu0 0.0
    %249 = vmatpush2.msra.mxu0 0.0
    %250 = vmatprep.subr.mxu0 0.0
    %251 = vmatpush2.msra.mxu0 0.0
    %252 = vmatprep.subr.mxu0 0.0
    %253 = vmatpush2.msra.mxu0 0.0
    %254 = vmatprep.subr.mxu0 0.0
    %255 = vmatpush2.msra.mxu0 0.0
    %256 = vmatprep.subr.mxu0 0.0
    %257 = vmatpush2.msra.mxu0 0.0
    %258 = vmatprep.subr.mxu0 0.0
    %259 = vmatpush2.msra.mxu0 0.0
    %260 = vmatprep.subr.mxu0 0.0
    %261 = vmatpush2.msra.mxu0 0.0
    %262 = vmatprep.subr.mxu0 0.0
    %263 = vmatpush2.msra.mxu0 0.0
    %264 = vmatprep.subr.mxu0 0.0
    %265 = vmatpush2.msra.mxu0 0.0
    %266 = vmatprep.subr.mxu0 0.0
    %267 = vmatpush2.msra.mxu0 0.0
    %268 = vmatprep.subr.mxu0 0.0
    %269 = vmatpush2.msra.mxu0 0.0
    %270 = vmatprep.subr.mxu0 0.0
    %271 = vmatpush2.msra.mxu0 0.0
    %272 = vmatprep.mubr.f32.mxu0 0.0
    %273 = vmatmul.mubr.f32.gmra.mxu0 %v135
    %v274 = vpop.f32.mrf.mxu0
    %v275 = vadd.f32 %v96, %v274
    %v276 = vpop.f32.mrf.mxu0
    %v277 = vadd.f32 %v100, %v276
    %278 = vdwg.mxu0
    %279 = vst [vmem:[#allocation2] sm:$0xff] %v204
    %280 = vst [vmem:[#allocation2 + $0x8] sm:$0xff] %v206
    %281 = vst [vmem:[#allocation2 + $0x10] sm:$0xff] %v275
    %282 = vst [vmem:[#allocation2 + $0x18] sm:$0xff] %v277
    %v283 = vld [vmem:[#allocation3 + $0x1] sm:$0x1]
    %v284 = vld [vmem:[#allocation3 + $0x9] sm:$0x1]
    %v285 = vld [vmem:[#allocation3 + $0x11] sm:$0x1]
    %v286 = vld [vmem:[#allocation3 + $0x19] sm:$0x1]
    %v287 = vld [vmem:[#allocation3 + $0x21] sm:$0x1]
    %v288 = vld [vmem:[#allocation3 + $0x29] sm:$0x1]
    %v289 = vld [vmem:[#allocation3 + $0x31] sm:$0x1]
    %v290 = vld [vmem:[#allocation3 + $0x39] sm:$0x1]
    %v299 = vrot.slane %v284, 7
    %v300 = vsel %vm114, %v299, %v283
    %v301 = vrot.slane %v285, 6
    %v302 = vsel %vm117, %v301, %v300
    %v303 = vrot.slane %v286, 5
    %v304 = vsel %vm120, %v303, %v302
    %v305 = vrot.slane %v287, 4
    %v306 = vsel %vm123, %v305, %v304
    %v307 = vrot.slane %v288, 3
    %v308 = vsel %vm126, %v307, %v306
    %v309 = vrot.slane %v289, 2
    %v310 = vsel %vm129, %v309, %v308
    %v311 = vrot.slane %v290, 1
    %v312 = vsel %vm132, %v311, %v310
    %v313 = vsel %vm134, %v312, 0
    %315 = vmatprep.subr.mxu0 0.0
    %316 = vmatpush1.msra.mxu0 0.0
    %317 = vmatprep.subr.mxu0 0.0
    %318 = vmatpush1.msra.mxu0 0.0
    %319 = vmatprep.subr.mxu0 0.0
    %320 = vmatpush1.msra.mxu0 0.0
    %321 = vmatprep.subr.mxu0 0.0
    %322 = vmatpush1.msra.mxu0 0.0
    %323 = vmatprep.subr.mxu0 0.0
    %324 = vmatpush1.msra.mxu0 0.0
    %325 = vmatprep.subr.mxu0 0.0
    %326 = vmatpush1.msra.mxu0 0.0
    %327 = vmatprep.subr.mxu0 0.0
    %328 = vmatpush1.msra.mxu0 0.0
    %329 = vmatprep.subr.mxu0 0.0
    %330 = vmatpush1.msra.mxu0 0.0
    %331 = vmatprep.subr.mxu0 0.0
    %332 = vmatpush1.msra.mxu0 0.0
    %333 = vmatprep.subr.mxu0 0.0
    %334 = vmatpush1.msra.mxu0 0.0
    %335 = vmatprep.subr.mxu0 0.0
    %336 = vmatpush1.msra.mxu0 0.0
    %337 = vmatprep.subr.mxu0 0.0
    %338 = vmatpush1.msra.mxu0 0.0
    %339 = vmatprep.subr.mxu0 %v72
    %340 = vmatpush1.msra.mxu0 %v71
    %341 = vmatprep.subr.mxu0 %v68
    %342 = vmatpush1.msra.mxu0 %v67
    %343 = vmatprep.subr.mxu0 %v64
    %344 = vmatpush1.msra.mxu0 %v63
    %345 = vmatprep.subr.mxu0 %v60
    %346 = vmatpush1.msra.mxu0 %v59
    %347 = vmatprep.subr.mxu0 0.0
    %348 = vmatpush2.msra.mxu0 0.0
    %349 = vmatprep.subr.mxu0 0.0
    %350 = vmatpush2.msra.mxu0 0.0
    %351 = vmatprep.subr.mxu0 0.0
    %352 = vmatpush2.msra.mxu0 0.0
    %353 = vmatprep.subr.mxu0 0.0
    %354 = vmatpush2.msra.mxu0 0.0
    %355 = vmatprep.subr.mxu0 0.0
    %356 = vmatpush2.msra.mxu0 0.0
    %357 = vmatprep.subr.mxu0 0.0
    %358 = vmatpush2.msra.mxu0 0.0
    %359 = vmatprep.subr.mxu0 0.0
    %360 = vmatpush2.msra.mxu0 0.0
    %361 = vmatprep.subr.mxu0 0.0
    %362 = vmatpush2.msra.mxu0 0.0
    %363 = vmatprep.subr.mxu0 0.0
    %364 = vmatpush2.msra.mxu0 0.0
    %365 = vmatprep.subr.mxu0 0.0
    %366 = vmatpush2.msra.mxu0 0.0
    %367 = vmatprep.subr.mxu0 0.0
    %368 = vmatpush2.msra.mxu0 0.0
    %369 = vmatprep.subr.mxu0 0.0
    %370 = vmatpush2.msra.mxu0 0.0
    %371 = vmatprep.subr.mxu0 0.0
    %372 = vmatpush2.msra.mxu0 0.0
    %373 = vmatprep.subr.mxu0 0.0
    %374 = vmatpush2.msra.mxu0 0.0
    %375 = vmatprep.subr.mxu0 0.0
    %376 = vmatpush2.msra.mxu0 0.0
    %377 = vmatprep.subr.mxu0 0.0
    %378 = vmatpush2.msra.mxu0 0.0
    %379 = vmatprep.mubr.f32.mxu0 0.0
    %380 = vmatmul.mubr.f32.gmra.mxu0 %v313
    %v381 = vpop.f32.mrf.mxu0
    %v382 = vadd.f32 %v88, %v381
    %v383 = vpop.f32.mrf.mxu0
    %v384 = vadd.f32 %v92, %v383
    %385 = vdwg.mxu0
    %386 = vmatprep.subr.mxu0 0.0
    %387 = vmatpush1.msra.mxu0 0.0
    %388 = vmatprep.subr.mxu0 0.0
    %389 = vmatpush1.msra.mxu0 0.0
    %390 = vmatprep.subr.mxu0 0.0
    %391 = vmatpush1.msra.mxu0 0.0
    %392 = vmatprep.subr.mxu0 0.0
    %393 = vmatpush1.msra.mxu0 0.0
    %394 = vmatprep.subr.mxu0 0.0
    %395 = vmatpush1.msra.mxu0 0.0
    %396 = vmatprep.subr.mxu0 0.0
    %397 = vmatpush1.msra.mxu0 0.0
    %398 = vmatprep.subr.mxu0 0.0
    %399 = vmatpush1.msra.mxu0 0.0
    %400 = vmatprep.subr.mxu0 0.0
    %401 = vmatpush1.msra.mxu0 0.0
    %402 = vmatprep.subr.mxu0 0.0
    %403 = vmatpush1.msra.mxu0 0.0
    %404 = vmatprep.subr.mxu0 0.0
    %405 = vmatpush1.msra.mxu0 0.0
    %406 = vmatprep.subr.mxu0 0.0
    %407 = vmatpush1.msra.mxu0 0.0
    %408 = vmatprep.subr.mxu0 0.0
    %409 = vmatpush1.msra.mxu0 0.0
    %410 = vmatprep.subr.mxu0 %v74
    %411 = vmatpush1.msra.mxu0 %v73
    %412 = vmatprep.subr.mxu0 %v70
    %413 = vmatpush1.msra.mxu0 %v69
    %414 = vmatprep.subr.mxu0 %v66
    %415 = vmatpush1.msra.mxu0 %v65
    %416 = vmatprep.subr.mxu0 %v62
    %417 = vmatpush1.msra.mxu0 %v61
    %418 = vmatprep.subr.mxu0 0.0
    %419 = vmatpush2.msra.mxu0 0.0
    %420 = vmatprep.subr.mxu0 0.0
    %421 = vmatpush2.msra.mxu0 0.0
    %422 = vmatprep.subr.mxu0 0.0
    %423 = vmatpush2.msra.mxu0 0.0
    %424 = vmatprep.subr.mxu0 0.0
    %425 = vmatpush2.msra.mxu0 0.0
    %426 = vmatprep.subr.mxu0 0.0
    %427 = vmatpush2.msra.mxu0 0.0
    %428 = vmatprep.subr.mxu0 0.0
    %429 = vmatpush2.msra.mxu0 0.0
    %430 = vmatprep.subr.mxu0 0.0
    %431 = vmatpush2.msra.mxu0 0.0
    %432 = vmatprep.subr.mxu0 0.0
    %433 = vmatpush2.msra.mxu0 0.0
    %434 = vmatprep.subr.mxu0 0.0
    %435 = vmatpush2.msra.mxu0 0.0
    %436 = vmatprep.subr.mxu0 0.0
    %437 = vmatpush2.msra.mxu0 0.0
    %438 = vmatprep.subr.mxu0 0.0
    %439 = vmatpush2.msra.mxu0 0.0
    %440 = vmatprep.subr.mxu0 0.0
    %441 = vmatpush2.msra.mxu0 0.0
    %442 = vmatprep.subr.mxu0 0.0
    %443 = vmatpush2.msra.mxu0 0.0
    %444 = vmatprep.subr.mxu0 0.0
    %445 = vmatpush2.msra.mxu0 0.0
    %446 = vmatprep.subr.mxu0 0.0
    %447 = vmatpush2.msra.mxu0 0.0
    %448 = vmatprep.subr.mxu0 0.0
    %449 = vmatpush2.msra.mxu0 0.0
    %450 = vmatprep.mubr.f32.mxu0 0.0
    %451 = vmatmul.mubr.f32.gmra.mxu0 %v313
    %v452 = vpop.f32.mrf.mxu0
    %v453 = vadd.f32 %v96, %v452
    %v454 = vpop.f32.mrf.mxu0
    %v455 = vadd.f32 %v100, %v454
    %456 = vdwg.mxu0
    %s457 = scalar_lea.vmem [#allocation2], 32
    %458 = vst [vmem:[%s457] sm:$0xff] %v382
    %459 = vst [vmem:[%s457 + $0x8] sm:$0xff] %v384
    %460 = vst [vmem:[%s457 + $0x10] sm:$0xff] %v453
    %461 = vst [vmem:[%s457 + $0x18] sm:$0xff] %v455
    %v462 = vld [vmem:[#allocation3 + $0x2] sm:$0x1]
    %v463 = vld [vmem:[#allocation3 + $0xa] sm:$0x1]
    %v464 = vld [vmem:[#allocation3 + $0x12] sm:$0x1]
    %v465 = vld [vmem:[#allocation3 + $0x1a] sm:$0x1]
    %v466 = vld [vmem:[#allocation3 + $0x22] sm:$0x1]
    %v467 = vld [vmem:[#allocation3 + $0x2a] sm:$0x1]
    %v468 = vld [vmem:[#allocation3 + $0x32] sm:$0x1]
    %v469 = vld [vmem:[#allocation3 + $0x3a] sm:$0x1]
    %v478 = vrot.slane %v463, 7
    %v479 = vsel %vm114, %v478, %v462
    %v480 = vrot.slane %v464, 6
    %v481 = vsel %vm117, %v480, %v479
    %v482 = vrot.slane %v465, 5
    %v483 = vsel %vm120, %v482, %v481
    %v484 = vrot.slane %v466, 4
    %v485 = vsel %vm123, %v484, %v483
    %v486 = vrot.slane %v467, 3
    %v487 = vsel %vm126, %v486, %v485
    %v488 = vrot.slane %v468, 2
    %v489 = vsel %vm129, %v488, %v487
    %v490 = vrot.slane %v469, 1
    %v491 = vsel %vm132, %v490, %v489
    %v492 = vsel %vm134, %v491, 0
    %494 = vmatprep.subr.mxu0 0.0
    %495 = vmatpush1.msra.mxu0 0.0
    %496 = vmatprep.subr.mxu0 0.0
    %497 = vmatpush1.msra.mxu0 0.0
    %498 = vmatprep.subr.mxu0 0.0
    %499 = vmatpush1.msra.mxu0 0.0
    %500 = vmatprep.subr.mxu0 0.0
    %501 = vmatpush1.msra.mxu0 0.0
    %502 = vmatprep.subr.mxu0 0.0
    %503 = vmatpush1.msra.mxu0 0.0
    %504 = vmatprep.subr.mxu0 0.0
    %505 = vmatpush1.msra.mxu0 0.0
    %506 = vmatprep.subr.mxu0 0.0
    %507 = vmatpush1.msra.mxu0 0.0
    %508 = vmatprep.subr.mxu0 0.0
    %509 = vmatpush1.msra.mxu0 0.0
    %510 = vmatprep.subr.mxu0 0.0
    %511 = vmatpush1.msra.mxu0 0.0
    %512 = vmatprep.subr.mxu0 0.0
    %513 = vmatpush1.msra.mxu0 0.0
    %514 = vmatprep.subr.mxu0 0.0
    %515 = vmatpush1.msra.mxu0 0.0
    %516 = vmatprep.subr.mxu0 0.0
    %517 = vmatpush1.msra.mxu0 0.0
    %518 = vmatprep.subr.mxu0 %v72
    %519 = vmatpush1.msra.mxu0 %v71
    %520 = vmatprep.subr.mxu0 %v68
    %521 = vmatpush1.msra.mxu0 %v67
    %522 = vmatprep.subr.mxu0 %v64
    %523 = vmatpush1.msra.mxu0 %v63
    %524 = vmatprep.subr.mxu0 %v60
    %525 = vmatpush1.msra.mxu0 %v59
    %526 = vmatprep.subr.mxu0 0.0
    %527 = vmatpush2.msra.mxu0 0.0
    %528 = vmatprep.subr.mxu0 0.0
    %529 = vmatpush2.msra.mxu0 0.0
    %530 = vmatprep.subr.mxu0 0.0
    %531 = vmatpush2.msra.mxu0 0.0
    %532 = vmatprep.subr.mxu0 0.0
    %533 = vmatpush2.msra.mxu0 0.0
    %534 = vmatprep.subr.mxu0 0.0
    %535 = vmatpush2.msra.mxu0 0.0
    %536 = vmatprep.subr.mxu0 0.0
    %537 = vmatpush2.msra.mxu0 0.0
    %538 = vmatprep.subr.mxu0 0.0
    %539 = vmatpush2.msra.mxu0 0.0
    %540 = vmatprep.subr.mxu0 0.0
    %541 = vmatpush2.msra.mxu0 0.0
    %542 = vmatprep.subr.mxu0 0.0
    %543 = vmatpush2.msra.mxu0 0.0
    %544 = vmatprep.subr.mxu0 0.0
    %545 = vmatpush2.msra.mxu0 0.0
    %546 = vmatprep.subr.mxu0 0.0
    %547 = vmatpush2.msra.mxu0 0.0
    %548 = vmatprep.subr.mxu0 0.0
    %549 = vmatpush2.msra.mxu0 0.0
    %550 = vmatprep.subr.mxu0 0.0
    %551 = vmatpush2.msra.mxu0 0.0
    %552 = vmatprep.subr.mxu0 0.0
    %553 = vmatpush2.msra.mxu0 0.0
    %554 = vmatprep.subr.mxu0 0.0
    %555 = vmatpush2.msra.mxu0 0.0
    %556 = vmatprep.subr.mxu0 0.0
    %557 = vmatpush2.msra.mxu0 0.0
    %558 = vmatprep.mubr.f32.mxu0 0.0
    %559 = vmatmul.mubr.f32.gmra.mxu0 %v492
    %v560 = vpop.f32.mrf.mxu0
    %v561 = vadd.f32 %v88, %v560
    %v562 = vpop.f32.mrf.mxu0
    %v563 = vadd.f32 %v92, %v562
    %564 = vdwg.mxu0
    %565 = vmatprep.subr.mxu0 0.0
    %566 = vmatpush1.msra.mxu0 0.0
    %567 = vmatprep.subr.mxu0 0.0
    %568 = vmatpush1.msra.mxu0 0.0
    %569 = vmatprep.subr.mxu0 0.0
    %570 = vmatpush1.msra.mxu0 0.0
    %571 = vmatprep.subr.mxu0 0.0
    %572 = vmatpush1.msra.mxu0 0.0
    %573 = vmatprep.subr.mxu0 0.0
    %574 = vmatpush1.msra.mxu0 0.0
    %575 = vmatprep.subr.mxu0 0.0
    %576 = vmatpush1.msra.mxu0 0.0
    %577 = vmatprep.subr.mxu0 0.0
    %578 = vmatpush1.msra.mxu0 0.0
    %579 = vmatprep.subr.mxu0 0.0
    %580 = vmatpush1.msra.mxu0 0.0
    %581 = vmatprep.subr.mxu0 0.0
    %582 = vmatpush1.msra.mxu0 0.0
    %583 = vmatprep.subr.mxu0 0.0
    %584 = vmatpush1.msra.mxu0 0.0
    %585 = vmatprep.subr.mxu0 0.0
    %586 = vmatpush1.msra.mxu0 0.0
    %587 = vmatprep.subr.mxu0 0.0
    %588 = vmatpush1.msra.mxu0 0.0
    %589 = vmatprep.subr.mxu0 %v74
    %590 = vmatpush1.msra.mxu0 %v73
    %591 = vmatprep.subr.mxu0 %v70
    %592 = vmatpush1.msra.mxu0 %v69
    %593 = vmatprep.subr.mxu0 %v66
    %594 = vmatpush1.msra.mxu0 %v65
    %595 = vmatprep.subr.mxu0 %v62
    %596 = vmatpush1.msra.mxu0 %v61
    %597 = vmatprep.subr.mxu0 0.0
    %598 = vmatpush2.msra.mxu0 0.0
    %599 = vmatprep.subr.mxu0 0.0
    %600 = vmatpush2.msra.mxu0 0.0
    %601 = vmatprep.subr.mxu0 0.0
    %602 = vmatpush2.msra.mxu0 0.0
    %603 = vmatprep.subr.mxu0 0.0
    %604 = vmatpush2.msra.mxu0 0.0
    %605 = vmatprep.subr.mxu0 0.0
    %606 = vmatpush2.msra.mxu0 0.0
    %607 = vmatprep.subr.mxu0 0.0
    %608 = vmatpush2.msra.mxu0 0.0
    %609 = vmatprep.subr.mxu0 0.0
    %610 = vmatpush2.msra.mxu0 0.0
    %611 = vmatprep.subr.mxu0 0.0
    %612 = vmatpush2.msra.mxu0 0.0
    %613 = vmatprep.subr.mxu0 0.0
    %614 = vmatpush2.msra.mxu0 0.0
    %615 = vmatprep.subr.mxu0 0.0
    %616 = vmatpush2.msra.mxu0 0.0
    %617 = vmatprep.subr.mxu0 0.0
    %618 = vmatpush2.msra.mxu0 0.0
    %619 = vmatprep.subr.mxu0 0.0
    %620 = vmatpush2.msra.mxu0 0.0
    %621 = vmatprep.subr.mxu0 0.0
    %622 = vmatpush2.msra.mxu0 0.0
    %623 = vmatprep.subr.mxu0 0.0
    %624 = vmatpush2.msra.mxu0 0.0
    %625 = vmatprep.subr.mxu0 0.0
    %626 = vmatpush2.msra.mxu0 0.0
    %627 = vmatprep.subr.mxu0 0.0
    %628 = vmatpush2.msra.mxu0 0.0
    %629 = vmatprep.mubr.f32.mxu0 0.0
    %630 = vmatmul.mubr.f32.gmra.mxu0 %v492
    %v631 = vpop.f32.mrf.mxu0
    %v632 = vadd.f32 %v96, %v631
    %v633 = vpop.f32.mrf.mxu0
    %v634 = vadd.f32 %v100, %v633
    %635 = vdwg.mxu0
    %s636 = scalar_lea.vmem [#allocation2], 64
    %637 = vst [vmem:[%s636] sm:$0xff] %v561
    %638 = vst [vmem:[%s636 + $0x8] sm:$0xff] %v563
    %639 = vst [vmem:[%s636 + $0x10] sm:$0xff] %v632
    %640 = vst [vmem:[%s636 + $0x18] sm:$0xff] %v634
    %v641 = vld [vmem:[#allocation3 + $0x3] sm:$0x1]
    %v642 = vld [vmem:[#allocation3 + $0xb] sm:$0x1]
    %v643 = vld [vmem:[#allocation3 + $0x13] sm:$0x1]
    %v644 = vld [vmem:[#allocation3 + $0x1b] sm:$0x1]
    %v645 = vld [vmem:[#allocation3 + $0x23] sm:$0x1]
    %v646 = vld [vmem:[#allocation3 + $0x2b] sm:$0x1]
    %v647 = vld [vmem:[#allocation3 + $0x33] sm:$0x1]
    %v648 = vld [vmem:[#allocation3 + $0x3b] sm:$0x1]
    %v657 = vrot.slane %v642, 7
    %v658 = vsel %vm114, %v657, %v641
    %v659 = vrot.slane %v643, 6
    %v660 = vsel %vm117, %v659, %v658
    %v661 = vrot.slane %v644, 5
    %v662 = vsel %vm120, %v661, %v660
    %v663 = vrot.slane %v645, 4
    %v664 = vsel %vm123, %v663, %v662
    %v665 = vrot.slane %v646, 3
    %v666 = vsel %vm126, %v665, %v664
    %v667 = vrot.slane %v647, 2
    %v668 = vsel %vm129, %v667, %v666
    %v669 = vrot.slane %v648, 1
    %v670 = vsel %vm132, %v669, %v668
    %v671 = vsel %vm134, %v670, 0
    %673 = vmatprep.subr.mxu0 0.0
    %674 = vmatpush1.msra.mxu0 0.0
    %675 = vmatprep.subr.mxu0 0.0
    %676 = vmatpush1.msra.mxu0 0.0
    %677 = vmatprep.subr.mxu0 0.0
    %678 = vmatpush1.msra.mxu0 0.0
    %679 = vmatprep.subr.mxu0 0.0
    %680 = vmatpush1.msra.mxu0 0.0
    %681 = vmatprep.subr.mxu0 0.0
    %682 = vmatpush1.msra.mxu0 0.0
    %683 = vmatprep.subr.mxu0 0.0
    %684 = vmatpush1.msra.mxu0 0.0
    %685 = vmatprep.subr.mxu0 0.0
    %686 = vmatpush1.msra.mxu0 0.0
    %687 = vmatprep.subr.mxu0 0.0
    %688 = vmatpush1.msra.mxu0 0.0
    %689 = vmatprep.subr.mxu0 0.0
    %690 = vmatpush1.msra.mxu0 0.0
    %691 = vmatprep.subr.mxu0 0.0
    %692 = vmatpush1.msra.mxu0 0.0
    %693 = vmatprep.subr.mxu0 0.0
    %694 = vmatpush1.msra.mxu0 0.0
    %695 = vmatprep.subr.mxu0 0.0
    %696 = vmatpush1.msra.mxu0 0.0
    %697 = vmatprep.subr.mxu0 %v72
    %698 = vmatpush1.msra.mxu0 %v71
    %699 = vmatprep.subr.mxu0 %v68
    %700 = vmatpush1.msra.mxu0 %v67
    %701 = vmatprep.subr.mxu0 %v64
    %702 = vmatpush1.msra.mxu0 %v63
    %703 = vmatprep.subr.mxu0 %v60
    %704 = vmatpush1.msra.mxu0 %v59
    %705 = vmatprep.subr.mxu0 0.0
    %706 = vmatpush2.msra.mxu0 0.0
    %707 = vmatprep.subr.mxu0 0.0
    %708 = vmatpush2.msra.mxu0 0.0
    %709 = vmatprep.subr.mxu0 0.0
    %710 = vmatpush2.msra.mxu0 0.0
    %711 = vmatprep.subr.mxu0 0.0
    %712 = vmatpush2.msra.mxu0 0.0
    %713 = vmatprep.subr.mxu0 0.0
    %714 = vmatpush2.msra.mxu0 0.0
    %715 = vmatprep.subr.mxu0 0.0
    %716 = vmatpush2.msra.mxu0 0.0
    %717 = vmatprep.subr.mxu0 0.0
    %718 = vmatpush2.msra.mxu0 0.0
    %719 = vmatprep.subr.mxu0 0.0
    %720 = vmatpush2.msra.mxu0 0.0
    %721 = vmatprep.subr.mxu0 0.0
    %722 = vmatpush2.msra.mxu0 0.0
    %723 = vmatprep.subr.mxu0 0.0
    %724 = vmatpush2.msra.mxu0 0.0
    %725 = vmatprep.subr.mxu0 0.0
    %726 = vmatpush2.msra.mxu0 0.0
    %727 = vmatprep.subr.mxu0 0.0
    %728 = vmatpush2.msra.mxu0 0.0
    %729 = vmatprep.subr.mxu0 0.0
    %730 = vmatpush2.msra.mxu0 0.0
    %731 = vmatprep.subr.mxu0 0.0
    %732 = vmatpush2.msra.mxu0 0.0
    %733 = vmatprep.subr.mxu0 0.0
    %734 = vmatpush2.msra.mxu0 0.0
    %735 = vmatprep.subr.mxu0 0.0
    %736 = vmatpush2.msra.mxu0 0.0
    %737 = vmatprep.mubr.f32.mxu0 0.0
    %738 = vmatmul.mubr.f32.gmra.mxu0 %v671
    %v739 = vpop.f32.mrf.mxu0
    %v740 = vadd.f32 %v88, %v739
    %v741 = vpop.f32.mrf.mxu0
    %v742 = vadd.f32 %v92, %v741
    %743 = vdwg.mxu0
    %744 = vmatprep.subr.mxu0 0.0
    %745 = vmatpush1.msra.mxu0 0.0
    %746 = vmatprep.subr.mxu0 0.0
    %747 = vmatpush1.msra.mxu0 0.0
    %748 = vmatprep.subr.mxu0 0.0
    %749 = vmatpush1.msra.mxu0 0.0
    %750 = vmatprep.subr.mxu0 0.0
    %751 = vmatpush1.msra.mxu0 0.0
    %752 = vmatprep.subr.mxu0 0.0
    %753 = vmatpush1.msra.mxu0 0.0
    %754 = vmatprep.subr.mxu0 0.0
    %755 = vmatpush1.msra.mxu0 0.0
    %756 = vmatprep.subr.mxu0 0.0
    %757 = vmatpush1.msra.mxu0 0.0
    %758 = vmatprep.subr.mxu0 0.0
    %759 = vmatpush1.msra.mxu0 0.0
    %760 = vmatprep.subr.mxu0 0.0
    %761 = vmatpush1.msra.mxu0 0.0
    %762 = vmatprep.subr.mxu0 0.0
    %763 = vmatpush1.msra.mxu0 0.0
    %764 = vmatprep.subr.mxu0 0.0
    %765 = vmatpush1.msra.mxu0 0.0
    %766 = vmatprep.subr.mxu0 0.0
    %767 = vmatpush1.msra.mxu0 0.0
    %768 = vmatprep.subr.mxu0 %v74
    %769 = vmatpush1.msra.mxu0 %v73
    %770 = vmatprep.subr.mxu0 %v70
    %771 = vmatpush1.msra.mxu0 %v69
    %772 = vmatprep.subr.mxu0 %v66
    %773 = vmatpush1.msra.mxu0 %v65
    %774 = vmatprep.subr.mxu0 %v62
    %775 = vmatpush1.msra.mxu0 %v61
    %776 = vmatprep.subr.mxu0 0.0
    %777 = vmatpush2.msra.mxu0 0.0
    %778 = vmatprep.subr.mxu0 0.0
    %779 = vmatpush2.msra.mxu0 0.0
    %780 = vmatprep.subr.mxu0 0.0
    %781 = vmatpush2.msra.mxu0 0.0
    %782 = vmatprep.subr.mxu0 0.0
    %783 = vmatpush2.msra.mxu0 0.0
    %784 = vmatprep.subr.mxu0 0.0
    %785 = vmatpush2.msra.mxu0 0.0
    %786 = vmatprep.subr.mxu0 0.0
    %787 = vmatpush2.msra.mxu0 0.0
    %788 = vmatprep.subr.mxu0 0.0
    %789 = vmatpush2.msra.mxu0 0.0
    %790 = vmatprep.subr.mxu0 0.0
    %791 = vmatpush2.msra.mxu0 0.0
    %792 = vmatprep.subr.mxu0 0.0
    %793 = vmatpush2.msra.mxu0 0.0
    %794 = vmatprep.subr.mxu0 0.0
    %795 = vmatpush2.msra.mxu0 0.0
    %796 = vmatprep.subr.mxu0 0.0
    %797 = vmatpush2.msra.mxu0 0.0
    %798 = vmatprep.subr.mxu0 0.0
    %799 = vmatpush2.msra.mxu0 0.0
    %800 = vmatprep.subr.mxu0 0.0
    %801 = vmatpush2.msra.mxu0 0.0
    %802 = vmatprep.subr.mxu0 0.0
    %803 = vmatpush2.msra.mxu0 0.0
    %804 = vmatprep.subr.mxu0 0.0
    %805 = vmatpush2.msra.mxu0 0.0
    %806 = vmatprep.subr.mxu0 0.0
    %807 = vmatpush2.msra.mxu0 0.0
    %808 = vmatprep.mubr.f32.mxu0 0.0
    %809 = vmatmul.mubr.f32.gmra.mxu0 %v671
    %v810 = vpop.f32.mrf.mxu0
    %v811 = vadd.f32 %v96, %v810
    %v812 = vpop.f32.mrf.mxu0
    %v813 = vadd.f32 %v100, %v812
    %814 = vdwg.mxu0
    %s815 = scalar_lea.vmem [#allocation2], 96
    %816 = vst [vmem:[%s815] sm:$0xff] %v740
    %817 = vst [vmem:[%s815 + $0x8] sm:$0xff] %v742
    %818 = vst [vmem:[%s815 + $0x10] sm:$0xff] %v811
    %819 = vst [vmem:[%s815 + $0x18] sm:$0xff] %v813
    %v820 = vld [vmem:[#allocation3 + $0x4] sm:$0x1]
    %v821 = vld [vmem:[#allocation3 + $0xc] sm:$0x1]
    %v822 = vld [vmem:[#allocation3 + $0x14] sm:$0x1]
    %v823 = vld [vmem:[#allocation3 + $0x1c] sm:$0x1]
    %v824 = vld [vmem:[#allocation3 + $0x24] sm:$0x1]
    %v825 = vld [vmem:[#allocation3 + $0x2c] sm:$0x1]
    %v826 = vld [vmem:[#allocation3 + $0x34] sm:$0x1]
    %v827 = vld [vmem:[#allocation3 + $0x3c] sm:$0x1]
    %v836 = vrot.slane %v821, 7
    %v837 = vsel %vm114, %v836, %v820
    %v838 = vrot.slane %v822, 6
    %v839 = vsel %vm117, %v838, %v837
    %v840 = vrot.slane %v823, 5
    %v841 = vsel %vm120, %v840, %v839
    %v842 = vrot.slane %v824, 4
    %v843 = vsel %vm123, %v842, %v841
    %v844 = vrot.slane %v825, 3
    %v845 = vsel %vm126, %v844, %v843
    %v846 = vrot.slane %v826, 2
    %v847 = vsel %vm129, %v846, %v845
    %v848 = vrot.slane %v827, 1
    %v849 = vsel %vm132, %v848, %v847
    %v850 = vsel %vm134, %v849, 0
    %852 = vmatprep.subr.mxu0 0.0
    %853 = vmatpush1.msra.mxu0 0.0
    %854 = vmatprep.subr.mxu0 0.0
    %855 = vmatpush1.msra.mxu0 0.0
    %856 = vmatprep.subr.mxu0 0.0
    %857 = vmatpush1.msra.mxu0 0.0
    %858 = vmatprep.subr.mxu0 0.0
    %859 = vmatpush1.msra.mxu0 0.0
    %860 = vmatprep.subr.mxu0 0.0
    %861 = vmatpush1.msra.mxu0 0.0
    %862 = vmatprep.subr.mxu0 0.0
    %863 = vmatpush1.msra.mxu0 0.0
    %864 = vmatprep.subr.mxu0 0.0
    %865 = vmatpush1.msra.mxu0 0.0
    %866 = vmatprep.subr.mxu0 0.0
    %867 = vmatpush1.msra.mxu0 0.0
    %868 = vmatprep.subr.mxu0 0.0
    %869 = vmatpush1.msra.mxu0 0.0
    %870 = vmatprep.subr.mxu0 0.0
    %871 = vmatpush1.msra.mxu0 0.0
    %872 = vmatprep.subr.mxu0 0.0
    %873 = vmatpush1.msra.mxu0 0.0
    %874 = vmatprep.subr.mxu0 0.0
    %875 = vmatpush1.msra.mxu0 0.0
    %876 = vmatprep.subr.mxu0 %v72
    %877 = vmatpush1.msra.mxu0 %v71
    %878 = vmatprep.subr.mxu0 %v68
    %879 = vmatpush1.msra.mxu0 %v67
    %880 = vmatprep.subr.mxu0 %v64
    %881 = vmatpush1.msra.mxu0 %v63
    %882 = vmatprep.subr.mxu0 %v60
    %883 = vmatpush1.msra.mxu0 %v59
    %884 = vmatprep.subr.mxu0 0.0
    %885 = vmatpush2.msra.mxu0 0.0
    %886 = vmatprep.subr.mxu0 0.0
    %887 = vmatpush2.msra.mxu0 0.0
    %888 = vmatprep.subr.mxu0 0.0
    %889 = vmatpush2.msra.mxu0 0.0
    %890 = vmatprep.subr.mxu0 0.0
    %891 = vmatpush2.msra.mxu0 0.0
    %892 = vmatprep.subr.mxu0 0.0
    %893 = vmatpush2.msra.mxu0 0.0
    %894 = vmatprep.subr.mxu0 0.0
    %895 = vmatpush2.msra.mxu0 0.0
    %896 = vmatprep.subr.mxu0 0.0
    %897 = vmatpush2.msra.mxu0 0.0
    %898 = vmatprep.subr.mxu0 0.0
    %899 = vmatpush2.msra.mxu0 0.0
    %900 = vmatprep.subr.mxu0 0.0
    %901 = vmatpush2.msra.mxu0 0.0
    %902 = vmatprep.subr.mxu0 0.0
    %903 = vmatpush2.msra.mxu0 0.0
    %904 = vmatprep.subr.mxu0 0.0
    %905 = vmatpush2.msra.mxu0 0.0
    %906 = vmatprep.subr.mxu0 0.0
    %907 = vmatpush2.msra.mxu0 0.0
    %908 = vmatprep.subr.mxu0 0.0
    %909 = vmatpush2.msra.mxu0 0.0
    %910 = vmatprep.subr.mxu0 0.0
    %911 = vmatpush2.msra.mxu0 0.0
    %912 = vmatprep.subr.mxu0 0.0
    %913 = vmatpush2.msra.mxu0 0.0
    %914 = vmatprep.subr.mxu0 0.0
    %915 = vmatpush2.msra.mxu0 0.0
    %916 = vmatprep.mubr.f32.mxu0 0.0
    %917 = vmatmul.mubr.f32.gmra.mxu0 %v850
    %v918 = vpop.f32.mrf.mxu0
    %v919 = vadd.f32 %v88, %v918
    %v920 = vpop.f32.mrf.mxu0
    %v921 = vadd.f32 %v92, %v920
    %922 = vdwg.mxu0
    %923 = vmatprep.subr.mxu0 0.0
    %924 = vmatpush1.msra.mxu0 0.0
    %925 = vmatprep.subr.mxu0 0.0
    %926 = vmatpush1.msra.mxu0 0.0
    %927 = vmatprep.subr.mxu0 0.0
    %928 = vmatpush1.msra.mxu0 0.0
    %929 = vmatprep.subr.mxu0 0.0
    %930 = vmatpush1.msra.mxu0 0.0
    %931 = vmatprep.subr.mxu0 0.0
    %932 = vmatpush1.msra.mxu0 0.0
    %933 = vmatprep.subr.mxu0 0.0
    %934 = vmatpush1.msra.mxu0 0.0
    %935 = vmatprep.subr.mxu0 0.0
    %936 = vmatpush1.msra.mxu0 0.0
    %937 = vmatprep.subr.mxu0 0.0
    %938 = vmatpush1.msra.mxu0 0.0
    %939 = vmatprep.subr.mxu0 0.0
    %940 = vmatpush1.msra.mxu0 0.0
    %941 = vmatprep.subr.mxu0 0.0
    %942 = vmatpush1.msra.mxu0 0.0
    %943 = vmatprep.subr.mxu0 0.0
    %944 = vmatpush1.msra.mxu0 0.0
    %945 = vmatprep.subr.mxu0 0.0
    %946 = vmatpush1.msra.mxu0 0.0
    %947 = vmatprep.subr.mxu0 %v74
    %948 = vmatpush1.msra.mxu0 %v73
    %949 = vmatprep.subr.mxu0 %v70
    %950 = vmatpush1.msra.mxu0 %v69
    %951 = vmatprep.subr.mxu0 %v66
    %952 = vmatpush1.msra.mxu0 %v65
    %953 = vmatprep.subr.mxu0 %v62
    %954 = vmatpush1.msra.mxu0 %v61
    %955 = vmatprep.subr.mxu0 0.0
    %956 = vmatpush2.msra.mxu0 0.0
    %957 = vmatprep.subr.mxu0 0.0
    %958 = vmatpush2.msra.mxu0 0.0
    %959 = vmatprep.subr.mxu0 0.0
    %960 = vmatpush2.msra.mxu0 0.0
    %961 = vmatprep.subr.mxu0 0.0
    %962 = vmatpush2.msra.mxu0 0.0
    %963 = vmatprep.subr.mxu0 0.0
    %964 = vmatpush2.msra.mxu0 0.0
    %965 = vmatprep.subr.mxu0 0.0
    %966 = vmatpush2.msra.mxu0 0.0
    %967 = vmatprep.subr.mxu0 0.0
    %968 = vmatpush2.msra.mxu0 0.0
    %969 = vmatprep.subr.mxu0 0.0
    %970 = vmatpush2.msra.mxu0 0.0
    %971 = vmatprep.subr.mxu0 0.0
    %972 = vmatpush2.msra.mxu0 0.0
    %973 = vmatprep.subr.mxu0 0.0
    %974 = vmatpush2.msra.mxu0 0.0
    %975 = vmatprep.subr.mxu0 0.0
    %976 = vmatpush2.msra.mxu0 0.0
    %977 = vmatprep.subr.mxu0 0.0
    %978 = vmatpush2.msra.mxu0 0.0
    %979 = vmatprep.subr.mxu0 0.0
    %980 = vmatpush2.msra.mxu0 0.0
    %981 = vmatprep.subr.mxu0 0.0
    %982 = vmatpush2.msra.mxu0 0.0
    %983 = vmatprep.subr.mxu0 0.0
    %984 = vmatpush2.msra.mxu0 0.0
    %985 = vmatprep.subr.mxu0 0.0
    %986 = vmatpush2.msra.mxu0 0.0
    %987 = vmatprep.mubr.f32.mxu0 0.0
    %988 = vmatmul.mubr.f32.gmra.mxu0 %v850
    %v989 = vpop.f32.mrf.mxu0
    %v990 = vadd.f32 %v96, %v989
    %v991 = vpop.f32.mrf.mxu0
    %v992 = vadd.f32 %v100, %v991
    %993 = vdwg.mxu0
    %s994 = scalar_lea.vmem [#allocation2], 128
    %995 = vst [vmem:[%s994] sm:$0xff] %v919
    %996 = vst [vmem:[%s994 + $0x8] sm:$0xff] %v921
    %997 = vst [vmem:[%s994 + $0x10] sm:$0xff] %v990
    %998 = vst [vmem:[%s994 + $0x18] sm:$0xff] %v992
    %v999 = vld [vmem:[#allocation3 + $0x5] sm:$0x1]
    %v1000 = vld [vmem:[#allocation3 + $0xd] sm:$0x1]
    %v1001 = vld [vmem:[#allocation3 + $0x15] sm:$0x1]
    %v1002 = vld [vmem:[#allocation3 + $0x1d] sm:$0x1]
    %v1003 = vld [vmem:[#allocation3 + $0x25] sm:$0x1]
    %v1004 = vld [vmem:[#allocation3 + $0x2d] sm:$0x1]
    %v1005 = vld [vmem:[#allocation3 + $0x35] sm:$0x1]
    %v1006 = vld [vmem:[#allocation3 + $0x3d] sm:$0x1]
    %v1015 = vrot.slane %v1000, 7
    %v1016 = vsel %vm114, %v1015, %v999
    %v1017 = vrot.slane %v1001, 6
    %v1018 = vsel %vm117, %v1017, %v1016
    %v1019 = vrot.slane %v1002, 5
    %v1020 = vsel %vm120, %v1019, %v1018
    %v1021 = vrot.slane %v1003, 4
    %v1022 = vsel %vm123, %v1021, %v1020
    %v1023 = vrot.slane %v1004, 3
    %v1024 = vsel %vm126, %v1023, %v1022
    %v1025 = vrot.slane %v1005, 2
    %v1026 = vsel %vm129, %v1025, %v1024
    %v1027 = vrot.slane %v1006, 1
    %v1028 = vsel %vm132, %v1027, %v1026
    %v1029 = vsel %vm134, %v1028, 0
    %1031 = vmatprep.subr.mxu0 0.0
    %1032 = vmatpush1.msra.mxu0 0.0
    %1033 = vmatprep.subr.mxu0 0.0
    %1034 = vmatpush1.msra.mxu0 0.0
    %1035 = vmatprep.subr.mxu0 0.0
    %1036 = vmatpush1.msra.mxu0 0.0
    %1037 = vmatprep.subr.mxu0 0.0
    %1038 = vmatpush1.msra.mxu0 0.0
    %1039 = vmatprep.subr.mxu0 0.0
    %1040 = vmatpush1.msra.mxu0 0.0
    %1041 = vmatprep.subr.mxu0 0.0
    %1042 = vmatpush1.msra.mxu0 0.0
    %1043 = vmatprep.subr.mxu0 0.0
    %1044 = vmatpush1.msra.mxu0 0.0
    %1045 = vmatprep.subr.mxu0 0.0
    %1046 = vmatpush1.msra.mxu0 0.0
    %1047 = vmatprep.subr.mxu0 0.0
    %1048 = vmatpush1.msra.mxu0 0.0
    %1049 = vmatprep.subr.mxu0 0.0
    %1050 = vmatpush1.msra.mxu0 0.0
    %1051 = vmatprep.subr.mxu0 0.0
    %1052 = vmatpush1.msra.mxu0 0.0
    %1053 = vmatprep.subr.mxu0 0.0
    %1054 = vmatpush1.msra.mxu0 0.0
    %1055 = vmatprep.subr.mxu0 %v72
    %1056 = vmatpush1.msra.mxu0 %v71
    %1057 = vmatprep.subr.mxu0 %v68
    %1058 = vmatpush1.msra.mxu0 %v67
    %1059 = vmatprep.subr.mxu0 %v64
    %1060 = vmatpush1.msra.mxu0 %v63
    %1061 = vmatprep.subr.mxu0 %v60
    %1062 = vmatpush1.msra.mxu0 %v59
    %1063 = vmatprep.subr.mxu0 0.0
    %1064 = vmatpush2.msra.mxu0 0.0
    %1065 = vmatprep.subr.mxu0 0.0
    %1066 = vmatpush2.msra.mxu0 0.0
    %1067 = vmatprep.subr.mxu0 0.0
    %1068 = vmatpush2.msra.mxu0 0.0
    %1069 = vmatprep.subr.mxu0 0.0
    %1070 = vmatpush2.msra.mxu0 0.0
    %1071 = vmatprep.subr.mxu0 0.0
    %1072 = vmatpush2.msra.mxu0 0.0
    %1073 = vmatprep.subr.mxu0 0.0
    %1074 = vmatpush2.msra.mxu0 0.0
    %1075 = vmatprep.subr.mxu0 0.0
    %1076 = vmatpush2.msra.mxu0 0.0
    %1077 = vmatprep.subr.mxu0 0.0
    %1078 = vmatpush2.msra.mxu0 0.0
    %1079 = vmatprep.subr.mxu0 0.0
    %1080 = vmatpush2.msra.mxu0 0.0
    %1081 = vmatprep.subr.mxu0 0.0
    %1082 = vmatpush2.msra.mxu0 0.0
    %1083 = vmatprep.subr.mxu0 0.0
    %1084 = vmatpush2.msra.mxu0 0.0
    %1085 = vmatprep.subr.mxu0 0.0
    %1086 = vmatpush2.msra.mxu0 0.0
    %1087 = vmatprep.subr.mxu0 0.0
    %1088 = vmatpush2.msra.mxu0 0.0
    %1089 = vmatprep.subr.mxu0 0.0
    %1090 = vmatpush2.msra.mxu0 0.0
    %1091 = vmatprep.subr.mxu0 0.0
    %1092 = vmatpush2.msra.mxu0 0.0
    %1093 = vmatprep.subr.mxu0 0.0
    %1094 = vmatpush2.msra.mxu0 0.0
    %1095 = vmatprep.mubr.f32.mxu0 0.0
    %1096 = vmatmul.mubr.f32.gmra.mxu0 %v1029
    %v1097 = vpop.f32.mrf.mxu0
    %v1098 = vadd.f32 %v88, %v1097
    %v1099 = vpop.f32.mrf.mxu0
    %v1100 = vadd.f32 %v92, %v1099
    %1101 = vdwg.mxu0
    %1102 = vmatprep.subr.mxu0 0.0
    %1103 = vmatpush1.msra.mxu0 0.0
    %1104 = vmatprep.subr.mxu0 0.0
    %1105 = vmatpush1.msra.mxu0 0.0
    %1106 = vmatprep.subr.mxu0 0.0
    %1107 = vmatpush1.msra.mxu0 0.0
    %1108 = vmatprep.subr.mxu0 0.0
    %1109 = vmatpush1.msra.mxu0 0.0
    %1110 = vmatprep.subr.mxu0 0.0
    %1111 = vmatpush1.msra.mxu0 0.0
    %1112 = vmatprep.subr.mxu0 0.0
    %1113 = vmatpush1.msra.mxu0 0.0
    %1114 = vmatprep.subr.mxu0 0.0
    %1115 = vmatpush1.msra.mxu0 0.0
    %1116 = vmatprep.subr.mxu0 0.0
    %1117 = vmatpush1.msra.mxu0 0.0
    %1118 = vmatprep.subr.mxu0 0.0
    %1119 = vmatpush1.msra.mxu0 0.0
    %1120 = vmatprep.subr.mxu0 0.0
    %1121 = vmatpush1.msra.mxu0 0.0
    %1122 = vmatprep.subr.mxu0 0.0
    %1123 = vmatpush1.msra.mxu0 0.0
    %1124 = vmatprep.subr.mxu0 0.0
    %1125 = vmatpush1.msra.mxu0 0.0
    %1126 = vmatprep.subr.mxu0 %v74
    %1127 = vmatpush1.msra.mxu0 %v73
    %1128 = vmatprep.subr.mxu0 %v70
    %1129 = vmatpush1.msra.mxu0 %v69
    %1130 = vmatprep.subr.mxu0 %v66
    %1131 = vmatpush1.msra.mxu0 %v65
    %1132 = vmatprep.subr.mxu0 %v62
    %1133 = vmatpush1.msra.mxu0 %v61
    %1134 = vmatprep.subr.mxu0 0.0
    %1135 = vmatpush2.msra.mxu0 0.0
    %1136 = vmatprep.subr.mxu0 0.0
    %1137 = vmatpush2.msra.mxu0 0.0
    %1138 = vmatprep.subr.mxu0 0.0
    %1139 = vmatpush2.msra.mxu0 0.0
    %1140 = vmatprep.subr.mxu0 0.0
    %1141 = vmatpush2.msra.mxu0 0.0
    %1142 = vmatprep.subr.mxu0 0.0
    %1143 = vmatpush2.msra.mxu0 0.0
    %1144 = vmatprep.subr.mxu0 0.0
    %1145 = vmatpush2.msra.mxu0 0.0
    %1146 = vmatprep.subr.mxu0 0.0
    %1147 = vmatpush2.msra.mxu0 0.0
    %1148 = vmatprep.subr.mxu0 0.0
    %1149 = vmatpush2.msra.mxu0 0.0
    %1150 = vmatprep.subr.mxu0 0.0
    %1151 = vmatpush2.msra.mxu0 0.0
    %1152 = vmatprep.subr.mxu0 0.0
    %1153 = vmatpush2.msra.mxu0 0.0
    %1154 = vmatprep.subr.mxu0 0.0
    %1155 = vmatpush2.msra.mxu0 0.0
    %1156 = vmatprep.subr.mxu0 0.0
    %1157 = vmatpush2.msra.mxu0 0.0
    %1158 = vmatprep.subr.mxu0 0.0
    %1159 = vmatpush2.msra.mxu0 0.0
    %1160 = vmatprep.subr.mxu0 0.0
    %1161 = vmatpush2.msra.mxu0 0.0
    %1162 = vmatprep.subr.mxu0 0.0
    %1163 = vmatpush2.msra.mxu0 0.0
    %1164 = vmatprep.subr.mxu0 0.0
    %1165 = vmatpush2.msra.mxu0 0.0
    %1166 = vmatprep.mubr.f32.mxu0 0.0
    %1167 = vmatmul.mubr.f32.gmra.mxu0 %v1029
    %v1168 = vpop.f32.mrf.mxu0
    %v1169 = vadd.f32 %v96, %v1168
    %v1170 = vpop.f32.mrf.mxu0
    %v1171 = vadd.f32 %v100, %v1170
    %1172 = vdwg.mxu0
    %s1173 = scalar_lea.vmem [#allocation2], 160
    %1174 = vst [vmem:[%s1173] sm:$0xff] %v1098
    %1175 = vst [vmem:[%s1173 + $0x8] sm:$0xff] %v1100
    %1176 = vst [vmem:[%s1173 + $0x10] sm:$0xff] %v1169
    %1177 = vst [vmem:[%s1173 + $0x18] sm:$0xff] %v1171
    %v1178 = vld [vmem:[#allocation3 + $0x6] sm:$0x1]
    %v1179 = vld [vmem:[#allocation3 + $0xe] sm:$0x1]
    %v1180 = vld [vmem:[#allocation3 + $0x16] sm:$0x1]
    %v1181 = vld [vmem:[#allocation3 + $0x1e] sm:$0x1]
    %v1182 = vld [vmem:[#allocation3 + $0x26] sm:$0x1]
    %v1183 = vld [vmem:[#allocation3 + $0x2e] sm:$0x1]
    %v1184 = vld [vmem:[#allocation3 + $0x36] sm:$0x1]
    %v1185 = vld [vmem:[#allocation3 + $0x3e] sm:$0x1]
    %v1194 = vrot.slane %v1179, 7
    %v1195 = vsel %vm114, %v1194, %v1178
    %v1196 = vrot.slane %v1180, 6
    %v1197 = vsel %vm117, %v1196, %v1195
    %v1198 = vrot.slane %v1181, 5
    %v1199 = vsel %vm120, %v1198, %v1197
    %v1200 = vrot.slane %v1182, 4
    %v1201 = vsel %vm123, %v1200, %v1199
    %v1202 = vrot.slane %v1183, 3
    %v1203 = vsel %vm126, %v1202, %v1201
    %v1204 = vrot.slane %v1184, 2
    %v1205 = vsel %vm129, %v1204, %v1203
    %v1206 = vrot.slane %v1185, 1
    %v1207 = vsel %vm132, %v1206, %v1205
    %v1208 = vsel %vm134, %v1207, 0
    %1210 = vmatprep.subr.mxu0 0.0
    %1211 = vmatpush1.msra.mxu0 0.0
    %1212 = vmatprep.subr.mxu0 0.0
    %1213 = vmatpush1.msra.mxu0 0.0
    %1214 = vmatprep.subr.mxu0 0.0
    %1215 = vmatpush1.msra.mxu0 0.0
    %1216 = vmatprep.subr.mxu0 0.0
    %1217 = vmatpush1.msra.mxu0 0.0
    %1218 = vmatprep.subr.mxu0 0.0
    %1219 = vmatpush1.msra.mxu0 0.0
    %1220 = vmatprep.subr.mxu0 0.0
    %1221 = vmatpush1.msra.mxu0 0.0
    %1222 = vmatprep.subr.mxu0 0.0
    %1223 = vmatpush1.msra.mxu0 0.0
    %1224 = vmatprep.subr.mxu0 0.0
    %1225 = vmatpush1.msra.mxu0 0.0
    %1226 = vmatprep.subr.mxu0 0.0
    %1227 = vmatpush1.msra.mxu0 0.0
    %1228 = vmatprep.subr.mxu0 0.0
    %1229 = vmatpush1.msra.mxu0 0.0
    %1230 = vmatprep.subr.mxu0 0.0
    %1231 = vmatpush1.msra.mxu0 0.0
    %1232 = vmatprep.subr.mxu0 0.0
    %1233 = vmatpush1.msra.mxu0 0.0
    %1234 = vmatprep.subr.mxu0 %v72
    %1235 = vmatpush1.msra.mxu0 %v71
    %1236 = vmatprep.subr.mxu0 %v68
    %1237 = vmatpush1.msra.mxu0 %v67
    %1238 = vmatprep.subr.mxu0 %v64
    %1239 = vmatpush1.msra.mxu0 %v63
    %1240 = vmatprep.subr.mxu0 %v60
    %1241 = vmatpush1.msra.mxu0 %v59
    %1242 = vmatprep.subr.mxu0 0.0
    %1243 = vmatpush2.msra.mxu0 0.0
    %1244 = vmatprep.subr.mxu0 0.0
    %1245 = vmatpush2.msra.mxu0 0.0
    %1246 = vmatprep.subr.mxu0 0.0
    %1247 = vmatpush2.msra.mxu0 0.0
    %1248 = vmatprep.subr.mxu0 0.0
    %1249 = vmatpush2.msra.mxu0 0.0
    %1250 = vmatprep.subr.mxu0 0.0
    %1251 = vmatpush2.msra.mxu0 0.0
    %1252 = vmatprep.subr.mxu0 0.0
    %1253 = vmatpush2.msra.mxu0 0.0
    %1254 = vmatprep.subr.mxu0 0.0
    %1255 = vmatpush2.msra.mxu0 0.0
    %1256 = vmatprep.subr.mxu0 0.0
    %1257 = vmatpush2.msra.mxu0 0.0
    %1258 = vmatprep.subr.mxu0 0.0
    %1259 = vmatpush2.msra.mxu0 0.0
    %1260 = vmatprep.subr.mxu0 0.0
    %1261 = vmatpush2.msra.mxu0 0.0
    %1262 = vmatprep.subr.mxu0 0.0
    %1263 = vmatpush2.msra.mxu0 0.0
    %1264 = vmatprep.subr.mxu0 0.0
    %1265 = vmatpush2.msra.mxu0 0.0
    %1266 = vmatprep.subr.mxu0 0.0
    %1267 = vmatpush2.msra.mxu0 0.0
    %1268 = vmatprep.subr.mxu0 0.0
    %1269 = vmatpush2.msra.mxu0 0.0
    %1270 = vmatprep.subr.mxu0 0.0
    %1271 = vmatpush2.msra.mxu0 0.0
    %1272 = vmatprep.subr.mxu0 0.0
    %1273 = vmatpush2.msra.mxu0 0.0
    %1274 = vmatprep.mubr.f32.mxu0 0.0
    %1275 = vmatmul.mubr.f32.gmra.mxu0 %v1208
    %v1276 = vpop.f32.mrf.mxu0
    %v1277 = vadd.f32 %v88, %v1276
    %v1278 = vpop.f32.mrf.mxu0
    %v1279 = vadd.f32 %v92, %v1278
    %1280 = vdwg.mxu0
    %1281 = vmatprep.subr.mxu0 0.0
    %1282 = vmatpush1.msra.mxu0 0.0
    %1283 = vmatprep.subr.mxu0 0.0
    %1284 = vmatpush1.msra.mxu0 0.0
    %1285 = vmatprep.subr.mxu0 0.0
    %1286 = vmatpush1.msra.mxu0 0.0
    %1287 = vmatprep.subr.mxu0 0.0
    %1288 = vmatpush1.msra.mxu0 0.0
    %1289 = vmatprep.subr.mxu0 0.0
    %1290 = vmatpush1.msra.mxu0 0.0
    %1291 = vmatprep.subr.mxu0 0.0
    %1292 = vmatpush1.msra.mxu0 0.0
    %1293 = vmatprep.subr.mxu0 0.0
    %1294 = vmatpush1.msra.mxu0 0.0
    %1295 = vmatprep.subr.mxu0 0.0
    %1296 = vmatpush1.msra.mxu0 0.0
    %1297 = vmatprep.subr.mxu0 0.0
    %1298 = vmatpush1.msra.mxu0 0.0
    %1299 = vmatprep.subr.mxu0 0.0
    %1300 = vmatpush1.msra.mxu0 0.0
    %1301 = vmatprep.subr.mxu0 0.0
    %1302 = vmatpush1.msra.mxu0 0.0
    %1303 = vmatprep.subr.mxu0 0.0
    %1304 = vmatpush1.msra.mxu0 0.0
    %1305 = vmatprep.subr.mxu0 %v74
    %1306 = vmatpush1.msra.mxu0 %v73
    %1307 = vmatprep.subr.mxu0 %v70
    %1308 = vmatpush1.msra.mxu0 %v69
    %1309 = vmatprep.subr.mxu0 %v66
    %1310 = vmatpush1.msra.mxu0 %v65
    %1311 = vmatprep.subr.mxu0 %v62
    %1312 = vmatpush1.msra.mxu0 %v61
    %1313 = vmatprep.subr.mxu0 0.0
    %1314 = vmatpush2.msra.mxu0 0.0
    %1315 = vmatprep.subr.mxu0 0.0
    %1316 = vmatpush2.msra.mxu0 0.0
    %1317 = vmatprep.subr.mxu0 0.0
    %1318 = vmatpush2.msra.mxu0 0.0
    %1319 = vmatprep.subr.mxu0 0.0
    %1320 = vmatpush2.msra.mxu0 0.0
    %1321 = vmatprep.subr.mxu0 0.0
    %1322 = vmatpush2.msra.mxu0 0.0
    %1323 = vmatprep.subr.mxu0 0.0
    %1324 = vmatpush2.msra.mxu0 0.0
    %1325 = vmatprep.subr.mxu0 0.0
    %1326 = vmatpush2.msra.mxu0 0.0
    %1327 = vmatprep.subr.mxu0 0.0
    %1328 = vmatpush2.msra.mxu0 0.0
    %1329 = vmatprep.subr.mxu0 0.0
    %1330 = vmatpush2.msra.mxu0 0.0
    %1331 = vmatprep.subr.mxu0 0.0
    %1332 = vmatpush2.msra.mxu0 0.0
    %1333 = vmatprep.subr.mxu0 0.0
    %1334 = vmatpush2.msra.mxu0 0.0
    %1335 = vmatprep.subr.mxu0 0.0
    %1336 = vmatpush2.msra.mxu0 0.0
    %1337 = vmatprep.subr.mxu0 0.0
    %1338 = vmatpush2.msra.mxu0 0.0
    %1339 = vmatprep.subr.mxu0 0.0
    %1340 = vmatpush2.msra.mxu0 0.0
    %1341 = vmatprep.subr.mxu0 0.0
    %1342 = vmatpush2.msra.mxu0 0.0
    %1343 = vmatprep.subr.mxu0 0.0
    %1344 = vmatpush2.msra.mxu0 0.0
    %1345 = vmatprep.mubr.f32.mxu0 0.0
    %1346 = vmatmul.mubr.f32.gmra.mxu0 %v1208
    %v1347 = vpop.f32.mrf.mxu0
    %v1348 = vadd.f32 %v96, %v1347
    %v1349 = vpop.f32.mrf.mxu0
    %v1350 = vadd.f32 %v100, %v1349
    %1351 = vdwg.mxu0
    %s1352 = scalar_lea.vmem [#allocation2], 192
    %1353 = vst [vmem:[%s1352] sm:$0xff] %v1277
    %1354 = vst [vmem:[%s1352 + $0x8] sm:$0xff] %v1279
    %1355 = vst [vmem:[%s1352 + $0x10] sm:$0xff] %v1348
    %1356 = vst [vmem:[%s1352 + $0x18] sm:$0xff] %v1350
    %v1357 = vld [vmem:[#allocation3 + $0x7] sm:$0x1]
    %v1358 = vld [vmem:[#allocation3 + $0xf] sm:$0x1]
    %v1359 = vld [vmem:[#allocation3 + $0x17] sm:$0x1]
    %v1360 = vld [vmem:[#allocation3 + $0x1f] sm:$0x1]
    %v1361 = vld [vmem:[#allocation3 + $0x27] sm:$0x1]
    %v1362 = vld [vmem:[#allocation3 + $0x2f] sm:$0x1]
    %v1363 = vld [vmem:[#allocation3 + $0x37] sm:$0x1]
    %v1364 = vld [vmem:[#allocation3 + $0x3f] sm:$0x1]
    %v1373 = vrot.slane %v1358, 7
    %v1374 = vsel %vm114, %v1373, %v1357
    %v1375 = vrot.slane %v1359, 6
    %v1376 = vsel %vm117, %v1375, %v1374
    %v1377 = vrot.slane %v1360, 5
    %v1378 = vsel %vm120, %v1377, %v1376
    %v1379 = vrot.slane %v1361, 4
    %v1380 = vsel %vm123, %v1379, %v1378
    %v1381 = vrot.slane %v1362, 3
    %v1382 = vsel %vm126, %v1381, %v1380
    %v1383 = vrot.slane %v1363, 2
    %v1384 = vsel %vm129, %v1383, %v1382
    %v1385 = vrot.slane %v1364, 1
    %v1386 = vsel %vm132, %v1385, %v1384
    %v1387 = vsel %vm134, %v1386, 0
    %1389 = vmatprep.subr.mxu0 0.0
    %1390 = vmatpush1.msra.mxu0 0.0
    %1391 = vmatprep.subr.mxu0 0.0
    %1392 = vmatpush1.msra.mxu0 0.0
    %1393 = vmatprep.subr.mxu0 0.0
    %1394 = vmatpush1.msra.mxu0 0.0
    %1395 = vmatprep.subr.mxu0 0.0
    %1396 = vmatpush1.msra.mxu0 0.0
    %1397 = vmatprep.subr.mxu0 0.0
    %1398 = vmatpush1.msra.mxu0 0.0
    %1399 = vmatprep.subr.mxu0 0.0
    %1400 = vmatpush1.msra.mxu0 0.0
    %1401 = vmatprep.subr.mxu0 0.0
    %1402 = vmatpush1.msra.mxu0 0.0
    %1403 = vmatprep.subr.mxu0 0.0
    %1404 = vmatpush1.msra.mxu0 0.0
    %1405 = vmatprep.subr.mxu0 0.0
    %1406 = vmatpush1.msra.mxu0 0.0
    %1407 = vmatprep.subr.mxu0 0.0
    %1408 = vmatpush1.msra.mxu0 0.0
    %1409 = vmatprep.subr.mxu0 0.0
    %1410 = vmatpush1.msra.mxu0 0.0
    %1411 = vmatprep.subr.mxu0 0.0
    %1412 = vmatpush1.msra.mxu0 0.0
    %1413 = vmatprep.subr.mxu0 %v72
    %1414 = vmatpush1.msra.mxu0 %v71
    %1415 = vmatprep.subr.mxu0 %v68
    %1416 = vmatpush1.msra.mxu0 %v67
    %1417 = vmatprep.subr.mxu0 %v64
    %1418 = vmatpush1.msra.mxu0 %v63
    %1419 = vmatprep.subr.mxu0 %v60
    %1420 = vmatpush1.msra.mxu0 %v59
    %1421 = vmatprep.subr.mxu0 0.0
    %1422 = vmatpush2.msra.mxu0 0.0
    %1423 = vmatprep.subr.mxu0 0.0
    %1424 = vmatpush2.msra.mxu0 0.0
    %1425 = vmatprep.subr.mxu0 0.0
    %1426 = vmatpush2.msra.mxu0 0.0
    %1427 = vmatprep.subr.mxu0 0.0
    %1428 = vmatpush2.msra.mxu0 0.0
    %1429 = vmatprep.subr.mxu0 0.0
    %1430 = vmatpush2.msra.mxu0 0.0
    %1431 = vmatprep.subr.mxu0 0.0
    %1432 = vmatpush2.msra.mxu0 0.0
    %1433 = vmatprep.subr.mxu0 0.0
    %1434 = vmatpush2.msra.mxu0 0.0
    %1435 = vmatprep.subr.mxu0 0.0
    %1436 = vmatpush2.msra.mxu0 0.0
    %1437 = vmatprep.subr.mxu0 0.0
    %1438 = vmatpush2.msra.mxu0 0.0
    %1439 = vmatprep.subr.mxu0 0.0
    %1440 = vmatpush2.msra.mxu0 0.0
    %1441 = vmatprep.subr.mxu0 0.0
    %1442 = vmatpush2.msra.mxu0 0.0
    %1443 = vmatprep.subr.mxu0 0.0
    %1444 = vmatpush2.msra.mxu0 0.0
    %1445 = vmatprep.subr.mxu0 0.0
    %1446 = vmatpush2.msra.mxu0 0.0
    %1447 = vmatprep.subr.mxu0 0.0
    %1448 = vmatpush2.msra.mxu0 0.0
    %1449 = vmatprep.subr.mxu0 0.0
    %1450 = vmatpush2.msra.mxu0 0.0
    %1451 = vmatprep.subr.mxu0 0.0
    %1452 = vmatpush2.msra.mxu0 0.0
    %1453 = vmatprep.mubr.f32.mxu0 0.0
    %1454 = vmatmul.mubr.f32.gmra.mxu0 %v1387
    %v1455 = vpop.f32.mrf.mxu0
    %v1456 = vadd.f32 %v88, %v1455
    %v1457 = vpop.f32.mrf.mxu0
    %v1458 = vadd.f32 %v92, %v1457
    %1459 = vdwg.mxu0
    %1460 = vmatprep.subr.mxu0 0.0
    %1461 = vmatpush1.msra.mxu0 0.0
    %1462 = vmatprep.subr.mxu0 0.0
    %1463 = vmatpush1.msra.mxu0 0.0
    %1464 = vmatprep.subr.mxu0 0.0
    %1465 = vmatpush1.msra.mxu0 0.0
    %1466 = vmatprep.subr.mxu0 0.0
    %1467 = vmatpush1.msra.mxu0 0.0
    %1468 = vmatprep.subr.mxu0 0.0
    %1469 = vmatpush1.msra.mxu0 0.0
    %1470 = vmatprep.subr.mxu0 0.0
    %1471 = vmatpush1.msra.mxu0 0.0
    %1472 = vmatprep.subr.mxu0 0.0
    %1473 = vmatpush1.msra.mxu0 0.0
    %1474 = vmatprep.subr.mxu0 0.0
    %1475 = vmatpush1.msra.mxu0 0.0
    %1476 = vmatprep.subr.mxu0 0.0
    %1477 = vmatpush1.msra.mxu0 0.0
    %1478 = vmatprep.subr.mxu0 0.0
    %1479 = vmatpush1.msra.mxu0 0.0
    %1480 = vmatprep.subr.mxu0 0.0
    %1481 = vmatpush1.msra.mxu0 0.0
    %1482 = vmatprep.subr.mxu0 0.0
    %1483 = vmatpush1.msra.mxu0 0.0
    %1484 = vmatprep.subr.mxu0 %v74
    %1485 = vmatpush1.msra.mxu0 %v73
    %1486 = vmatprep.subr.mxu0 %v70
    %1487 = vmatpush1.msra.mxu0 %v69
    %1488 = vmatprep.subr.mxu0 %v66
    %1489 = vmatpush1.msra.mxu0 %v65
    %1490 = vmatprep.subr.mxu0 %v62
    %1491 = vmatpush1.msra.mxu0 %v61
    %1492 = vmatprep.subr.mxu0 0.0
    %1493 = vmatpush2.msra.mxu0 0.0
    %1494 = vmatprep.subr.mxu0 0.0
    %1495 = vmatpush2.msra.mxu0 0.0
    %1496 = vmatprep.subr.mxu0 0.0
    %1497 = vmatpush2.msra.mxu0 0.0
    %1498 = vmatprep.subr.mxu0 0.0
    %1499 = vmatpush2.msra.mxu0 0.0
    %1500 = vmatprep.subr.mxu0 0.0
    %1501 = vmatpush2.msra.mxu0 0.0
    %1502 = vmatprep.subr.mxu0 0.0
    %1503 = vmatpush2.msra.mxu0 0.0
    %1504 = vmatprep.subr.mxu0 0.0
    %1505 = vmatpush2.msra.mxu0 0.0
    %1506 = vmatprep.subr.mxu0 0.0
    %1507 = vmatpush2.msra.mxu0 0.0
    %1508 = vmatprep.subr.mxu0 0.0
    %1509 = vmatpush2.msra.mxu0 0.0
    %1510 = vmatprep.subr.mxu0 0.0
    %1511 = vmatpush2.msra.mxu0 0.0
    %1512 = vmatprep.subr.mxu0 0.0
    %1513 = vmatpush2.msra.mxu0 0.0
    %1514 = vmatprep.subr.mxu0 0.0
    %1515 = vmatpush2.msra.mxu0 0.0
    %1516 = vmatprep.subr.mxu0 0.0
    %1517 = vmatpush2.msra.mxu0 0.0
    %1518 = vmatprep.subr.mxu0 0.0
    %1519 = vmatpush2.msra.mxu0 0.0
    %1520 = vmatprep.subr.mxu0 0.0
    %1521 = vmatpush2.msra.mxu0 0.0
    %1522 = vmatprep.subr.mxu0 0.0
    %1523 = vmatpush2.msra.mxu0 0.0
    %1524 = vmatprep.mubr.f32.mxu0 0.0
    %1525 = vmatmul.mubr.f32.gmra.mxu0 %v1387
    %v1526 = vpop.f32.mrf.mxu0
    %v1527 = vadd.f32 %v96, %v1526
    %v1528 = vpop.f32.mrf.mxu0
    %v1529 = vadd.f32 %v100, %v1528
    %1530 = vdwg.mxu0
    %s1531 = scalar_lea.vmem [#allocation2], 224
    %1532 = vst [vmem:[%s1531] sm:$0xff] %v1456
    %1533 = vst [vmem:[%s1531 + $0x8] sm:$0xff] %v1458
    %1534 = vst [vmem:[%s1531 + $0x10] sm:$0xff] %v1527
    %1535 = vst [vmem:[%s1531 + $0x18] sm:$0xff] %v1529
    %v1536 = vlaneseq
    %v1537 = vand.u32 %v1536, 127
    %v1538 = vadd.s32 %v1537, 128
    %v1539 = vadd.s32 %v1537, 256
    %v1540 = vadd.s32 %v1537, 384
    %vm1541 = vcmp.lt.s32.totalorder %v1537, 0
    %v1542 = vsub.s32 0, %v1537
    %v1543 = vsel %vm1541, %v1542, %v1537
    %v1544 = vshrl.u32 %v1543, 7
    %v1545 = vand.u32 %v1543, 127
    %v1546 = vsub.s32 0, %v1545
    %v1547 = vsel %vm1541, %v1546, %v1545
    %vm1548 = vcmp.lt.s32.totalorder %v1538, 0
    %v1549 = vsub.s32 0, %v1538
    %v1550 = vsel %vm1548, %v1549, %v1538
    %v1551 = vshrl.u32 %v1550, 7
    %v1552 = vand.u32 %v1550, 127
    %v1553 = vsub.s32 0, %v1552
    %v1554 = vsel %vm1548, %v1553, %v1552
    %vm1555 = vcmp.lt.s32.totalorder %v1539, 0
    %v1556 = vsub.s32 0, %v1539
    %v1557 = vsel %vm1555, %v1556, %v1539
    %v1558 = vshrl.u32 %v1557, 7
    %v1559 = vand.u32 %v1557, 127
    %v1560 = vsub.s32 0, %v1559
    %v1561 = vsel %vm1555, %v1560, %v1559
    %vm1562 = vcmp.lt.s32.totalorder %v1540, 0
    %v1563 = vsub.s32 0, %v1540
    %v1564 = vsel %vm1562, %v1563, %v1540
    %v1565 = vshrl.u32 %v1564, 7
    %v1566 = vand.u32 %v1564, 127
    %v1567 = vsub.s32 0, %v1566
    %v1568 = vsel %vm1562, %v1567, %v1566
    %vm1569 = vcmp.ne.s32.totalorder %v1547, 0
    %vm1570 = vcmp.ne.s32.totalorder %v1554, 0
    %vm1571 = vcmp.ne.s32.totalorder %v1561, 0
    %vm1572 = vcmp.ne.s32.totalorder %v1568, 0
    %vm1573 = vcmp.lt.s32.totalorder %v1547, 0
    %vm1574 = vcmp.lt.s32.totalorder %v1554, 0
    %vm1575 = vcmp.lt.s32.totalorder %v1561, 0
    %vm1576 = vcmp.lt.s32.totalorder %v1568, 0
    %vm1577 = vmand %vm1573, %vm1569
    %vm1578 = vmand %vm1574, %vm1570
    %vm1579 = vmand %vm1575, %vm1571
    %vm1580 = vmand %vm1576, %vm1572
    %v1581 = vadd.s32 %v1547, 128
    %v1582 = vadd.s32 %v1554, 128
    %v1583 = vadd.s32 %v1561, 128
    %v1584 = vadd.s32 %v1568, 128
    %v1585 = vsel %vm1577, %v1581, %v1547
    %v1586 = vsel %vm1578, %v1582, %v1554
    %v1587 = vsel %vm1579, %v1583, %v1561
    %v1588 = vsel %vm1580, %v1584, %v1568
    %vm1589 = vcmp.ge.s32.totalorder %v1585, 16
    %vm1590 = vcmp.ge.s32.totalorder %v1586, 16
    %vm1591 = vcmp.ge.s32.totalorder %v1587, 16
    %vm1592 = vcmp.ge.s32.totalorder %v1588, 16
    %vm1593 = vcmp.lt.s32.totalorder %v1585, 32
    %vm1594 = vcmp.lt.s32.totalorder %v1586, 32
    %vm1595 = vcmp.lt.s32.totalorder %v1587, 32
    %vm1596 = vcmp.lt.s32.totalorder %v1588, 32
    %vm1597 = vmand %vm1589, %vm1593
    %vm1598 = vmand %vm1590, %vm1594
    %vm1599 = vmand %vm1591, %vm1595
    %vm1600 = vmand %vm1592, %vm1596
    %v1601 = vld [vmem:[#allocation2] sm:$0xff]
    %v1602 = vld [vmem:[#allocation2 + $0x8] sm:$0xff]
    %v1603 = vld [vmem:[#allocation2 + $0x10] sm:$0xff]
    %v1604 = vld [vmem:[#allocation2 + $0x18] sm:$0xff]
    %v1605 = vld [vmem:[%s1531] sm:$0xff]
    %v1606 = vld [vmem:[%s1531 + $0x8] sm:$0xff]
    %v1607 = vld [vmem:[%s1531 + $0x10] sm:$0xff]
    %v1608 = vld [vmem:[%s1531 + $0x18] sm:$0xff]
    %v1609 = vsel %vm1597, 1, 0
    %v1610 = vsel %vm1598, 1, 0
    %v1611 = vsel %vm1599, 1, 0
    %v1612 = vsel %vm1600, 1, 0
    %vm1613 = vcmp.eq.s32.totalorder %v1609, 1
    %vm1614 = vcmp.eq.s32.totalorder %v1610, 1
    %vm1615 = vcmp.eq.s32.totalorder %v1611, 1
    %vm1616 = vcmp.eq.s32.totalorder %v1612, 1
    %v1617 = vsel %vm1613, %v1605, %v1601
    %v1618 = vsel %vm1614, %v1606, %v1602
    %v1619 = vsel %vm1615, %v1607, %v1603
    %v1620 = vsel %vm1616, %v1608, %v1604
    %1621 = vst [vmem:[#allocation2] sm:$0xff] %v1617
    %1622 = vst [vmem:[#allocation2 + $0x8] sm:$0xff] %v1618
    %1623 = vst [vmem:[#allocation2 + $0x10] sm:$0xff] %v1619
    %1624 = vst [vmem:[#allocation2 + $0x18] sm:$0xff] %v1620
    %v1625 = vsel %vm1613, %v1601, %v1605
    %v1626 = vsel %vm1614, %v1602, %v1606
    %v1627 = vsel %vm1615, %v1603, %v1607
    %v1628 = vsel %vm1616, %v1604, %v1608
    %1629 = vst [vmem:[%s1531] sm:$0xff] %v1625
    %1630 = vst [vmem:[%s1531 + $0x8] sm:$0xff] %v1626
    %1631 = vst [vmem:[%s1531 + $0x10] sm:$0xff] %v1627
    %1632 = vst [vmem:[%s1531 + $0x18] sm:$0xff] %v1628
    %v1633 = vld [vmem:[%s457] sm:$0xff]
    %v1634 = vld [vmem:[%s457 + $0x8] sm:$0xff]
    %v1635 = vld [vmem:[%s457 + $0x10] sm:$0xff]
    %v1636 = vld [vmem:[%s457 + $0x18] sm:$0xff]
    %v1637 = vld [vmem:[%s1352] sm:$0xff]
    %v1638 = vld [vmem:[%s1352 + $0x8] sm:$0xff]
    %v1639 = vld [vmem:[%s1352 + $0x10] sm:$0xff]
    %v1640 = vld [vmem:[%s1352 + $0x18] sm:$0xff]
    %v1641 = vsel %vm1613, %v1637, %v1633
    %v1642 = vsel %vm1614, %v1638, %v1634
    %v1643 = vsel %vm1615, %v1639, %v1635
    %v1644 = vsel %vm1616, %v1640, %v1636
    %1645 = vst [vmem:[%s457] sm:$0xff] %v1641
    %1646 = vst [vmem:[%s457 + $0x8] sm:$0xff] %v1642
    %1647 = vst [vmem:[%s457 + $0x10] sm:$0xff] %v1643
    %1648 = vst [vmem:[%s457 + $0x18] sm:$0xff] %v1644
    %v1649 = vsel %vm1613, %v1633, %v1637
    %v1650 = vsel %vm1614, %v1634, %v1638
    %v1651 = vsel %vm1615, %v1635, %v1639
    %v1652 = vsel %vm1616, %v1636, %v1640
    %1653 = vst [vmem:[%s1352] sm:$0xff] %v1649
    %1654 = vst [vmem:[%s1352 + $0x8] sm:$0xff] %v1650
    %1655 = vst [vmem:[%s1352 + $0x10] sm:$0xff] %v1651
    %1656 = vst [vmem:[%s1352 + $0x18] sm:$0xff] %v1652
    %v1657 = vld [vmem:[%s636] sm:$0xff]
    %v1658 = vld [vmem:[%s636 + $0x8] sm:$0xff]
    %v1659 = vld [vmem:[%s636 + $0x10] sm:$0xff]
    %v1660 = vld [vmem:[%s636 + $0x18] sm:$0xff]
    %v1661 = vld [vmem:[%s1173] sm:$0xff]
    %v1662 = vld [vmem:[%s1173 + $0x8] sm:$0xff]
    %v1663 = vld [vmem:[%s1173 + $0x10] sm:$0xff]
    %v1664 = vld [vmem:[%s1173 + $0x18] sm:$0xff]
    %v1665 = vsel %vm1613, %v1661, %v1657
    %v1666 = vsel %vm1614, %v1662, %v1658
    %v1667 = vsel %vm1615, %v1663, %v1659
    %v1668 = vsel %vm1616, %v1664, %v1660
    %1669 = vst [vmem:[%s636] sm:$0xff] %v1665
    %1670 = vst [vmem:[%s636 + $0x8] sm:$0xff] %v1666
    %1671 = vst [vmem:[%s636 + $0x10] sm:$0xff] %v1667
    %1672 = vst [vmem:[%s636 + $0x18] sm:$0xff] %v1668
    %v1673 = vsel %vm1613, %v1657, %v1661
    %v1674 = vsel %vm1614, %v1658, %v1662
    %v1675 = vsel %vm1615, %v1659, %v1663
    %v1676 = vsel %vm1616, %v1660, %v1664
    %1677 = vst [vmem:[%s1173] sm:$0xff] %v1673
    %1678 = vst [vmem:[%s1173 + $0x8] sm:$0xff] %v1674
    %1679 = vst [vmem:[%s1173 + $0x10] sm:$0xff] %v1675
    %1680 = vst [vmem:[%s1173 + $0x18] sm:$0xff] %v1676
    %v1681 = vld [vmem:[%s815] sm:$0xff]
    %v1682 = vld [vmem:[%s815 + $0x8] sm:$0xff]
    %v1683 = vld [vmem:[%s815 + $0x10] sm:$0xff]
    %v1684 = vld [vmem:[%s815 + $0x18] sm:$0xff]
    %v1685 = vld [vmem:[%s994] sm:$0xff]
    %v1686 = vld [vmem:[%s994 + $0x8] sm:$0xff]
    %v1687 = vld [vmem:[%s994 + $0x10] sm:$0xff]
    %v1688 = vld [vmem:[%s994 + $0x18] sm:$0xff]
    %v1689 = vsel %vm1613, %v1685, %v1681
    %v1690 = vsel %vm1614, %v1686, %v1682
    %v1691 = vsel %vm1615, %v1687, %v1683
    %v1692 = vsel %vm1616, %v1688, %v1684
    %1693 = vst [vmem:[%s815] sm:$0xff] %v1689
    %1694 = vst [vmem:[%s815 + $0x8] sm:$0xff] %v1690
    %1695 = vst [vmem:[%s815 + $0x10] sm:$0xff] %v1691
    %1696 = vst [vmem:[%s815 + $0x18] sm:$0xff] %v1692
    %v1697 = vsel %vm1613, %v1681, %v1685
    %v1698 = vsel %vm1614, %v1682, %v1686
    %v1699 = vsel %vm1615, %v1683, %v1687
    %v1700 = vsel %vm1616, %v1684, %v1688
    %1701 = vst [vmem:[%s994] sm:$0xff] %v1697
    %1702 = vst [vmem:[%s994 + $0x8] sm:$0xff] %v1698
    %1703 = vst [vmem:[%s994 + $0x10] sm:$0xff] %v1699
    %1704 = vst [vmem:[%s994 + $0x18] sm:$0xff] %v1700
    %v1705 = vld [vmem:[#allocation8] sm:$0xff]
    %v1706 = vld [vmem:[#allocation8 + $0x8] sm:$0xff]
    %v1707 = vld [vmem:[#allocation8 + $0x10] sm:$0xff]
    %v1708 = vld [vmem:[#allocation8 + $0x18] sm:$0xff]
    %v1709 = vld [vmem:[#allocation8 + $0x20] sm:$0xff]
    %v1710 = vld [vmem:[#allocation8 + $0x28] sm:$0xff]
    %v1711 = vld [vmem:[#allocation8 + $0x30] sm:$0xff]
    %v1712 = vld [vmem:[#allocation8 + $0x38] sm:$0xff]
    %v1713 = vld [vmem:[#allocation8 + $0x40] sm:$0xff]
    %v1714 = vld [vmem:[#allocation8 + $0x48] sm:$0xff]
    %v1715 = vld [vmem:[#allocation8 + $0x50] sm:$0xff]
    %v1716 = vld [vmem:[#allocation8 + $0x58] sm:$0xff]
    %v1717 = vld [vmem:[#allocation8 + $0x60] sm:$0xff]
    %v1718 = vld [vmem:[#allocation8 + $0x68] sm:$0xff]
    %v1719 = vld [vmem:[#allocation8 + $0x70] sm:$0xff]
    %v1720 = vld [vmem:[#allocation8 + $0x78] sm:$0xff]
    %v1721 = vld [vmem:[#allocation8 + $0x80] sm:$0xff]
    %v1722 = vld [vmem:[#allocation8 + $0x88] sm:$0xff]
    %v1723 = vld [vmem:[#allocation8 + $0x90] sm:$0xff]
    %v1724 = vld [vmem:[#allocation8 + $0x98] sm:$0xff]
    %v1725 = vld [vmem:[#allocation8 + $0xa0] sm:$0xff]
    %v1726 = vld [vmem:[#allocation8 + $0xa8] sm:$0xff]
    %v1727 = vld [vmem:[#allocation8 + $0xb0] sm:$0xff]
    %v1728 = vld [vmem:[#allocation8 + $0xb8] sm:$0xff]
    %v1729 = vld [vmem:[#allocation8 + $0xc0] sm:$0xff]
    %v1730 = vld [vmem:[#allocation8 + $0xc8] sm:$0xff]
    %v1731 = vld [vmem:[#allocation8 + $0xd0] sm:$0xff]
    %v1732 = vld [vmem:[#allocation8 + $0xd8] sm:$0xff]
    %v1733 = vld [vmem:[#allocation8 + $0xe0] sm:$0xff]
    %v1734 = vld [vmem:[#allocation8 + $0xe8] sm:$0xff]
    %v1735 = vld [vmem:[#allocation8 + $0xf0] sm:$0xff]
    %v1736 = vld [vmem:[#allocation8 + $0xf8] sm:$0xff]
    %v1737 = vld [vmem:[#allocation8 + $0x100] sm:$0xff]
    %v1738 = vld [vmem:[#allocation8 + $0x108] sm:$0xff]
    %v1739 = vld [vmem:[#allocation8 + $0x110] sm:$0xff]
    %v1740 = vld [vmem:[#allocation8 + $0x118] sm:$0xff]
    %v1741 = vld [vmem:[#allocation8 + $0x120] sm:$0xff]
    %v1742 = vld [vmem:[#allocation8 + $0x128] sm:$0xff]
    %v1743 = vld [vmem:[#allocation8 + $0x130] sm:$0xff]
    %v1744 = vld [vmem:[#allocation8 + $0x138] sm:$0xff]
    %v1745 = vld [vmem:[#allocation8 + $0x140] sm:$0xff]
    %v1746 = vld [vmem:[#allocation8 + $0x148] sm:$0xff]
    %v1747 = vld [vmem:[#allocation8 + $0x150] sm:$0xff]
    %v1748 = vld [vmem:[#allocation8 + $0x158] sm:$0xff]
    %v1749 = vld [vmem:[#allocation8 + $0x160] sm:$0xff]
    %v1750 = vld [vmem:[#allocation8 + $0x168] sm:$0xff]
    %v1751 = vld [vmem:[#allocation8 + $0x170] sm:$0xff]
    %v1752 = vld [vmem:[#allocation8 + $0x178] sm:$0xff]
    %v1753 = vld [vmem:[#allocation8 + $0x180] sm:$0xff]
    %v1754 = vld [vmem:[#allocation8 + $0x188] sm:$0xff]
    %v1755 = vld [vmem:[#allocation8 + $0x190] sm:$0xff]
    %v1756 = vld [vmem:[#allocation8 + $0x198] sm:$0xff]
    %v1757 = vld [vmem:[#allocation8 + $0x1a0] sm:$0xff]
    %v1758 = vld [vmem:[#allocation8 + $0x1a8] sm:$0xff]
    %v1759 = vld [vmem:[#allocation8 + $0x1b0] sm:$0xff]
    %v1760 = vld [vmem:[#allocation8 + $0x1b8] sm:$0xff]
    %v1761 = vld [vmem:[#allocation8 + $0x1c0] sm:$0xff]
    %v1762 = vld [vmem:[#allocation8 + $0x1c8] sm:$0xff]
    %v1763 = vld [vmem:[#allocation8 + $0x1d0] sm:$0xff]
    %v1764 = vld [vmem:[#allocation8 + $0x1d8] sm:$0xff]
    %v1765 = vld [vmem:[#allocation8 + $0x1e0] sm:$0xff]
    %v1766 = vld [vmem:[#allocation8 + $0x1e8] sm:$0xff]
    %v1767 = vld [vmem:[#allocation8 + $0x1f0] sm:$0xff]
    %v1768 = vld [vmem:[#allocation8 + $0x1f8] sm:$0xff]
    %v1769 = vld [vmem:[#allocation2] sm:$0xff]
    %v1770 = vld [vmem:[#allocation2 + $0x8] sm:$0xff]
    %v1771 = vld [vmem:[#allocation2 + $0x10] sm:$0xff]
    %v1772 = vld [vmem:[#allocation2 + $0x18] sm:$0xff]
    %1773 = vmatprep.subr.mxu0 %v1766
    %1774 = vmatpush1.msra.mxu0 %v1765
    %1775 = vmatprep.subr.mxu0 %v1762
    %1776 = vmatpush1.msra.mxu0 %v1761
    %1777 = vmatprep.subr.mxu0 %v1758
    %1778 = vmatpush1.msra.mxu0 %v1757
    %1779 = vmatprep.subr.mxu0 %v1754
    %1780 = vmatpush1.msra.mxu0 %v1753
    %1781 = vmatprep.subr.mxu0 %v1750
    %1782 = vmatpush1.msra.mxu0 %v1749
    %1783 = vmatprep.subr.mxu0 %v1746
    %1784 = vmatpush1.msra.mxu0 %v1745
    %1785 = vmatprep.subr.mxu0 %v1742
    %1786 = vmatpush1.msra.mxu0 %v1741
    %1787 = vmatprep.subr.mxu0 %v1738
    %1788 = vmatpush1.msra.mxu0 %v1737
    %1789 = vmatprep.subr.mxu0 %v1734
    %1790 = vmatpush1.msra.mxu0 %v1733
    %1791 = vmatprep.subr.mxu0 %v1730
    %1792 = vmatpush1.msra.mxu0 %v1729
    %1793 = vmatprep.subr.mxu0 %v1726
    %1794 = vmatpush1.msra.mxu0 %v1725
    %1795 = vmatprep.subr.mxu0 %v1722
    %1796 = vmatpush1.msra.mxu0 %v1721
    %1797 = vmatprep.subr.mxu0 %v1718
    %1798 = vmatpush1.msra.mxu0 %v1717
    %1799 = vmatprep.subr.mxu0 %v1714
    %1800 = vmatpush1.msra.mxu0 %v1713
    %1801 = vmatprep.subr.mxu0 %v1710
    %1802 = vmatpush1.msra.mxu0 %v1709
    %1803 = vmatprep.subr.mxu0 %v1706
    %1804 = vmatpush1.msra.mxu0 %v1705
    %1805 = vmatprep.subr.mxu0 0.0
    %1806 = vmatpush2.msra.mxu0 0.0
    %1807 = vmatprep.subr.mxu0 0.0
    %1808 = vmatpush2.msra.mxu0 0.0
    %1809 = vmatprep.subr.mxu0 0.0
    %1810 = vmatpush2.msra.mxu0 0.0
    %1811 = vmatprep.subr.mxu0 0.0
    %1812 = vmatpush2.msra.mxu0 0.0
    %1813 = vmatprep.subr.mxu0 0.0
    %1814 = vmatpush2.msra.mxu0 0.0
    %1815 = vmatprep.subr.mxu0 0.0
    %1816 = vmatpush2.msra.mxu0 0.0
    %1817 = vmatprep.subr.mxu0 0.0
    %1818 = vmatpush2.msra.mxu0 0.0
    %1819 = vmatprep.subr.mxu0 0.0
    %1820 = vmatpush2.msra.mxu0 0.0
    %1821 = vmatprep.subr.mxu0 0.0
    %1822 = vmatpush2.msra.mxu0 0.0
    %1823 = vmatprep.subr.mxu0 0.0
    %1824 = vmatpush2.msra.mxu0 0.0
    %1825 = vmatprep.subr.mxu0 0.0
    %1826 = vmatpush2.msra.mxu0 0.0
    %1827 = vmatprep.subr.mxu0 0.0
    %1828 = vmatpush2.msra.mxu0 0.0
    %1829 = vmatprep.subr.mxu0 0.0
    %1830 = vmatpush2.msra.mxu0 0.0
    %1831 = vmatprep.subr.mxu0 0.0
    %1832 = vmatpush2.msra.mxu0 0.0
    %1833 = vmatprep.subr.mxu0 0.0
    %1834 = vmatpush2.msra.mxu0 0.0
    %1835 = vmatprep.subr.mxu0 0.0
    %1836 = vmatpush2.msra.mxu0 0.0
    %1837 = vmatprep.mubr.f32.mxu0 0.0
    %1838 = vmatmul.mubr.f32.gmra.mxu0 0.0
    %v1839 = vpop.f32.mrf.mxu0
    %v1840 = vadd.f32 0.0, %v1839
    %v1841 = vpop.f32.mrf.mxu0
    %v1842 = vadd.f32 0.0, %v1841
    %1843 = vdwg.mxu0
    %1844 = vmatprep.subr.mxu0 %v1768
    %1845 = vmatpush1.msra.mxu0 %v1767
    %1846 = vmatprep.subr.mxu0 %v1764
    %1847 = vmatpush1.msra.mxu0 %v1763
    %1848 = vmatprep.subr.mxu0 %v1760
    %1849 = vmatpush1.msra.mxu0 %v1759
    %1850 = vmatprep.subr.mxu0 %v1756
    %1851 = vmatpush1.msra.mxu0 %v1755
    %1852 = vmatprep.subr.mxu0 %v1752
    %1853 = vmatpush1.msra.mxu0 %v1751
    %1854 = vmatprep.subr.mxu0 %v1748
    %1855 = vmatpush1.msra.mxu0 %v1747
    %1856 = vmatprep.subr.mxu0 %v1744
    %1857 = vmatpush1.msra.mxu0 %v1743
    %1858 = vmatprep.subr.mxu0 %v1740
    %1859 = vmatpush1.msra.mxu0 %v1739
    %1860 = vmatprep.subr.mxu0 %v1736
    %1861 = vmatpush1.msra.mxu0 %v1735
    %1862 = vmatprep.subr.mxu0 %v1732
    %1863 = vmatpush1.msra.mxu0 %v1731
    %1864 = vmatprep.subr.mxu0 %v1728
    %1865 = vmatpush1.msra.mxu0 %v1727
    %1866 = vmatprep.subr.mxu0 %v1724
    %1867 = vmatpush1.msra.mxu0 %v1723
    %1868 = vmatprep.subr.mxu0 %v1720
    %1869 = vmatpush1.msra.mxu0 %v1719
    %1870 = vmatprep.subr.mxu0 %v1716
    %1871 = vmatpush1.msra.mxu0 %v1715
    %1872 = vmatprep.subr.mxu0 %v1712
    %1873 = vmatpush1.msra.mxu0 %v1711
    %1874 = vmatprep.subr.mxu0 %v1708
    %1875 = vmatpush1.msra.mxu0 %v1707
    %1876 = vmatprep.subr.mxu0 0.0
    %1877 = vmatpush2.msra.mxu0 0.0
    %1878 = vmatprep.subr.mxu0 0.0
    %1879 = vmatpush2.msra.mxu0 0.0
    %1880 = vmatprep.subr.mxu0 0.0
    %1881 = vmatpush2.msra.mxu0 0.0
    %1882 = vmatprep.subr.mxu0 0.0
    %1883 = vmatpush2.msra.mxu0 0.0
    %1884 = vmatprep.subr.mxu0 0.0
    %1885 = vmatpush2.msra.mxu0 0.0
    %1886 = vmatprep.subr.mxu0 0.0
    %1887 = vmatpush2.msra.mxu0 0.0
    %1888 = vmatprep.subr.mxu0 0.0
    %1889 = vmatpush2.msra.mxu0 0.0
    %1890 = vmatprep.subr.mxu0 0.0
    %1891 = vmatpush2.msra.mxu0 0.0
    %1892 = vmatprep.subr.mxu0 0.0
    %1893 = vmatpush2.msra.mxu0 0.0
    %1894 = vmatprep.subr.mxu0 0.0
    %1895 = vmatpush2.msra.mxu0 0.0
    %1896 = vmatprep.subr.mxu0 0.0
    %1897 = vmatpush2.msra.mxu0 0.0
    %1898 = vmatprep.subr.mxu0 0.0
    %1899 = vmatpush2.msra.mxu0 0.0
    %1900 = vmatprep.subr.mxu0 0.0
    %1901 = vmatpush2.msra.mxu0 0.0
    %1902 = vmatprep.subr.mxu0 0.0
    %1903 = vmatpush2.msra.mxu0 0.0
    %1904 = vmatprep.subr.mxu0 0.0
    %1905 = vmatpush2.msra.mxu0 0.0
    %1906 = vmatprep.subr.mxu0 0.0
    %1907 = vmatpush2.msra.mxu0 0.0
    %1908 = vmatprep.mubr.f32.mxu0 0.0
    %1909 = vmatmul.mubr.f32.gmra.mxu0 0.0
    %v1910 = vpop.f32.mrf.mxu0
    %v1911 = vadd.f32 0.0, %v1910
    %v1912 = vpop.f32.mrf.mxu0
    %v1913 = vadd.f32 0.0, %v1912
    %1914 = vdwg.mxu0
    %v1915 = vadd.f32 %v1769, %v1840
    %v1916 = vadd.f32 %v1770, %v1842
    %v1917 = vadd.f32 %v1771, %v1911
    %v1918 = vadd.f32 %v1772, %v1913
    %v1919 = vmul.f32 %v1915, 0.5
    %v1920 = vtanh.pop %v1919
    %v1921 = vmul.f32 %v1920, 0.5
    %v1922 = vadd.f32 %v1921, 0.5
    %v1923 = vmul.f32 %v1916, 0.5
    %v1924 = vtanh.pop %v1923
    %v1925 = vmul.f32 %v1924, 0.5
    %v1926 = vadd.f32 %v1925, 0.5
    %v1927 = vtanh.pop %v1917
    %v1928 = vmul.f32 %v1918, 0.5
    %v1929 = vtanh.pop %v1928
    %v1930 = vmul.f32 %v1929, 0.5
    %v1931 = vadd.f32 %v1930, 0.5
    %v1932 = vmul.f32 %v1926, 0.0
    %v1933 = vmul.f32 %v1922, %v1927
    %v1934 = vadd.f32 %v1932, %v1933
    %v1935 = vtanh.pop %v1934
    %v1936 = vmul.f32 %v1931, %v1935
    %v1937 = vadd.f32 %v1936, 0.0
    %v1938 = vld [vmem:[%s457] sm:$0xff]
    %v1939 = vld [vmem:[%s457 + $0x8] sm:$0xff]
    %v1940 = vld [vmem:[%s457 + $0x10] sm:$0xff]
    %v1941 = vld [vmem:[%s457 + $0x18] sm:$0xff]
    %1942 = vmatprep.subr.mxu0 %v1766
    %1943 = vmatpush1.msra.mxu0 %v1765
    %1944 = vmatprep.subr.mxu0 %v1762
    %1945 = vmatpush1.msra.mxu0 %v1761
    %1946 = vmatprep.subr.mxu0 %v1758
    %1947 = vmatpush1.msra.mxu0 %v1757
    %1948 = vmatprep.subr.mxu0 %v1754
    %1949 = vmatpush1.msra.mxu0 %v1753
    %1950 = vmatprep.subr.mxu0 %v1750
    %1951 = vmatpush1.msra.mxu0 %v1749
    %1952 = vmatprep.subr.mxu0 %v1746
    %1953 = vmatpush1.msra.mxu0 %v1745
    %1954 = vmatprep.subr.mxu0 %v1742
    %1955 = vmatpush1.msra.mxu0 %v1741
    %1956 = vmatprep.subr.mxu0 %v1738
    %1957 = vmatpush1.msra.mxu0 %v1737
    %1958 = vmatprep.subr.mxu0 %v1734
    %1959 = vmatpush1.msra.mxu0 %v1733
    %1960 = vmatprep.subr.mxu0 %v1730
    %1961 = vmatpush1.msra.mxu0 %v1729
    %1962 = vmatprep.subr.mxu0 %v1726
    %1963 = vmatpush1.msra.mxu0 %v1725
    %1964 = vmatprep.subr.mxu0 %v1722
    %1965 = vmatpush1.msra.mxu0 %v1721
    %1966 = vmatprep.subr.mxu0 %v1718
    %1967 = vmatpush1.msra.mxu0 %v1717
    %1968 = vmatprep.subr.mxu0 %v1714
    %1969 = vmatpush1.msra.mxu0 %v1713
    %1970 = vmatprep.subr.mxu0 %v1710
    %1971 = vmatpush1.msra.mxu0 %v1709
    %1972 = vmatprep.subr.mxu0 %v1706
    %1973 = vmatpush1.msra.mxu0 %v1705
    %1974 = vmatprep.subr.mxu0 0.0
    %1975 = vmatpush2.msra.mxu0 0.0
    %1976 = vmatprep.subr.mxu0 0.0
    %1977 = vmatpush2.msra.mxu0 0.0
    %1978 = vmatprep.subr.mxu0 0.0
    %1979 = vmatpush2.msra.mxu0 0.0
    %1980 = vmatprep.subr.mxu0 0.0
    %1981 = vmatpush2.msra.mxu0 0.0
    %1982 = vmatprep.subr.mxu0 0.0
    %1983 = vmatpush2.msra.mxu0 0.0
    %1984 = vmatprep.subr.mxu0 0.0
    %1985 = vmatpush2.msra.mxu0 0.0
    %1986 = vmatprep.subr.mxu0 0.0
    %1987 = vmatpush2.msra.mxu0 0.0
    %1988 = vmatprep.subr.mxu0 0.0
    %1989 = vmatpush2.msra.mxu0 0.0
    %1990 = vmatprep.subr.mxu0 0.0
    %1991 = vmatpush2.msra.mxu0 0.0
    %1992 = vmatprep.subr.mxu0 0.0
    %1993 = vmatpush2.msra.mxu0 0.0
    %1994 = vmatprep.subr.mxu0 0.0
    %1995 = vmatpush2.msra.mxu0 0.0
    %1996 = vmatprep.subr.mxu0 0.0
    %1997 = vmatpush2.msra.mxu0 0.0
    %1998 = vmatprep.subr.mxu0 0.0
    %1999 = vmatpush2.msra.mxu0 0.0
    %2000 = vmatprep.subr.mxu0 0.0
    %2001 = vmatpush2.msra.mxu0 0.0
    %2002 = vmatprep.subr.mxu0 0.0
    %2003 = vmatpush2.msra.mxu0 0.0
    %2004 = vmatprep.subr.mxu0 0.0
    %2005 = vmatpush2.msra.mxu0 0.0
    %2006 = vmatprep.mubr.f32.mxu0 0.0
    %2007 = vmatmul.mubr.f32.gmra.mxu0 %v1936
    %v2008 = vpop.f32.mrf.mxu0
    %v2009 = vadd.f32 0.0, %v2008
    %v2010 = vpop.f32.mrf.mxu0
    %v2011 = vadd.f32 0.0, %v2010
    %2012 = vdwg.mxu0
    %2013 = vmatprep.subr.mxu0 %v1768
    %2014 = vmatpush1.msra.mxu0 %v1767
    %2015 = vmatprep.subr.mxu0 %v1764
    %2016 = vmatpush1.msra.mxu0 %v1763
    %2017 = vmatprep.subr.mxu0 %v1760
    %2018 = vmatpush1.msra.mxu0 %v1759
    %2019 = vmatprep.subr.mxu0 %v1756
    %2020 = vmatpush1.msra.mxu0 %v1755
    %2021 = vmatprep.subr.mxu0 %v1752
    %2022 = vmatpush1.msra.mxu0 %v1751
    %2023 = vmatprep.subr.mxu0 %v1748
    %2024 = vmatpush1.msra.mxu0 %v1747
    %2025 = vmatprep.subr.mxu0 %v1744
    %2026 = vmatpush1.msra.mxu0 %v1743
    %2027 = vmatprep.subr.mxu0 %v1740
    %2028 = vmatpush1.msra.mxu0 %v1739
    %2029 = vmatprep.subr.mxu0 %v1736
    %2030 = vmatpush1.msra.mxu0 %v1735
    %2031 = vmatprep.subr.mxu0 %v1732
    %2032 = vmatpush1.msra.mxu0 %v1731
    %2033 = vmatprep.subr.mxu0 %v1728
    %2034 = vmatpush1.msra.mxu0 %v1727
    %2035 = vmatprep.subr.mxu0 %v1724
    %2036 = vmatpush1.msra.mxu0 %v1723
    %2037 = vmatprep.subr.mxu0 %v1720
    %2038 = vmatpush1.msra.mxu0 %v1719
    %2039 = vmatprep.subr.mxu0 %v1716
    %2040 = vmatpush1.msra.mxu0 %v1715
    %2041 = vmatprep.subr.mxu0 %v1712
    %2042 = vmatpush1.msra.mxu0 %v1711
    %2043 = vmatprep.subr.mxu0 %v1708
    %2044 = vmatpush1.msra.mxu0 %v1707
    %2045 = vmatprep.subr.mxu0 0.0
    %2046 = vmatpush2.msra.mxu0 0.0
    %2047 = vmatprep.subr.mxu0 0.0
    %2048 = vmatpush2.msra.mxu0 0.0
    %2049 = vmatprep.subr.mxu0 0.0
    %2050 = vmatpush2.msra.mxu0 0.0
    %2051 = vmatprep.subr.mxu0 0.0
    %2052 = vmatpush2.msra.mxu0 0.0
    %2053 = vmatprep.subr.mxu0 0.0
    %2054 = vmatpush2.msra.mxu0 0.0
    %2055 = vmatprep.subr.mxu0 0.0
    %2056 = vmatpush2.msra.mxu0 0.0
    %2057 = vmatprep.subr.mxu0 0.0
    %2058 = vmatpush2.msra.mxu0 0.0
    %2059 = vmatprep.subr.mxu0 0.0
    %2060 = vmatpush2.msra.mxu0 0.0
    %2061 = vmatprep.subr.mxu0 0.0
    %2062 = vmatpush2.msra.mxu0 0.0
    %2063 = vmatprep.subr.mxu0 0.0
    %2064 = vmatpush2.msra.mxu0 0.0
    %2065 = vmatprep.subr.mxu0 0.0
    %2066 = vmatpush2.msra.mxu0 0.0
    %2067 = vmatprep.subr.mxu0 0.0
    %2068 = vmatpush2.msra.mxu0 0.0
    %2069 = vmatprep.subr.mxu0 0.0
    %2070 = vmatpush2.msra.mxu0 0.0
    %2071 = vmatprep.subr.mxu0 0.0
    %2072 = vmatpush2.msra.mxu0 0.0
    %2073 = vmatprep.subr.mxu0 0.0
    %2074 = vmatpush2.msra.mxu0 0.0
    %2075 = vmatprep.subr.mxu0 0.0
    %2076 = vmatpush2.msra.mxu0 0.0
    %2077 = vmatprep.mubr.f32.mxu0 0.0
    %2078 = vmatmul.mubr.f32.gmra.mxu0 %v1936
    %v2079 = vpop.f32.mrf.mxu0
    %v2080 = vadd.f32 0.0, %v2079
    %v2081 = vpop.f32.mrf.mxu0
    %v2082 = vadd.f32 0.0, %v2081
    %2083 = vdwg.mxu0
    %v2084 = vadd.f32 %v1938, %v2009
    %v2085 = vadd.f32 %v1939, %v2011
    %v2086 = vadd.f32 %v1940, %v2080
    %v2087 = vadd.f32 %v1941, %v2082
    %v2088 = vmul.f32 %v2084, 0.5
    %v2089 = vtanh.pop %v2088
    %v2090 = vmul.f32 %v2089, 0.5
    %v2091 = vadd.f32 %v2090, 0.5
    %v2092 = vmul.f32 %v2085, 0.5
    %v2093 = vtanh.pop %v2092
    %v2094 = vmul.f32 %v2093, 0.5
    %v2095 = vadd.f32 %v2094, 0.5
    %v2096 = vtanh.pop %v2086
    %v2097 = vmul.f32 %v2087, 0.5
    %v2098 = vtanh.pop %v2097
    %v2099 = vmul.f32 %v2098, 0.5
    %v2100 = vadd.f32 %v2099, 0.5
    %v2101 = vmul.f32 %v2095, %v1934
    %v2102 = vmul.f32 %v2091, %v2096
    %v2103 = vadd.f32 %v2101, %v2102
    %v2104 = vtanh.pop %v2103
    %v2105 = vmul.f32 %v2100, %v2104
    %v2106 = vadd.f32 %v1937, %v2105
    %v2107 = vld [vmem:[%s636] sm:$0xff]
    %v2108 = vld [vmem:[%s636 + $0x8] sm:$0xff]
    %v2109 = vld [vmem:[%s636 + $0x10] sm:$0xff]
    %v2110 = vld [vmem:[%s636 + $0x18] sm:$0xff]
    %2111 = vmatprep.subr.mxu0 %v1766
    %2112 = vmatpush1.msra.mxu0 %v1765
    %2113 = vmatprep.subr.mxu0 %v1762
    %2114 = vmatpush1.msra.mxu0 %v1761
    %2115 = vmatprep.subr.mxu0 %v1758
    %2116 = vmatpush1.msra.mxu0 %v1757
    %2117 = vmatprep.subr.mxu0 %v1754
    %2118 = vmatpush1.msra.mxu0 %v1753
    %2119 = vmatprep.subr.mxu0 %v1750
    %2120 = vmatpush1.msra.mxu0 %v1749
    %2121 = vmatprep.subr.mxu0 %v1746
    %2122 = vmatpush1.msra.mxu0 %v1745
    %2123 = vmatprep.subr.mxu0 %v1742
    %2124 = vmatpush1.msra.mxu0 %v1741
    %2125 = vmatprep.subr.mxu0 %v1738
    %2126 = vmatpush1.msra.mxu0 %v1737
    %2127 = vmatprep.subr.mxu0 %v1734
    %2128 = vmatpush1.msra.mxu0 %v1733
    %2129 = vmatprep.subr.mxu0 %v1730
    %2130 = vmatpush1.msra.mxu0 %v1729
    %2131 = vmatprep.subr.mxu0 %v1726
    %2132 = vmatpush1.msra.mxu0 %v1725
    %2133 = vmatprep.subr.mxu0 %v1722
    %2134 = vmatpush1.msra.mxu0 %v1721
    %2135 = vmatprep.subr.mxu0 %v1718
    %2136 = vmatpush1.msra.mxu0 %v1717
    %2137 = vmatprep.subr.mxu0 %v1714
    %2138 = vmatpush1.msra.mxu0 %v1713
    %2139 = vmatprep.subr.mxu0 %v1710
    %2140 = vmatpush1.msra.mxu0 %v1709
    %2141 = vmatprep.subr.mxu0 %v1706
    %2142 = vmatpush1.msra.mxu0 %v1705
    %2143 = vmatprep.subr.mxu0 0.0
    %2144 = vmatpush2.msra.mxu0 0.0
    %2145 = vmatprep.subr.mxu0 0.0
    %2146 = vmatpush2.msra.mxu0 0.0
    %2147 = vmatprep.subr.mxu0 0.0
    %2148 = vmatpush2.msra.mxu0 0.0
    %2149 = vmatprep.subr.mxu0 0.0
    %2150 = vmatpush2.msra.mxu0 0.0
    %2151 = vmatprep.subr.mxu0 0.0
    %2152 = vmatpush2.msra.mxu0 0.0
    %2153 = vmatprep.subr.mxu0 0.0
    %2154 = vmatpush2.msra.mxu0 0.0
    %2155 = vmatprep.subr.mxu0 0.0
    %2156 = vmatpush2.msra.mxu0 0.0
    %2157 = vmatprep.subr.mxu0 0.0
    %2158 = vmatpush2.msra.mxu0 0.0
    %2159 = vmatprep.subr.mxu0 0.0
    %2160 = vmatpush2.msra.mxu0 0.0
    %2161 = vmatprep.subr.mxu0 0.0
    %2162 = vmatpush2.msra.mxu0 0.0
    %2163 = vmatprep.subr.mxu0 0.0
    %2164 = vmatpush2.msra.mxu0 0.0
    %2165 = vmatprep.subr.mxu0 0.0
    %2166 = vmatpush2.msra.mxu0 0.0
    %2167 = vmatprep.subr.mxu0 0.0
    %2168 = vmatpush2.msra.mxu0 0.0
    %2169 = vmatprep.subr.mxu0 0.0
    %2170 = vmatpush2.msra.mxu0 0.0
    %2171 = vmatprep.subr.mxu0 0.0
    %2172 = vmatpush2.msra.mxu0 0.0
    %2173 = vmatprep.subr.mxu0 0.0
    %2174 = vmatpush2.msra.mxu0 0.0
    %2175 = vmatprep.mubr.f32.mxu0 0.0
    %2176 = vmatmul.mubr.f32.gmra.mxu0 %v2105
    %v2177 = vpop.f32.mrf.mxu0
    %v2178 = vadd.f32 0.0, %v2177
    %v2179 = vpop.f32.mrf.mxu0
    %v2180 = vadd.f32 0.0, %v2179
    %2181 = vdwg.mxu0
    %2182 = vmatprep.subr.mxu0 %v1768
    %2183 = vmatpush1.msra.mxu0 %v1767
    %2184 = vmatprep.subr.mxu0 %v1764
    %2185 = vmatpush1.msra.mxu0 %v1763
    %2186 = vmatprep.subr.mxu0 %v1760
    %2187 = vmatpush1.msra.mxu0 %v1759
    %2188 = vmatprep.subr.mxu0 %v1756
    %2189 = vmatpush1.msra.mxu0 %v1755
    %2190 = vmatprep.subr.mxu0 %v1752
    %2191 = vmatpush1.msra.mxu0 %v1751
    %2192 = vmatprep.subr.mxu0 %v1748
    %2193 = vmatpush1.msra.mxu0 %v1747
    %2194 = vmatprep.subr.mxu0 %v1744
    %2195 = vmatpush1.msra.mxu0 %v1743
    %2196 = vmatprep.subr.mxu0 %v1740
    %2197 = vmatpush1.msra.mxu0 %v1739
    %2198 = vmatprep.subr.mxu0 %v1736
    %2199 = vmatpush1.msra.mxu0 %v1735
    %2200 = vmatprep.subr.mxu0 %v1732
    %2201 = vmatpush1.msra.mxu0 %v1731
    %2202 = vmatprep.subr.mxu0 %v1728
    %2203 = vmatpush1.msra.mxu0 %v1727
    %2204 = vmatprep.subr.mxu0 %v1724
    %2205 = vmatpush1.msra.mxu0 %v1723
    %2206 = vmatprep.subr.mxu0 %v1720
    %2207 = vmatpush1.msra.mxu0 %v1719
    %2208 = vmatprep.subr.mxu0 %v1716
    %2209 = vmatpush1.msra.mxu0 %v1715
    %2210 = vmatprep.subr.mxu0 %v1712
    %2211 = vmatpush1.msra.mxu0 %v1711
    %2212 = vmatprep.subr.mxu0 %v1708
    %2213 = vmatpush1.msra.mxu0 %v1707
    %2214 = vmatprep.subr.mxu0 0.0
    %2215 = vmatpush2.msra.mxu0 0.0
    %2216 = vmatprep.subr.mxu0 0.0
    %2217 = vmatpush2.msra.mxu0 0.0
    %2218 = vmatprep.subr.mxu0 0.0
    %2219 = vmatpush2.msra.mxu0 0.0
    %2220 = vmatprep.subr.mxu0 0.0
    %2221 = vmatpush2.msra.mxu0 0.0
    %2222 = vmatprep.subr.mxu0 0.0
    %2223 = vmatpush2.msra.mxu0 0.0
    %2224 = vmatprep.subr.mxu0 0.0
    %2225 = vmatpush2.msra.mxu0 0.0
    %2226 = vmatprep.subr.mxu0 0.0
    %2227 = vmatpush2.msra.mxu0 0.0
    %2228 = vmatprep.subr.mxu0 0.0
    %2229 = vmatpush2.msra.mxu0 0.0
    %2230 = vmatprep.subr.mxu0 0.0
    %2231 = vmatpush2.msra.mxu0 0.0
    %2232 = vmatprep.subr.mxu0 0.0
    %2233 = vmatpush2.msra.mxu0 0.0
    %2234 = vmatprep.subr.mxu0 0.0
    %2235 = vmatpush2.msra.mxu0 0.0
    %2236 = vmatprep.subr.mxu0 0.0
    %2237 = vmatpush2.msra.mxu0 0.0
    %2238 = vmatprep.subr.mxu0 0.0
    %2239 = vmatpush2.msra.mxu0 0.0
    %2240 = vmatprep.subr.mxu0 0.0
    %2241 = vmatpush2.msra.mxu0 0.0
    %2242 = vmatprep.subr.mxu0 0.0
    %2243 = vmatpush2.msra.mxu0 0.0
    %2244 = vmatprep.subr.mxu0 0.0
    %2245 = vmatpush2.msra.mxu0 0.0
    %2246 = vmatprep.mubr.f32.mxu0 0.0
    %2247 = vmatmul.mubr.f32.gmra.mxu0 %v2105
    %v2248 = vpop.f32.mrf.mxu0
    %v2249 = vadd.f32 0.0, %v2248
    %v2250 = vpop.f32.mrf.mxu0
    %v2251 = vadd.f32 0.0, %v2250
    %2252 = vdwg.mxu0
    %v2253 = vadd.f32 %v2107, %v2178
    %v2254 = vadd.f32 %v2108, %v2180
    %v2255 = vadd.f32 %v2109, %v2249
    %v2256 = vadd.f32 %v2110, %v2251
    %v2257 = vmul.f32 %v2253, 0.5
    %v2258 = vtanh.pop %v2257
    %v2259 = vmul.f32 %v2258, 0.5
    %v2260 = vadd.f32 %v2259, 0.5
    %v2261 = vmul.f32 %v2254, 0.5
    %v2262 = vtanh.pop %v2261
    %v2263 = vmul.f32 %v2262, 0.5
    %v2264 = vadd.f32 %v2263, 0.5
    %v2265 = vtanh.pop %v2255
    %v2266 = vmul.f32 %v2256, 0.5
    %v2267 = vtanh.pop %v2266
    %v2268 = vmul.f32 %v2267, 0.5
    %v2269 = vadd.f32 %v2268, 0.5
    %v2270 = vmul.f32 %v2264, %v2103
    %v2271 = vmul.f32 %v2260, %v2265
    %v2272 = vadd.f32 %v2270, %v2271
    %v2273 = vtanh.pop %v2272
    %v2274 = vmul.f32 %v2269, %v2273
    %v2275 = vadd.f32 %v2106, %v2274
    %v2276 = vld [vmem:[%s815] sm:$0xff]
    %v2277 = vld [vmem:[%s815 + $0x8] sm:$0xff]
    %v2278 = vld [vmem:[%s815 + $0x10] sm:$0xff]
    %v2279 = vld [vmem:[%s815 + $0x18] sm:$0xff]
    %2280 = vmatprep.subr.mxu0 %v1766
    %2281 = vmatpush1.msra.mxu0 %v1765
    %2282 = vmatprep.subr.mxu0 %v1762
    %2283 = vmatpush1.msra.mxu0 %v1761
    %2284 = vmatprep.subr.mxu0 %v1758
    %2285 = vmatpush1.msra.mxu0 %v1757
    %2286 = vmatprep.subr.mxu0 %v1754
    %2287 = vmatpush1.msra.mxu0 %v1753
    %2288 = vmatprep.subr.mxu0 %v1750
    %2289 = vmatpush1.msra.mxu0 %v1749
    %2290 = vmatprep.subr.mxu0 %v1746
    %2291 = vmatpush1.msra.mxu0 %v1745
    %2292 = vmatprep.subr.mxu0 %v1742
    %2293 = vmatpush1.msra.mxu0 %v1741
    %2294 = vmatprep.subr.mxu0 %v1738
    %2295 = vmatpush1.msra.mxu0 %v1737
    %2296 = vmatprep.subr.mxu0 %v1734
    %2297 = vmatpush1.msra.mxu0 %v1733
    %2298 = vmatprep.subr.mxu0 %v1730
    %2299 = vmatpush1.msra.mxu0 %v1729
    %2300 = vmatprep.subr.mxu0 %v1726
    %2301 = vmatpush1.msra.mxu0 %v1725
    %2302 = vmatprep.subr.mxu0 %v1722
    %2303 = vmatpush1.msra.mxu0 %v1721
    %2304 = vmatprep.subr.mxu0 %v1718
    %2305 = vmatpush1.msra.mxu0 %v1717
    %2306 = vmatprep.subr.mxu0 %v1714
    %2307 = vmatpush1.msra.mxu0 %v1713
    %2308 = vmatprep.subr.mxu0 %v1710
    %2309 = vmatpush1.msra.mxu0 %v1709
    %2310 = vmatprep.subr.mxu0 %v1706
    %2311 = vmatpush1.msra.mxu0 %v1705
    %2312 = vmatprep.subr.mxu0 0.0
    %2313 = vmatpush2.msra.mxu0 0.0
    %2314 = vmatprep.subr.mxu0 0.0
    %2315 = vmatpush2.msra.mxu0 0.0
    %2316 = vmatprep.subr.mxu0 0.0
    %2317 = vmatpush2.msra.mxu0 0.0
    %2318 = vmatprep.subr.mxu0 0.0
    %2319 = vmatpush2.msra.mxu0 0.0
    %2320 = vmatprep.subr.mxu0 0.0
    %2321 = vmatpush2.msra.mxu0 0.0
    %2322 = vmatprep.subr.mxu0 0.0
    %2323 = vmatpush2.msra.mxu0 0.0
    %2324 = vmatprep.subr.mxu0 0.0
    %2325 = vmatpush2.msra.mxu0 0.0
    %2326 = vmatprep.subr.mxu0 0.0
    %2327 = vmatpush2.msra.mxu0 0.0
    %2328 = vmatprep.subr.mxu0 0.0
    %2329 = vmatpush2.msra.mxu0 0.0
    %2330 = vmatprep.subr.mxu0 0.0
    %2331 = vmatpush2.msra.mxu0 0.0
    %2332 = vmatprep.subr.mxu0 0.0
    %2333 = vmatpush2.msra.mxu0 0.0
    %2334 = vmatprep.subr.mxu0 0.0
    %2335 = vmatpush2.msra.mxu0 0.0
    %2336 = vmatprep.subr.mxu0 0.0
    %2337 = vmatpush2.msra.mxu0 0.0
    %2338 = vmatprep.subr.mxu0 0.0
    %2339 = vmatpush2.msra.mxu0 0.0
    %2340 = vmatprep.subr.mxu0 0.0
    %2341 = vmatpush2.msra.mxu0 0.0
    %2342 = vmatprep.subr.mxu0 0.0
    %2343 = vmatpush2.msra.mxu0 0.0
    %2344 = vmatprep.mubr.f32.mxu0 0.0
    %2345 = vmatmul.mubr.f32.gmra.mxu0 %v2274
    %v2346 = vpop.f32.mrf.mxu0
    %v2347 = vadd.f32 0.0, %v2346
    %v2348 = vpop.f32.mrf.mxu0
    %v2349 = vadd.f32 0.0, %v2348
    %2350 = vdwg.mxu0
    %2351 = vmatprep.subr.mxu0 %v1768
    %2352 = vmatpush1.msra.mxu0 %v1767
    %2353 = vmatprep.subr.mxu0 %v1764
    %2354 = vmatpush1.msra.mxu0 %v1763
    %2355 = vmatprep.subr.mxu0 %v1760
    %2356 = vmatpush1.msra.mxu0 %v1759
    %2357 = vmatprep.subr.mxu0 %v1756
    %2358 = vmatpush1.msra.mxu0 %v1755
    %2359 = vmatprep.subr.mxu0 %v1752
    %2360 = vmatpush1.msra.mxu0 %v1751
    %2361 = vmatprep.subr.mxu0 %v1748
    %2362 = vmatpush1.msra.mxu0 %v1747
    %2363 = vmatprep.subr.mxu0 %v1744
    %2364 = vmatpush1.msra.mxu0 %v1743
    %2365 = vmatprep.subr.mxu0 %v1740
    %2366 = vmatpush1.msra.mxu0 %v1739
    %2367 = vmatprep.subr.mxu0 %v1736
    %2368 = vmatpush1.msra.mxu0 %v1735
    %2369 = vmatprep.subr.mxu0 %v1732
    %2370 = vmatpush1.msra.mxu0 %v1731
    %2371 = vmatprep.subr.mxu0 %v1728
    %2372 = vmatpush1.msra.mxu0 %v1727
    %2373 = vmatprep.subr.mxu0 %v1724
    %2374 = vmatpush1.msra.mxu0 %v1723
    %2375 = vmatprep.subr.mxu0 %v1720
    %2376 = vmatpush1.msra.mxu0 %v1719
    %2377 = vmatprep.subr.mxu0 %v1716
    %2378 = vmatpush1.msra.mxu0 %v1715
    %2379 = vmatprep.subr.mxu0 %v1712
    %2380 = vmatpush1.msra.mxu0 %v1711
    %2381 = vmatprep.subr.mxu0 %v1708
    %2382 = vmatpush1.msra.mxu0 %v1707
    %2383 = vmatprep.subr.mxu0 0.0
    %2384 = vmatpush2.msra.mxu0 0.0
    %2385 = vmatprep.subr.mxu0 0.0
    %2386 = vmatpush2.msra.mxu0 0.0
    %2387 = vmatprep.subr.mxu0 0.0
    %2388 = vmatpush2.msra.mxu0 0.0
    %2389 = vmatprep.subr.mxu0 0.0
    %2390 = vmatpush2.msra.mxu0 0.0
    %2391 = vmatprep.subr.mxu0 0.0
    %2392 = vmatpush2.msra.mxu0 0.0
    %2393 = vmatprep.subr.mxu0 0.0
    %2394 = vmatpush2.msra.mxu0 0.0
    %2395 = vmatprep.subr.mxu0 0.0
    %2396 = vmatpush2.msra.mxu0 0.0
    %2397 = vmatprep.subr.mxu0 0.0
    %2398 = vmatpush2.msra.mxu0 0.0
    %2399 = vmatprep.subr.mxu0 0.0
    %2400 = vmatpush2.msra.mxu0 0.0
    %2401 = vmatprep.subr.mxu0 0.0
    %2402 = vmatpush2.msra.mxu0 0.0
    %2403 = vmatprep.subr.mxu0 0.0
    %2404 = vmatpush2.msra.mxu0 0.0
    %2405 = vmatprep.subr.mxu0 0.0
    %2406 = vmatpush2.msra.mxu0 0.0
    %2407 = vmatprep.subr.mxu0 0.0
    %2408 = vmatpush2.msra.mxu0 0.0
    %2409 = vmatprep.subr.mxu0 0.0
    %2410 = vmatpush2.msra.mxu0 0.0
    %2411 = vmatprep.subr.mxu0 0.0
    %2412 = vmatpush2.msra.mxu0 0.0
    %2413 = vmatprep.subr.mxu0 0.0
    %2414 = vmatpush2.msra.mxu0 0.0
    %2415 = vmatprep.mubr.f32.mxu0 0.0
    %2416 = vmatmul.mubr.f32.gmra.mxu0 %v2274
    %v2417 = vpop.f32.mrf.mxu0
    %v2418 = vadd.f32 0.0, %v2417
    %v2419 = vpop.f32.mrf.mxu0
    %v2420 = vadd.f32 0.0, %v2419
    %2421 = vdwg.mxu0
    %v2422 = vadd.f32 %v2276, %v2347
    %v2423 = vadd.f32 %v2277, %v2349
    %v2424 = vadd.f32 %v2278, %v2418
    %v2425 = vadd.f32 %v2279, %v2420
    %v2426 = vmul.f32 %v2422, 0.5
    %v2427 = vtanh.pop %v2426
    %v2428 = vmul.f32 %v2427, 0.5
    %v2429 = vadd.f32 %v2428, 0.5
    %v2430 = vmul.f32 %v2423, 0.5
    %v2431 = vtanh.pop %v2430
    %v2432 = vmul.f32 %v2431, 0.5
    %v2433 = vadd.f32 %v2432, 0.5
    %v2434 = vtanh.pop %v2424
    %v2435 = vmul.f32 %v2425, 0.5
    %v2436 = vtanh.pop %v2435
    %v2437 = vmul.f32 %v2436, 0.5
    %v2438 = vadd.f32 %v2437, 0.5
    %v2439 = vmul.f32 %v2433, %v2272
    %v2440 = vmul.f32 %v2429, %v2434
    %v2441 = vadd.f32 %v2439, %v2440
    %v2442 = vtanh.pop %v2441
    %v2443 = vmul.f32 %v2438, %v2442
    %v2444 = vadd.f32 %v2275, %v2443
    %v2445 = vld [vmem:[%s994] sm:$0xff]
    %v2446 = vld [vmem:[%s994 + $0x8] sm:$0xff]
    %v2447 = vld [vmem:[%s994 + $0x10] sm:$0xff]
    %v2448 = vld [vmem:[%s994 + $0x18] sm:$0xff]
    %2449 = vmatprep.subr.mxu0 %v1766
    %2450 = vmatpush1.msra.mxu0 %v1765
    %2451 = vmatprep.subr.mxu0 %v1762
    %2452 = vmatpush1.msra.mxu0 %v1761
    %2453 = vmatprep.subr.mxu0 %v1758
    %2454 = vmatpush1.msra.mxu0 %v1757
    %2455 = vmatprep.subr.mxu0 %v1754
    %2456 = vmatpush1.msra.mxu0 %v1753
    %2457 = vmatprep.subr.mxu0 %v1750
    %2458 = vmatpush1.msra.mxu0 %v1749
    %2459 = vmatprep.subr.mxu0 %v1746
    %2460 = vmatpush1.msra.mxu0 %v1745
    %2461 = vmatprep.subr.mxu0 %v1742
    %2462 = vmatpush1.msra.mxu0 %v1741
    %2463 = vmatprep.subr.mxu0 %v1738
    %2464 = vmatpush1.msra.mxu0 %v1737
    %2465 = vmatprep.subr.mxu0 %v1734
    %2466 = vmatpush1.msra.mxu0 %v1733
    %2467 = vmatprep.subr.mxu0 %v1730
    %2468 = vmatpush1.msra.mxu0 %v1729
    %2469 = vmatprep.subr.mxu0 %v1726
    %2470 = vmatpush1.msra.mxu0 %v1725
    %2471 = vmatprep.subr.mxu0 %v1722
    %2472 = vmatpush1.msra.mxu0 %v1721
    %2473 = vmatprep.subr.mxu0 %v1718
    %2474 = vmatpush1.msra.mxu0 %v1717
    %2475 = vmatprep.subr.mxu0 %v1714
    %2476 = vmatpush1.msra.mxu0 %v1713
    %2477 = vmatprep.subr.mxu0 %v1710
    %2478 = vmatpush1.msra.mxu0 %v1709
    %2479 = vmatprep.subr.mxu0 %v1706
    %2480 = vmatpush1.msra.mxu0 %v1705
    %2481 = vmatprep.subr.mxu0 0.0
    %2482 = vmatpush2.msra.mxu0 0.0
    %2483 = vmatprep.subr.mxu0 0.0
    %2484 = vmatpush2.msra.mxu0 0.0
    %2485 = vmatprep.subr.mxu0 0.0
    %2486 = vmatpush2.msra.mxu0 0.0
    %2487 = vmatprep.subr.mxu0 0.0
    %2488 = vmatpush2.msra.mxu0 0.0
    %2489 = vmatprep.subr.mxu0 0.0
    %2490 = vmatpush2.msra.mxu0 0.0
    %2491 = vmatprep.subr.mxu0 0.0
    %2492 = vmatpush2.msra.mxu0 0.0
    %2493 = vmatprep.subr.mxu0 0.0
    %2494 = vmatpush2.msra.mxu0 0.0
    %2495 = vmatprep.subr.mxu0 0.0
    %2496 = vmatpush2.msra.mxu0 0.0
    %2497 = vmatprep.subr.mxu0 0.0
    %2498 = vmatpush2.msra.mxu0 0.0
    %2499 = vmatprep.subr.mxu0 0.0
    %2500 = vmatpush2.msra.mxu0 0.0
    %2501 = vmatprep.subr.mxu0 0.0
    %2502 = vmatpush2.msra.mxu0 0.0
    %2503 = vmatprep.subr.mxu0 0.0
    %2504 = vmatpush2.msra.mxu0 0.0
    %2505 = vmatprep.subr.mxu0 0.0
    %2506 = vmatpush2.msra.mxu0 0.0
    %2507 = vmatprep.subr.mxu0 0.0
    %2508 = vmatpush2.msra.mxu0 0.0
    %2509 = vmatprep.subr.mxu0 0.0
    %2510 = vmatpush2.msra.mxu0 0.0
    %2511 = vmatprep.subr.mxu0 0.0
    %2512 = vmatpush2.msra.mxu0 0.0
    %2513 = vmatprep.mubr.f32.mxu0 0.0
    %2514 = vmatmul.mubr.f32.gmra.mxu0 %v2443
    %v2515 = vpop.f32.mrf.mxu0
    %v2516 = vadd.f32 0.0, %v2515
    %v2517 = vpop.f32.mrf.mxu0
    %v2518 = vadd.f32 0.0, %v2517
    %2519 = vdwg.mxu0
    %2520 = vmatprep.subr.mxu0 %v1768
    %2521 = vmatpush1.msra.mxu0 %v1767
    %2522 = vmatprep.subr.mxu0 %v1764
    %2523 = vmatpush1.msra.mxu0 %v1763
    %2524 = vmatprep.subr.mxu0 %v1760
    %2525 = vmatpush1.msra.mxu0 %v1759
    %2526 = vmatprep.subr.mxu0 %v1756
    %2527 = vmatpush1.msra.mxu0 %v1755
    %2528 = vmatprep.subr.mxu0 %v1752
    %2529 = vmatpush1.msra.mxu0 %v1751
    %2530 = vmatprep.subr.mxu0 %v1748
    %2531 = vmatpush1.msra.mxu0 %v1747
    %2532 = vmatprep.subr.mxu0 %v1744
    %2533 = vmatpush1.msra.mxu0 %v1743
    %2534 = vmatprep.subr.mxu0 %v1740
    %2535 = vmatpush1.msra.mxu0 %v1739
    %2536 = vmatprep.subr.mxu0 %v1736
    %2537 = vmatpush1.msra.mxu0 %v1735
    %2538 = vmatprep.subr.mxu0 %v1732
    %2539 = vmatpush1.msra.mxu0 %v1731
    %2540 = vmatprep.subr.mxu0 %v1728
    %2541 = vmatpush1.msra.mxu0 %v1727
    %2542 = vmatprep.subr.mxu0 %v1724
    %2543 = vmatpush1.msra.mxu0 %v1723
    %2544 = vmatprep.subr.mxu0 %v1720
    %2545 = vmatpush1.msra.mxu0 %v1719
    %2546 = vmatprep.subr.mxu0 %v1716
    %2547 = vmatpush1.msra.mxu0 %v1715
    %2548 = vmatprep.subr.mxu0 %v1712
    %2549 = vmatpush1.msra.mxu0 %v1711
    %2550 = vmatprep.subr.mxu0 %v1708
    %2551 = vmatpush1.msra.mxu0 %v1707
    %2552 = vmatprep.subr.mxu0 0.0
    %2553 = vmatpush2.msra.mxu0 0.0
    %2554 = vmatprep.subr.mxu0 0.0
    %2555 = vmatpush2.msra.mxu0 0.0
    %2556 = vmatprep.subr.mxu0 0.0
    %2557 = vmatpush2.msra.mxu0 0.0
    %2558 = vmatprep.subr.mxu0 0.0
    %2559 = vmatpush2.msra.mxu0 0.0
    %2560 = vmatprep.subr.mxu0 0.0
    %2561 = vmatpush2.msra.mxu0 0.0
    %2562 = vmatprep.subr.mxu0 0.0
    %2563 = vmatpush2.msra.mxu0 0.0
    %2564 = vmatprep.subr.mxu0 0.0
    %2565 = vmatpush2.msra.mxu0 0.0
    %2566 = vmatprep.subr.mxu0 0.0
    %2567 = vmatpush2.msra.mxu0 0.0
    %2568 = vmatprep.subr.mxu0 0.0
    %2569 = vmatpush2.msra.mxu0 0.0
    %2570 = vmatprep.subr.mxu0 0.0
    %2571 = vmatpush2.msra.mxu0 0.0
    %2572 = vmatprep.subr.mxu0 0.0
    %2573 = vmatpush2.msra.mxu0 0.0
    %2574 = vmatprep.subr.mxu0 0.0
    %2575 = vmatpush2.msra.mxu0 0.0
    %2576 = vmatprep.subr.mxu0 0.0
    %2577 = vmatpush2.msra.mxu0 0.0
    %2578 = vmatprep.subr.mxu0 0.0
    %2579 = vmatpush2.msra.mxu0 0.0
    %2580 = vmatprep.subr.mxu0 0.0
    %2581 = vmatpush2.msra.mxu0 0.0
    %2582 = vmatprep.subr.mxu0 0.0
    %2583 = vmatpush2.msra.mxu0 0.0
    %2584 = vmatprep.mubr.f32.mxu0 0.0
    %2585 = vmatmul.mubr.f32.gmra.mxu0 %v2443
    %v2586 = vpop.f32.mrf.mxu0
    %v2587 = vadd.f32 0.0, %v2586
    %v2588 = vpop.f32.mrf.mxu0
    %v2589 = vadd.f32 0.0, %v2588
    %2590 = vdwg.mxu0
    %v2591 = vadd.f32 %v2445, %v2516
    %v2592 = vadd.f32 %v2446, %v2518
    %v2593 = vadd.f32 %v2447, %v2587
    %v2594 = vadd.f32 %v2448, %v2589
    %v2595 = vmul.f32 %v2591, 0.5
    %v2596 = vtanh.pop %v2595
    %v2597 = vmul.f32 %v2596, 0.5
    %v2598 = vadd.f32 %v2597, 0.5
    %v2599 = vmul.f32 %v2592, 0.5
    %v2600 = vtanh.pop %v2599
    %v2601 = vmul.f32 %v2600, 0.5
    %v2602 = vadd.f32 %v2601, 0.5
    %v2603 = vtanh.pop %v2593
    %v2604 = vmul.f32 %v2594, 0.5
    %v2605 = vtanh.pop %v2604
    %v2606 = vmul.f32 %v2605, 0.5
    %v2607 = vadd.f32 %v2606, 0.5
    %v2608 = vmul.f32 %v2602, %v2441
    %v2609 = vmul.f32 %v2598, %v2603
    %v2610 = vadd.f32 %v2608, %v2609
    %v2611 = vtanh.pop %v2610
    %v2612 = vmul.f32 %v2607, %v2611
    %v2613 = vadd.f32 %v2444, %v2612
    %v2614 = vld [vmem:[%s1173] sm:$0xff]
    %v2615 = vld [vmem:[%s1173 + $0x8] sm:$0xff]
    %v2616 = vld [vmem:[%s1173 + $0x10] sm:$0xff]
    %v2617 = vld [vmem:[%s1173 + $0x18] sm:$0xff]
    %2618 = vmatprep.subr.mxu0 %v1766
    %2619 = vmatpush1.msra.mxu0 %v1765
    %2620 = vmatprep.subr.mxu0 %v1762
    %2621 = vmatpush1.msra.mxu0 %v1761
    %2622 = vmatprep.subr.mxu0 %v1758
    %2623 = vmatpush1.msra.mxu0 %v1757
    %2624 = vmatprep.subr.mxu0 %v1754
    %2625 = vmatpush1.msra.mxu0 %v1753
    %2626 = vmatprep.subr.mxu0 %v1750
    %2627 = vmatpush1.msra.mxu0 %v1749
    %2628 = vmatprep.subr.mxu0 %v1746
    %2629 = vmatpush1.msra.mxu0 %v1745
    %2630 = vmatprep.subr.mxu0 %v1742
    %2631 = vmatpush1.msra.mxu0 %v1741
    %2632 = vmatprep.subr.mxu0 %v1738
    %2633 = vmatpush1.msra.mxu0 %v1737
    %2634 = vmatprep.subr.mxu0 %v1734
    %2635 = vmatpush1.msra.mxu0 %v1733
    %2636 = vmatprep.subr.mxu0 %v1730
    %2637 = vmatpush1.msra.mxu0 %v1729
    %2638 = vmatprep.subr.mxu0 %v1726
    %2639 = vmatpush1.msra.mxu0 %v1725
    %2640 = vmatprep.subr.mxu0 %v1722
    %2641 = vmatpush1.msra.mxu0 %v1721
    %2642 = vmatprep.subr.mxu0 %v1718
    %2643 = vmatpush1.msra.mxu0 %v1717
    %2644 = vmatprep.subr.mxu0 %v1714
    %2645 = vmatpush1.msra.mxu0 %v1713
    %2646 = vmatprep.subr.mxu0 %v1710
    %2647 = vmatpush1.msra.mxu0 %v1709
    %2648 = vmatprep.subr.mxu0 %v1706
    %2649 = vmatpush1.msra.mxu0 %v1705
    %2650 = vmatprep.subr.mxu0 0.0
    %2651 = vmatpush2.msra.mxu0 0.0
    %2652 = vmatprep.subr.mxu0 0.0
    %2653 = vmatpush2.msra.mxu0 0.0
    %2654 = vmatprep.subr.mxu0 0.0
    %2655 = vmatpush2.msra.mxu0 0.0
    %2656 = vmatprep.subr.mxu0 0.0
    %2657 = vmatpush2.msra.mxu0 0.0
    %2658 = vmatprep.subr.mxu0 0.0
    %2659 = vmatpush2.msra.mxu0 0.0
    %2660 = vmatprep.subr.mxu0 0.0
    %2661 = vmatpush2.msra.mxu0 0.0
    %2662 = vmatprep.subr.mxu0 0.0
    %2663 = vmatpush2.msra.mxu0 0.0
    %2664 = vmatprep.subr.mxu0 0.0
    %2665 = vmatpush2.msra.mxu0 0.0
    %2666 = vmatprep.subr.mxu0 0.0
    %2667 = vmatpush2.msra.mxu0 0.0
    %2668 = vmatprep.subr.mxu0 0.0
    %2669 = vmatpush2.msra.mxu0 0.0
    %2670 = vmatprep.subr.mxu0 0.0
    %2671 = vmatpush2.msra.mxu0 0.0
    %2672 = vmatprep.subr.mxu0 0.0
    %2673 = vmatpush2.msra.mxu0 0.0
    %2674 = vmatprep.subr.mxu0 0.0
    %2675 = vmatpush2.msra.mxu0 0.0
    %2676 = vmatprep.subr.mxu0 0.0
    %2677 = vmatpush2.msra.mxu0 0.0
    %2678 = vmatprep.subr.mxu0 0.0
    %2679 = vmatpush2.msra.mxu0 0.0
    %2680 = vmatprep.subr.mxu0 0.0
    %2681 = vmatpush2.msra.mxu0 0.0
    %2682 = vmatprep.mubr.f32.mxu0 0.0
    %2683 = vmatmul.mubr.f32.gmra.mxu0 %v2612
    %v2684 = vpop.f32.mrf.mxu0
    %v2685 = vadd.f32 0.0, %v2684
    %v2686 = vpop.f32.mrf.mxu0
    %v2687 = vadd.f32 0.0, %v2686
    %2688 = vdwg.mxu0
    %2689 = vmatprep.subr.mxu0 %v1768
    %2690 = vmatpush1.msra.mxu0 %v1767
    %2691 = vmatprep.subr.mxu0 %v1764
    %2692 = vmatpush1.msra.mxu0 %v1763
    %2693 = vmatprep.subr.mxu0 %v1760
    %2694 = vmatpush1.msra.mxu0 %v1759
    %2695 = vmatprep.subr.mxu0 %v1756
    %2696 = vmatpush1.msra.mxu0 %v1755
    %2697 = vmatprep.subr.mxu0 %v1752
    %2698 = vmatpush1.msra.mxu0 %v1751
    %2699 = vmatprep.subr.mxu0 %v1748
    %2700 = vmatpush1.msra.mxu0 %v1747
    %2701 = vmatprep.subr.mxu0 %v1744
    %2702 = vmatpush1.msra.mxu0 %v1743
    %2703 = vmatprep.subr.mxu0 %v1740
    %2704 = vmatpush1.msra.mxu0 %v1739
    %2705 = vmatprep.subr.mxu0 %v1736
    %2706 = vmatpush1.msra.mxu0 %v1735
    %2707 = vmatprep.subr.mxu0 %v1732
    %2708 = vmatpush1.msra.mxu0 %v1731
    %2709 = vmatprep.subr.mxu0 %v1728
    %2710 = vmatpush1.msra.mxu0 %v1727
    %2711 = vmatprep.subr.mxu0 %v1724
    %2712 = vmatpush1.msra.mxu0 %v1723
    %2713 = vmatprep.subr.mxu0 %v1720
    %2714 = vmatpush1.msra.mxu0 %v1719
    %2715 = vmatprep.subr.mxu0 %v1716
    %2716 = vmatpush1.msra.mxu0 %v1715
    %2717 = vmatprep.subr.mxu0 %v1712
    %2718 = vmatpush1.msra.mxu0 %v1711
    %2719 = vmatprep.subr.mxu0 %v1708
    %2720 = vmatpush1.msra.mxu0 %v1707
    %2721 = vmatprep.subr.mxu0 0.0
    %2722 = vmatpush2.msra.mxu0 0.0
    %2723 = vmatprep.subr.mxu0 0.0
    %2724 = vmatpush2.msra.mxu0 0.0
    %2725 = vmatprep.subr.mxu0 0.0
    %2726 = vmatpush2.msra.mxu0 0.0
    %2727 = vmatprep.subr.mxu0 0.0
    %2728 = vmatpush2.msra.mxu0 0.0
    %2729 = vmatprep.subr.mxu0 0.0
    %2730 = vmatpush2.msra.mxu0 0.0
    %2731 = vmatprep.subr.mxu0 0.0
    %2732 = vmatpush2.msra.mxu0 0.0
    %2733 = vmatprep.subr.mxu0 0.0
    %2734 = vmatpush2.msra.mxu0 0.0
    %2735 = vmatprep.subr.mxu0 0.0
    %2736 = vmatpush2.msra.mxu0 0.0
    %2737 = vmatprep.subr.mxu0 0.0
    %2738 = vmatpush2.msra.mxu0 0.0
    %2739 = vmatprep.subr.mxu0 0.0
    %2740 = vmatpush2.msra.mxu0 0.0
    %2741 = vmatprep.subr.mxu0 0.0
    %2742 = vmatpush2.msra.mxu0 0.0
    %2743 = vmatprep.subr.mxu0 0.0
    %2744 = vmatpush2.msra.mxu0 0.0
    %2745 = vmatprep.subr.mxu0 0.0
    %2746 = vmatpush2.msra.mxu0 0.0
    %2747 = vmatprep.subr.mxu0 0.0
    %2748 = vmatpush2.msra.mxu0 0.0
    %2749 = vmatprep.subr.mxu0 0.0
    %2750 = vmatpush2.msra.mxu0 0.0
    %2751 = vmatprep.subr.mxu0 0.0
    %2752 = vmatpush2.msra.mxu0 0.0
    %2753 = vmatprep.mubr.f32.mxu0 0.0
    %2754 = vmatmul.mubr.f32.gmra.mxu0 %v2612
    %v2755 = vpop.f32.mrf.mxu0
    %v2756 = vadd.f32 0.0, %v2755
    %v2757 = vpop.f32.mrf.mxu0
    %v2758 = vadd.f32 0.0, %v2757
    %2759 = vdwg.mxu0
    %v2760 = vadd.f32 %v2614, %v2685
    %v2761 = vadd.f32 %v2615, %v2687
    %v2762 = vadd.f32 %v2616, %v2756
    %v2763 = vadd.f32 %v2617, %v2758
    %v2764 = vmul.f32 %v2760, 0.5
    %v2765 = vtanh.pop %v2764
    %v2766 = vmul.f32 %v2765, 0.5
    %v2767 = vadd.f32 %v2766, 0.5
    %v2768 = vmul.f32 %v2761, 0.5
    %v2769 = vtanh.pop %v2768
    %v2770 = vmul.f32 %v2769, 0.5
    %v2771 = vadd.f32 %v2770, 0.5
    %v2772 = vtanh.pop %v2762
    %v2773 = vmul.f32 %v2763, 0.5
    %v2774 = vtanh.pop %v2773
    %v2775 = vmul.f32 %v2774, 0.5
    %v2776 = vadd.f32 %v2775, 0.5
    %v2777 = vmul.f32 %v2771, %v2610
    %v2778 = vmul.f32 %v2767, %v2772
    %v2779 = vadd.f32 %v2777, %v2778
    %v2780 = vtanh.pop %v2779
    %v2781 = vmul.f32 %v2776, %v2780
    %v2782 = vadd.f32 %v2613, %v2781
    %v2783 = vld [vmem:[%s1352] sm:$0xff]
    %v2784 = vld [vmem:[%s1352 + $0x8] sm:$0xff]
    %v2785 = vld [vmem:[%s1352 + $0x10] sm:$0xff]
    %v2786 = vld [vmem:[%s1352 + $0x18] sm:$0xff]
    %2787 = vmatprep.subr.mxu0 %v1766
    %2788 = vmatpush1.msra.mxu0 %v1765
    %2789 = vmatprep.subr.mxu0 %v1762
    %2790 = vmatpush1.msra.mxu0 %v1761
    %2791 = vmatprep.subr.mxu0 %v1758
    %2792 = vmatpush1.msra.mxu0 %v1757
    %2793 = vmatprep.subr.mxu0 %v1754
    %2794 = vmatpush1.msra.mxu0 %v1753
    %2795 = vmatprep.subr.mxu0 %v1750
    %2796 = vmatpush1.msra.mxu0 %v1749
    %2797 = vmatprep.subr.mxu0 %v1746
    %2798 = vmatpush1.msra.mxu0 %v1745
    %2799 = vmatprep.subr.mxu0 %v1742
    %2800 = vmatpush1.msra.mxu0 %v1741
    %2801 = vmatprep.subr.mxu0 %v1738
    %2802 = vmatpush1.msra.mxu0 %v1737
    %2803 = vmatprep.subr.mxu0 %v1734
    %2804 = vmatpush1.msra.mxu0 %v1733
    %2805 = vmatprep.subr.mxu0 %v1730
    %2806 = vmatpush1.msra.mxu0 %v1729
    %2807 = vmatprep.subr.mxu0 %v1726
    %2808 = vmatpush1.msra.mxu0 %v1725
    %2809 = vmatprep.subr.mxu0 %v1722
    %2810 = vmatpush1.msra.mxu0 %v1721
    %2811 = vmatprep.subr.mxu0 %v1718
    %2812 = vmatpush1.msra.mxu0 %v1717
    %2813 = vmatprep.subr.mxu0 %v1714
    %2814 = vmatpush1.msra.mxu0 %v1713
    %2815 = vmatprep.subr.mxu0 %v1710
    %2816 = vmatpush1.msra.mxu0 %v1709
    %2817 = vmatprep.subr.mxu0 %v1706
    %2818 = vmatpush1.msra.mxu0 %v1705
    %2819 = vmatprep.subr.mxu0 0.0
    %2820 = vmatpush2.msra.mxu0 0.0
    %2821 = vmatprep.subr.mxu0 0.0
    %2822 = vmatpush2.msra.mxu0 0.0
    %2823 = vmatprep.subr.mxu0 0.0
    %2824 = vmatpush2.msra.mxu0 0.0
    %2825 = vmatprep.subr.mxu0 0.0
    %2826 = vmatpush2.msra.mxu0 0.0
    %2827 = vmatprep.subr.mxu0 0.0
    %2828 = vmatpush2.msra.mxu0 0.0
    %2829 = vmatprep.subr.mxu0 0.0
    %2830 = vmatpush2.msra.mxu0 0.0
    %2831 = vmatprep.subr.mxu0 0.0
    %2832 = vmatpush2.msra.mxu0 0.0
    %2833 = vmatprep.subr.mxu0 0.0
    %2834 = vmatpush2.msra.mxu0 0.0
    %2835 = vmatprep.subr.mxu0 0.0
    %2836 = vmatpush2.msra.mxu0 0.0
    %2837 = vmatprep.subr.mxu0 0.0
    %2838 = vmatpush2.msra.mxu0 0.0
    %2839 = vmatprep.subr.mxu0 0.0
    %2840 = vmatpush2.msra.mxu0 0.0
    %2841 = vmatprep.subr.mxu0 0.0
    %2842 = vmatpush2.msra.mxu0 0.0
    %2843 = vmatprep.subr.mxu0 0.0
    %2844 = vmatpush2.msra.mxu0 0.0
    %2845 = vmatprep.subr.mxu0 0.0
    %2846 = vmatpush2.msra.mxu0 0.0
    %2847 = vmatprep.subr.mxu0 0.0
    %2848 = vmatpush2.msra.mxu0 0.0
    %2849 = vmatprep.subr.mxu0 0.0
    %2850 = vmatpush2.msra.mxu0 0.0
    %2851 = vmatprep.mubr.f32.mxu0 0.0
    %2852 = vmatmul.mubr.f32.gmra.mxu0 %v2781
    %v2853 = vpop.f32.mrf.mxu0
    %v2854 = vadd.f32 0.0, %v2853
    %v2855 = vpop.f32.mrf.mxu0
    %v2856 = vadd.f32 0.0, %v2855
    %2857 = vdwg.mxu0
    %2858 = vmatprep.subr.mxu0 %v1768
    %2859 = vmatpush1.msra.mxu0 %v1767
    %2860 = vmatprep.subr.mxu0 %v1764
    %2861 = vmatpush1.msra.mxu0 %v1763
    %2862 = vmatprep.subr.mxu0 %v1760
    %2863 = vmatpush1.msra.mxu0 %v1759
    %2864 = vmatprep.subr.mxu0 %v1756
    %2865 = vmatpush1.msra.mxu0 %v1755
    %2866 = vmatprep.subr.mxu0 %v1752
    %2867 = vmatpush1.msra.mxu0 %v1751
    %2868 = vmatprep.subr.mxu0 %v1748
    %2869 = vmatpush1.msra.mxu0 %v1747
    %2870 = vmatprep.subr.mxu0 %v1744
    %2871 = vmatpush1.msra.mxu0 %v1743
    %2872 = vmatprep.subr.mxu0 %v1740
    %2873 = vmatpush1.msra.mxu0 %v1739
    %2874 = vmatprep.subr.mxu0 %v1736
    %2875 = vmatpush1.msra.mxu0 %v1735
    %2876 = vmatprep.subr.mxu0 %v1732
    %2877 = vmatpush1.msra.mxu0 %v1731
    %2878 = vmatprep.subr.mxu0 %v1728
    %2879 = vmatpush1.msra.mxu0 %v1727
    %2880 = vmatprep.subr.mxu0 %v1724
    %2881 = vmatpush1.msra.mxu0 %v1723
    %2882 = vmatprep.subr.mxu0 %v1720
    %2883 = vmatpush1.msra.mxu0 %v1719
    %2884 = vmatprep.subr.mxu0 %v1716
    %2885 = vmatpush1.msra.mxu0 %v1715
    %2886 = vmatprep.subr.mxu0 %v1712
    %2887 = vmatpush1.msra.mxu0 %v1711
    %2888 = vmatprep.subr.mxu0 %v1708
    %2889 = vmatpush1.msra.mxu0 %v1707
    %2890 = vmatprep.subr.mxu0 0.0
    %2891 = vmatpush2.msra.mxu0 0.0
    %2892 = vmatprep.subr.mxu0 0.0
    %2893 = vmatpush2.msra.mxu0 0.0
    %2894 = vmatprep.subr.mxu0 0.0
    %2895 = vmatpush2.msra.mxu0 0.0
    %2896 = vmatprep.subr.mxu0 0.0
    %2897 = vmatpush2.msra.mxu0 0.0
    %2898 = vmatprep.subr.mxu0 0.0
    %2899 = vmatpush2.msra.mxu0 0.0
    %2900 = vmatprep.subr.mxu0 0.0
    %2901 = vmatpush2.msra.mxu0 0.0
    %2902 = vmatprep.subr.mxu0 0.0
    %2903 = vmatpush2.msra.mxu0 0.0
    %2904 = vmatprep.subr.mxu0 0.0
    %2905 = vmatpush2.msra.mxu0 0.0
    %2906 = vmatprep.subr.mxu0 0.0
    %2907 = vmatpush2.msra.mxu0 0.0
    %2908 = vmatprep.subr.mxu0 0.0
    %2909 = vmatpush2.msra.mxu0 0.0
    %2910 = vmatprep.subr.mxu0 0.0
    %2911 = vmatpush2.msra.mxu0 0.0
    %2912 = vmatprep.subr.mxu0 0.0
    %2913 = vmatpush2.msra.mxu0 0.0
    %2914 = vmatprep.subr.mxu0 0.0
    %2915 = vmatpush2.msra.mxu0 0.0
    %2916 = vmatprep.subr.mxu0 0.0
    %2917 = vmatpush2.msra.mxu0 0.0
    %2918 = vmatprep.subr.mxu0 0.0
    %2919 = vmatpush2.msra.mxu0 0.0
    %2920 = vmatprep.subr.mxu0 0.0
    %2921 = vmatpush2.msra.mxu0 0.0
    %2922 = vmatprep.mubr.f32.mxu0 0.0
    %2923 = vmatmul.mubr.f32.gmra.mxu0 %v2781
    %v2924 = vpop.f32.mrf.mxu0
    %v2925 = vadd.f32 0.0, %v2924
    %v2926 = vpop.f32.mrf.mxu0
    %v2927 = vadd.f32 0.0, %v2926
    %2928 = vdwg.mxu0
    %v2929 = vadd.f32 %v2783, %v2854
    %v2930 = vadd.f32 %v2784, %v2856
    %v2931 = vadd.f32 %v2785, %v2925
    %v2932 = vadd.f32 %v2786, %v2927
    %v2933 = vmul.f32 %v2929, 0.5
    %v2934 = vtanh.pop %v2933
    %v2935 = vmul.f32 %v2934, 0.5
    %v2936 = vadd.f32 %v2935, 0.5
    %v2937 = vmul.f32 %v2930, 0.5
    %v2938 = vtanh.pop %v2937
    %v2939 = vmul.f32 %v2938, 0.5
    %v2940 = vadd.f32 %v2939, 0.5
    %v2941 = vtanh.pop %v2931
    %v2942 = vmul.f32 %v2932, 0.5
    %v2943 = vtanh.pop %v2942
    %v2944 = vmul.f32 %v2943, 0.5
    %v2945 = vadd.f32 %v2944, 0.5
    %v2946 = vmul.f32 %v2940, %v2779
    %v2947 = vmul.f32 %v2936, %v2941
    %v2948 = vadd.f32 %v2946, %v2947
    %v2949 = vtanh.pop %v2948
    %v2950 = vmul.f32 %v2945, %v2949
    %v2951 = vadd.f32 %v2782, %v2950
    %v2952 = vld [vmem:[%s1531] sm:$0xff]
    %v2953 = vld [vmem:[%s1531 + $0x8] sm:$0xff]
    %v2954 = vld [vmem:[%s1531 + $0x10] sm:$0xff]
    %v2955 = vld [vmem:[%s1531 + $0x18] sm:$0xff]
    %2956 = vmatprep.subr.mxu0 %v1766
    %2957 = vmatpush1.msra.mxu0 %v1765
    %2958 = vmatprep.subr.mxu0 %v1762
    %2959 = vmatpush1.msra.mxu0 %v1761
    %2960 = vmatprep.subr.mxu0 %v1758
    %2961 = vmatpush1.msra.mxu0 %v1757
    %2962 = vmatprep.subr.mxu0 %v1754
    %2963 = vmatpush1.msra.mxu0 %v1753
    %2964 = vmatprep.subr.mxu0 %v1750
    %2965 = vmatpush1.msra.mxu0 %v1749
    %2966 = vmatprep.subr.mxu0 %v1746
    %2967 = vmatpush1.msra.mxu0 %v1745
    %2968 = vmatprep.subr.mxu0 %v1742
    %2969 = vmatpush1.msra.mxu0 %v1741
    %2970 = vmatprep.subr.mxu0 %v1738
    %2971 = vmatpush1.msra.mxu0 %v1737
    %2972 = vmatprep.subr.mxu0 %v1734
    %2973 = vmatpush1.msra.mxu0 %v1733
    %2974 = vmatprep.subr.mxu0 %v1730
    %2975 = vmatpush1.msra.mxu0 %v1729
    %2976 = vmatprep.subr.mxu0 %v1726
    %2977 = vmatpush1.msra.mxu0 %v1725
    %2978 = vmatprep.subr.mxu0 %v1722
    %2979 = vmatpush1.msra.mxu0 %v1721
    %2980 = vmatprep.subr.mxu0 %v1718
    %2981 = vmatpush1.msra.mxu0 %v1717
    %2982 = vmatprep.subr.mxu0 %v1714
    %2983 = vmatpush1.msra.mxu0 %v1713
    %2984 = vmatprep.subr.mxu0 %v1710
    %2985 = vmatpush1.msra.mxu0 %v1709
    %2986 = vmatprep.subr.mxu0 %v1706
    %2987 = vmatpush1.msra.mxu0 %v1705
    %2988 = vmatprep.subr.mxu0 0.0
    %2989 = vmatpush2.msra.mxu0 0.0
    %2990 = vmatprep.subr.mxu0 0.0
    %2991 = vmatpush2.msra.mxu0 0.0
    %2992 = vmatprep.subr.mxu0 0.0
    %2993 = vmatpush2.msra.mxu0 0.0
    %2994 = vmatprep.subr.mxu0 0.0
    %2995 = vmatpush2.msra.mxu0 0.0
    %2996 = vmatprep.subr.mxu0 0.0
    %2997 = vmatpush2.msra.mxu0 0.0
    %2998 = vmatprep.subr.mxu0 0.0
    %2999 = vmatpush2.msra.mxu0 0.0
    %3000 = vmatprep.subr.mxu0 0.0
    %3001 = vmatpush2.msra.mxu0 0.0
    %3002 = vmatprep.subr.mxu0 0.0
    %3003 = vmatpush2.msra.mxu0 0.0
    %3004 = vmatprep.subr.mxu0 0.0
    %3005 = vmatpush2.msra.mxu0 0.0
    %3006 = vmatprep.subr.mxu0 0.0
    %3007 = vmatpush2.msra.mxu0 0.0
    %3008 = vmatprep.subr.mxu0 0.0
    %3009 = vmatpush2.msra.mxu0 0.0
    %3010 = vmatprep.subr.mxu0 0.0
    %3011 = vmatpush2.msra.mxu0 0.0
    %3012 = vmatprep.subr.mxu0 0.0
    %3013 = vmatpush2.msra.mxu0 0.0
    %3014 = vmatprep.subr.mxu0 0.0
    %3015 = vmatpush2.msra.mxu0 0.0
    %3016 = vmatprep.subr.mxu0 0.0
    %3017 = vmatpush2.msra.mxu0 0.0
    %3018 = vmatprep.subr.mxu0 0.0
    %3019 = vmatpush2.msra.mxu0 0.0
    %3020 = vmatprep.mubr.f32.mxu0 0.0
    %3021 = vmatmul.mubr.f32.gmra.mxu0 %v2950
    %v3022 = vpop.f32.mrf.mxu0
    %v3023 = vadd.f32 0.0, %v3022
    %v3024 = vpop.f32.mrf.mxu0
    %v3025 = vadd.f32 0.0, %v3024
    %3026 = vdwg.mxu0
    %3027 = vmatprep.subr.mxu0 %v1768
    %3028 = vmatpush1.msra.mxu0 %v1767
    %3029 = vmatprep.subr.mxu0 %v1764
    %3030 = vmatpush1.msra.mxu0 %v1763
    %3031 = vmatprep.subr.mxu0 %v1760
    %3032 = vmatpush1.msra.mxu0 %v1759
    %3033 = vmatprep.subr.mxu0 %v1756
    %3034 = vmatpush1.msra.mxu0 %v1755
    %3035 = vmatprep.subr.mxu0 %v1752
    %3036 = vmatpush1.msra.mxu0 %v1751
    %3037 = vmatprep.subr.mxu0 %v1748
    %3038 = vmatpush1.msra.mxu0 %v1747
    %3039 = vmatprep.subr.mxu0 %v1744
    %3040 = vmatpush1.msra.mxu0 %v1743
    %3041 = vmatprep.subr.mxu0 %v1740
    %3042 = vmatpush1.msra.mxu0 %v1739
    %3043 = vmatprep.subr.mxu0 %v1736
    %3044 = vmatpush1.msra.mxu0 %v1735
    %3045 = vmatprep.subr.mxu0 %v1732
    %3046 = vmatpush1.msra.mxu0 %v1731
    %3047 = vmatprep.subr.mxu0 %v1728
    %3048 = vmatpush1.msra.mxu0 %v1727
    %3049 = vmatprep.subr.mxu0 %v1724
    %3050 = vmatpush1.msra.mxu0 %v1723
    %3051 = vmatprep.subr.mxu0 %v1720
    %3052 = vmatpush1.msra.mxu0 %v1719
    %3053 = vmatprep.subr.mxu0 %v1716
    %3054 = vmatpush1.msra.mxu0 %v1715
    %3055 = vmatprep.subr.mxu0 %v1712
    %3056 = vmatpush1.msra.mxu0 %v1711
    %3057 = vmatprep.subr.mxu0 %v1708
    %3058 = vmatpush1.msra.mxu0 %v1707
    %3059 = vmatprep.subr.mxu0 0.0
    %3060 = vmatpush2.msra.mxu0 0.0
    %3061 = vmatprep.subr.mxu0 0.0
    %3062 = vmatpush2.msra.mxu0 0.0
    %3063 = vmatprep.subr.mxu0 0.0
    %3064 = vmatpush2.msra.mxu0 0.0
    %3065 = vmatprep.subr.mxu0 0.0
    %3066 = vmatpush2.msra.mxu0 0.0
    %3067 = vmatprep.subr.mxu0 0.0
    %3068 = vmatpush2.msra.mxu0 0.0
    %3069 = vmatprep.subr.mxu0 0.0
    %3070 = vmatpush2.msra.mxu0 0.0
    %3071 = vmatprep.subr.mxu0 0.0
    %3072 = vmatpush2.msra.mxu0 0.0
    %3073 = vmatprep.subr.mxu0 0.0
    %3074 = vmatpush2.msra.mxu0 0.0
    %3075 = vmatprep.subr.mxu0 0.0
    %3076 = vmatpush2.msra.mxu0 0.0
    %3077 = vmatprep.subr.mxu0 0.0
    %3078 = vmatpush2.msra.mxu0 0.0
    %3079 = vmatprep.subr.mxu0 0.0
    %3080 = vmatpush2.msra.mxu0 0.0
    %3081 = vmatprep.subr.mxu0 0.0
    %3082 = vmatpush2.msra.mxu0 0.0
    %3083 = vmatprep.subr.mxu0 0.0
    %3084 = vmatpush2.msra.mxu0 0.0
    %3085 = vmatprep.subr.mxu0 0.0
    %3086 = vmatpush2.msra.mxu0 0.0
    %3087 = vmatprep.subr.mxu0 0.0
    %3088 = vmatpush2.msra.mxu0 0.0
    %3089 = vmatprep.subr.mxu0 0.0
    %3090 = vmatpush2.msra.mxu0 0.0
    %3091 = vmatprep.mubr.f32.mxu0 0.0
    %3092 = vmatmul.mubr.f32.gmra.mxu0 %v2950
    %v3093 = vpop.f32.mrf.mxu0
    %v3094 = vadd.f32 0.0, %v3093
    %v3095 = vpop.f32.mrf.mxu0
    %v3096 = vadd.f32 0.0, %v3095
    %3097 = vdwg.mxu0
    %v3098 = vadd.f32 %v2952, %v3023
    %v3099 = vadd.f32 %v2953, %v3025
    %v3100 = vadd.f32 %v2954, %v3094
    %v3101 = vadd.f32 %v2955, %v3096
    %v3102 = vmul.f32 %v3098, 0.5
    %v3103 = vtanh.pop %v3102
    %v3104 = vmul.f32 %v3103, 0.5
    %v3105 = vadd.f32 %v3104, 0.5
    %v3106 = vmul.f32 %v3099, 0.5
    %v3107 = vtanh.pop %v3106
    %v3108 = vmul.f32 %v3107, 0.5
    %v3109 = vadd.f32 %v3108, 0.5
    %v3110 = vtanh.pop %v3100
    %v3111 = vmul.f32 %v3101, 0.5
    %v3112 = vtanh.pop %v3111
    %v3113 = vmul.f32 %v3112, 0.5
    %v3114 = vadd.f32 %v3113, 0.5
    %v3115 = vmul.f32 %v3109, %v2948
    %v3116 = vmul.f32 %v3105, %v3110
    %v3117 = vadd.f32 %v3115, %v3116
    %v3118 = vtanh.pop %v3117
    %v3119 = vmul.f32 %v3114, %v3118
    %v3120 = vadd.f32 %v2951, %v3119
    %v3121 = vmul.f32 %v3120, 0.125
    %v3122 = vmax.f32 %v3121, 0.0
    %3123 = vst [vmem:[#allocation9] sm:$0xff] %v3122
    // Predicated region
    $region30: #{tpu_custom_call.1} parent=1 // pred_check
      _
    $region31: #{tpu_custom_call.1} parent=1 // pred_check_branch
      %3125 = sbr.rel (0) target = $region33
    $region32: #{tpu_custom_call.1} parent=1 // pred_region
      %s3127 = ssub.s32 128, 128
      %3128 = vsyncadd [#allocation5], %s3127
      %s3130 = sshll.u32 [#allocation9], 4
      %s3131 = int_to_ptr.vmem [resolvable:$true] %s3130
      %3133 = dma.vmem_to_hbm [thread:$0]  %s3131, 128, %s4, [#allocation5]
    $region33: #{tpu_custom_call.1} parent=1 // pred_fallthru
      _
    // Predicated region
    $region34: #{tpu_custom_call.1} parent=1 // pred_check
      _
    $region35: #{tpu_custom_call.1} parent=1 // pred_check_branch
      %3135 = sbr.rel (0) target = $region37
    $region36: #{tpu_custom_call.1} parent=1 // pred_region
      %3136 = dma.done [#allocation5], 128
    $region37: #{tpu_custom_call.1} parent=1 // pred_fallthru
      _
    %3137 = vsyncpa [#allocation4], 1
    %3138 = vsyncpa [#allocation7], 1
    %3139 = vsyncpa [#allocation5], 1

</llo_original>
